<compile_context>
chip_gen: v6e
topology: v6e:2x2x1
jax: 0.10.0
libtpu: 0.0.40
codegen_flags: <defaults>
</compile_context>

<pallas_src>
import functools

import jax
import jax.numpy as jnp
import numpy as np
from jax import lax
from jax.experimental import pallas as pl
from jax.experimental.pallas import tpu as pltpu


def _round_up(x, m):
    return ((x + m - 1) // m) * m


# ----------------------------------------------------------------------------
# Fused tower + pred kernel (grid over the concatenated 2N batch)
# ----------------------------------------------------------------------------
def _tower_pred_kernel(x_ref, wt_ref, bt_ref, g_ref, be_ref, wp_ref, bp_ref,
                       o_ref, *, H, W, num_convs, num_groups):
    C = x_ref.shape[-1]
    HW = H * W
    gsize = C // num_groups
    inv_cnt = 1.0 / float(gsize * HW)

    def pad_hw(a):                                   # (H, W, C) -> (H+2, W+2, C)
        zc = jnp.zeros((H, 1, C), jnp.float32)
        a = jnp.concatenate([zc, a, zc], axis=1)
        zr = jnp.zeros((1, W + 2, C), jnp.float32)
        return jnp.concatenate([zr, a, zr], axis=0)

    def im2col(a):                                   # (H, W, C) -> (HW, 9*C)
        p = pad_hw(a)
        taps = [p[ky:ky + H, kx:kx + W, :] for ky in range(3) for kx in range(3)]
        return jnp.concatenate(taps, axis=-1).reshape(HW, 9 * C)

    if gsize > 1:
        gid_r = lax.broadcasted_iota(jnp.int32, (C, C), 0) // gsize
        gid_c = lax.broadcasted_iota(jnp.int32, (C, C), 1) // gsize
        gmat = (gid_r == gid_c).astype(jnp.float32)

        def group_avg(v):                            # (1, C) -> group mean, (1, C)
            return jnp.dot(v, gmat, preferred_element_type=jnp.float32) * inv_cnt
    else:
        def group_avg(v):                            # group size 1: per-channel
            return v * inv_cnt

    act = x_ref[0].astype(jnp.float32)               # (H, W, C)

    for l in range(num_convs):
        patches = im2col(act)                                          # (HW, 9C)
        y = jnp.dot(patches, wt_ref[l], preferred_element_type=jnp.float32)
        y = y + bt_ref[l:l + 1, :]                                     # (HW, C)
        # GroupNorm (biased variance, eps=1e-5), two-pass (centered) stats.
        mean_c = group_avg(jnp.sum(y, axis=0, keepdims=True))
        cen = y - mean_c
        var_c = group_avg(jnp.sum(cen * cen, axis=0, keepdims=True))
        y = cen * lax.rsqrt(var_c + 1e-5)
        y = y * g_ref[l:l + 1, :] + be_ref[l:l + 1, :]
        y = jnp.maximum(y, 0.0)                                        # ReLU
        act = y.reshape(H, W, C)

    patches = im2col(act)
    out = jnp.dot(patches, wp_ref[...], preferred_element_type=jnp.float32)
    out = out + bp_ref[...]                                            # (HW, Pout)
    # Lane-dense store: (HW, Pout) -> (Pout, HW) so the last dim is wide.
    o_ref[0] = out.T.astype(o_ref.dtype)


def tower_pred_call(x_nhwc, wt, bt, gamma, beta, wp, bp, *, num_convs, num_groups):
    B, H, W, C = x_nhwc.shape
    Pout = wp.shape[-1]
    HW = H * W
    kernel = functools.partial(_tower_pred_kernel, H=H, W=W,
                               num_convs=num_convs, num_groups=num_groups)
    cost = pl.CostEstimate(
        flops=int(2 * B * HW * 9 * C * (num_convs * C + Pout)),
        transcendentals=int(B * num_convs * C),
        bytes_accessed=int(4 * (x_nhwc.size + wt.size + wp.size + B * HW * Pout)))
    out = pl.pallas_call(
        kernel,
        out_shape=jax.ShapeDtypeStruct((B, Pout, HW), jnp.float32),
        grid_spec=pltpu.PrefetchScalarGridSpec(
            num_scalar_prefetch=0,
            grid=(B,),
            in_specs=[
                pl.BlockSpec((1, H, W, C), lambda n: (n, 0, 0, 0)),
                pl.BlockSpec((num_convs, 9 * C, C), lambda n: (0, 0, 0)),
                pl.BlockSpec((num_convs, C), lambda n: (0, 0)),
                pl.BlockSpec((num_convs, C), lambda n: (0, 0)),
                pl.BlockSpec((num_convs, C), lambda n: (0, 0)),
                pl.BlockSpec((9 * C, Pout), lambda n: (0, 0)),
                pl.BlockSpec((1, Pout), lambda n: (0, 0)),
            ],
            out_specs=pl.BlockSpec((1, Pout, HW), lambda n: (n, 0, 0)),
        ),
        compiler_params=pltpu.CompilerParams(dimension_semantics=("parallel",)),
        cost_estimate=cost,
    )(x_nhwc, wt, bt, gamma, beta, wp, bp)
    return out                                          # (B, Pout, HW)


# ----------------------------------------------------------------------------
# Adversarial bin loss kernel: row-tiled, full-width sigmoid/log,
# iota-group-mask argmax/gather, resident (1,1) accumulator.
# ----------------------------------------------------------------------------
def _bin_adv_loss_kernel(bin_s_ref, bin_t_ref, adv_s_ref, adv_t_ref,
                         cls_s_ref, ctr_s_ref, cls_t_ref, ctr_t_ref, o_ref,
                         *, num_bin, n_rows, caw, use_dis_ca):
    eps = 1e-5
    step = pl.program_id(0)
    TR, W4 = bin_s_ref.shape

    @pl.when(step == 0)
    def _init():
        o_ref[...] = jnp.zeros_like(o_ref)

    def atten(cls_ref, ctr_ref):
        cls = jax.nn.sigmoid(cls_ref[...])               # (TR, num_classes)
        ctr = jax.nn.sigmoid(ctr_ref[...])               # (TR, 1)
        mx = jnp.max(cls, axis=-1, keepdims=True)        # AdaptiveMaxPool3d
        return jax.nn.sigmoid(caw * mx * ctr)            # (TR, 1)

    # Full-width sigmoid/log over all 4 directions at once.
    logp_s = jnp.log(jax.nn.sigmoid(adv_s_ref[...]) + eps)         # (TR, W4)
    logp_t = jnp.log(1.0 - jax.nn.sigmoid(adv_t_ref[...]) + eps)   # (TR, W4)
    if use_dis_ca:
        logp_s = logp_s * atten(cls_s_ref, ctr_s_ref)
        logp_t = logp_t * atten(cls_t_ref, ctr_t_ref)

    lane = lax.broadcasted_iota(jnp.int32, (TR, W4), 1)
    group_ids = lane // num_bin                          # 0..3 (l, t, b, r)
    within_ids = lane - group_ids * num_bin              # 0..num_bin-1
    rows = step * TR + lax.broadcasted_iota(jnp.int32, (TR, 1), 0)
    valid = (rows < n_rows).astype(jnp.float32)          # mask padded rows

    def gathered_sum(logp, scores):
        # per-group max, broadcast back to full width via group masks
        gmax = jnp.full_like(scores, -jnp.inf)
        for g in range(4):
            gmask = group_ids == g
            m_g = jnp.max(jnp.where(gmask, scores, -jnp.inf), axis=-1, keepdims=True)
            gmax = jnp.where(gmask, m_g, gmax)
        # first-occurrence argmax inside each group
        cand = jnp.where(scores >= gmax, within_ids, num_bin)
        gidx = jnp.zeros_like(group_ids)
        for g in range(4):
            gmask = group_ids == g
            i_g = jnp.min(jnp.where(gmask, cand, num_bin), axis=-1, keepdims=True)
            gidx = jnp.where(gmask, i_g, gidx)
        sel = jnp.where(within_ids == gidx, logp, 0.0)
        return jnp.sum(sel * valid, axis=(0, 1), keepdims=True)     # (1, 1)

    part = gathered_sum(logp_s, bin_s_ref[...]) + gathered_sum(logp_t, bin_t_ref[...])
    o_ref[...] = o_ref[...] + part

    @pl.when(step == pl.num_programs(0) - 1)
    def _fin():
        # 4 direction-means per domain, summed, /4, * cls_bin_gama(=0.2)
        o_ref[...] = o_ref[...] * (-0.2 / (4.0 * n_rows))


def bin_adv_loss(bin_s, bin_t, adv_s, adv_t, cls_s, ctr_s, cls_t, ctr_t,
                 *, num_bin, center_aware_weight, use_dis_ca, row_tile=256):
    R = bin_s.shape[0]
    TR = min(row_tile, _round_up(R, 8))
    R_pad = _round_up(R, TR)

    def padr(a):
        return a if a.shape[0] == R_pad else jnp.pad(a, ((0, R_pad - a.shape[0]), (0, 0)))

    arrays = [padr(a) for a in (bin_s, bin_t, adv_s, adv_t, cls_s, ctr_s, cls_t, ctr_t)]
    in_specs = [pl.BlockSpec((TR, a.shape[1]), lambda i: (i, 0)) for a in arrays]
    kernel = functools.partial(_bin_adv_loss_kernel, num_bin=num_bin, n_rows=R,
                               caw=center_aware_weight, use_dis_ca=use_dis_ca)
    cost = pl.CostEstimate(
        flops=int(R * 4 * num_bin * 32),
        transcendentals=int(R * (4 * 4 * num_bin + 16)),
        bytes_accessed=int(4 * sum(a.size for a in arrays) + 4))
    out = pl.pallas_call(
        kernel,
        out_shape=jax.ShapeDtypeStruct((1, 1), jnp.float32),
        grid_spec=pltpu.PrefetchScalarGridSpec(
            num_scalar_prefetch=0,
            grid=(R_pad // TR,),
            in_specs=in_specs,
            out_specs=pl.BlockSpec((1, 1), lambda i: (0, 0)),
        ),
        compiler_params=pltpu.CompilerParams(dimension_semantics=("arbitrary",)),
        cost_estimate=cost,
    )(*arrays)
    return out[0, 0]


# ----------------------------------------------------------------------------
# Module forward (wrapper: layout transposes + parameter packing)
# ----------------------------------------------------------------------------
def fcos_discriminator_bin_forward(params, box_bin_source, box_bin_target,
                                   features_s, features_t,
                                   score_maps_s, score_maps_t,
                                   *, num_groups, center_aware_weight, use_dis_ca):
    # GradientReversal is the identity in the forward pass.
    # TODO(synk): the gradient-flip of GradientReversal is an autograd-only
    # effect and is not represented in this forward-only kernel.
    N, C, H, W = features_s.shape
    feats = jnp.concatenate([features_s, features_t], axis=0)     # (2N, C, H, W)
    x = jnp.transpose(feats, (0, 2, 3, 1))                        # NHWC

    tower = params["tower"]
    num_convs = len(tower)
    wt = jnp.stack([w.reshape(9 * C, C) for (w, _, _, _) in tower], axis=0)
    bt = jnp.stack([b for (_, b, _, _) in tower], axis=0)
    gt = jnp.stack([g for (_, _, g, _) in tower], axis=0)
    bet = jnp.stack([be for (_, _, _, be) in tower], axis=0)
    wp, bp = params["pred"]
    Pout = wp.shape[-1]
    wp2 = wp.reshape(9 * C, Pout)
    bp2 = bp.reshape(1, Pout)

    adv = tower_pred_call(x, wt, bt, gt, bet, wp2, bp2,
                          num_convs=num_convs, num_groups=num_groups)  # (2N,Pout,HW)
    adv = jnp.transpose(adv, (0, 2, 1))                                # (2N,HW,Pout)
    adv_s = adv[:N].reshape(N * H * W, Pout)
    adv_t = adv[N:].reshape(N * H * W, Pout)

    def nchw_to_flat(a):
        n, c, h, w = a.shape
        return jnp.transpose(a, (0, 2, 3, 1)).reshape(n * h * w, c)

    num_bin = box_bin_source.shape[1] // 4
    return bin_adv_loss(
        nchw_to_flat(box_bin_source), nchw_to_flat(box_bin_target),
        adv_s, adv_t,
        nchw_to_flat(score_maps_s["box_cls"]), nchw_to_flat(score_maps_s["centerness"]),
        nchw_to_flat(score_maps_t["box_cls"]), nchw_to_flat(score_maps_t["centerness"]),
        num_bin=num_bin, center_aware_weight=center_aware_weight,
        use_dis_ca=use_dis_ca)


# ----------------------------------------------------------------------------
# Pure-JAX reference (correctness check)
# ----------------------------------------------------------------------------
def ref_forward(params, box_bin_s, box_bin_t, feat_s, feat_t, sm_s, sm_t,
                *, num_groups, caw, use_dis_ca):
    def tower_and_pred(x):
        for (w, b, gamma, beta) in params["tower"]:
            w_oihw = jnp.transpose(w, (3, 2, 0, 1))
            x = lax.conv_general_dilated(x, w_oihw, (1, 1), "SAME",
                                         dimension_numbers=("NCHW", "OIHW", "NCHW"))
            x = x + b[None, :, None, None]
            N, C, H, W = x.shape
            xr = x.reshape(N, num_groups, C // num_groups, H, W)
            m = jnp.mean(xr, axis=(2, 3, 4), keepdims=True)
            v = jnp.mean((xr - m) ** 2, axis=(2, 3, 4), keepdims=True)
            xr = (xr - m) / jnp.sqrt(v + 1e-5)
            x = xr.reshape(N, C, H, W) * gamma[None, :, None, None] + beta[None, :, None, None]
            x = jnp.maximum(x, 0.0)
        wp, bp = params["pred"]
        w_oihw = jnp.transpose(wp, (3, 2, 0, 1))
        x = lax.conv_general_dilated(x, w_oihw, (1, 1), "SAME",
                                     dimension_numbers=("NCHW", "OIHW", "NCHW"))
        return x + bp[None, :, None, None]

    adv_s = tower_and_pred(feat_s)
    adv_t = tower_and_pred(feat_t)

    def atten(sm):
        cls = jax.nn.sigmoid(sm["box_cls"])
        ctr = jax.nn.sigmoid(sm["centerness"])
        mx = jnp.max(cls, axis=1, keepdims=True)
        return jax.nn.sigmoid(caw * mx * ctr)

    a_s, a_t = atten(sm_s), atten(sm_t)
    eps = 1e-5
    num_bin = box_bin_s.shape[1] // 4

    def nll(logp, scores):
        idx = jnp.argmax(scores, axis=1)
        sel = jnp.take_along_axis(logp, idx[:, None, :, :], axis=1)
        return -jnp.mean(sel)

    total = 0.0
    for k in range(4):
        sl = slice(k * num_bin, (k + 1) * num_bin)
        lp_s = jnp.log(jax.nn.sigmoid(adv_s[:, sl]) + eps)
        lp_t = jnp.log(1.0 - jax.nn.sigmoid(adv_t[:, sl]) + eps)
        if use_dis_ca:
            lp_s = lp_s * a_s
            lp_t = lp_t * a_t
        total = total + nll(lp_s, box_bin_s[:, sl]) + nll(lp_t, box_bin_t[:, sl])
    return 0.2 * total / 4.0


# ----------------------------------------------------------------------------
if __name__ == "__main__":
    # Small synthetic config consistent with the module.
    N, C, H, W = 2, 32, 16, 16          # in_channels = 32
    NUM_CONVS = 2                        # cfg.MODEL.FCOS.NUM_CONVS
    NUM_GROUPS = 32                      # nn.GroupNorm(32, in_channels)
    NUM_REG_BIN = 8                      # cfg.BIN.NUM_REG_BIN
    NUM_CLASSES = 4                      # cfg.MODEL.FCOS.NUM_CLASSES - 1
    CENTER_AWARE_WEIGHT = 20.0
    USE_DIS_CA = True                    # cfg.MODEL.ADV.USE_DIS_CENTER_AWARE

    key = jax.random.PRNGKey(0)
    keys = jax.random.split(key, 16)
    kidx = 0

    # torch-style init: conv weight normal(std=0.01), bias 0, GN weight 1 bias 0.
    tower = []
    for _ in range(NUM_CONVS):
        w = 0.01 * jax.random.normal(keys[kidx], (3, 3, C, C), jnp.float32); kidx += 1
        tower.append((w,
                      jnp.zeros((C,), jnp.float32),
                      jnp.ones((C,), jnp.float32),
                      jnp.zeros((C,), jnp.float32)))
    wp = 0.01 * jax.random.normal(keys[kidx], (3, 3, C, 4 * NUM_REG_BIN), jnp.float32); kidx += 1
    bp = jnp.zeros((4 * NUM_REG_BIN,), jnp.float32)
    params = {"tower": tower, "pred": (wp, bp)}

    feat_s = jax.random.normal(keys[kidx], (N, C, H, W), jnp.float32); kidx += 1
    feat_t = jax.random.normal(keys[kidx], (N, C, H, W), jnp.float32); kidx += 1
    box_bin_s = jax.random.normal(keys[kidx], (N, 4 * NUM_REG_BIN, H, W), jnp.float32); kidx += 1
    box_bin_t = jax.random.normal(keys[kidx], (N, 4 * NUM_REG_BIN, H, W), jnp.float32); kidx += 1
    sm_s = {"box_cls": jax.random.normal(keys[kidx], (N, NUM_CLASSES, H, W), jnp.float32),
            "centerness": jax.random.normal(keys[kidx + 1], (N, 1, H, W), jnp.float32)}
    kidx += 2
    sm_t = {"box_cls": jax.random.normal(keys[kidx], (N, NUM_CLASSES, H, W), jnp.float32),
            "centerness": jax.random.normal(keys[kidx + 1], (N, 1, H, W), jnp.float32)}
    kidx += 2

    loss = fcos_discriminator_bin_forward(
        params, box_bin_s, box_bin_t, feat_s, feat_t, sm_s, sm_t,
        num_groups=NUM_GROUPS, center_aware_weight=CENTER_AWARE_WEIGHT,
        use_dis_ca=USE_DIS_CA)
    loss = jax.block_until_ready(loss)

    ref = ref_forward(params, box_bin_s, box_bin_t, feat_s, feat_t, sm_s, sm_t,
                      num_groups=NUM_GROUPS, caw=CENTER_AWARE_WEIGHT,
                      use_dis_ca=USE_DIS_CA)
    ref = jax.block_until_ready(ref)

    if not np.allclose(np.asarray(loss), np.asarray(ref), rtol=1e-3, atol=1e-5):
        raise AssertionError(f"mismatch: pallas={float(loss)} ref={float(ref)}")
    print("KERNEL_OK")
</pallas_src>

<mosaic_0001>
module attributes {stable_mosaic.version = 11 : i64} {
  func.func @_tower_pred_kernel(%arg0: i32, %arg1: memref<1x16x16x32xf32, #tpu.memory_space<vmem>>, %arg2: memref<2x288x32xf32, #tpu.memory_space<vmem>>, %arg3: memref<2x32xf32, #tpu.memory_space<vmem>>, %arg4: memref<2x32xf32, #tpu.memory_space<vmem>>, %arg5: memref<2x32xf32, #tpu.memory_space<vmem>>, %arg6: memref<288x32xf32, #tpu.memory_space<vmem>>, %arg7: memref<1x32xf32, #tpu.memory_space<vmem>>, %arg8: memref<1x32x256xf32, #tpu.memory_space<vmem>>) attributes {dimension_semantics = [#tpu.dimension_semantics<parallel>], iteration_bounds = array<i64: 4>, scalar_prefetch = 0 : i64, scratch_operands = 0 : i64, tpu.core_type = #tpu.core_type<tc>, window_params = [{transform_indices = @transform_0, window_bounds = array<i64: 1, 16, 16, 32>}, {pipeline_mode = #tpu.pipeline_mode<synchronous>, transform_indices = @transform_1, window_bounds = array<i64: 2, 288, 32>}, {pipeline_mode = #tpu.pipeline_mode<synchronous>, transform_indices = @transform_2, window_bounds = array<i64: 2, 32>}, {pipeline_mode = #tpu.pipeline_mode<synchronous>, transform_indices = @transform_3, window_bounds = array<i64: 2, 32>}, {pipeline_mode = #tpu.pipeline_mode<synchronous>, transform_indices = @transform_4, window_bounds = array<i64: 2, 32>}, {pipeline_mode = #tpu.pipeline_mode<synchronous>, transform_indices = @transform_5, window_bounds = array<i64: 288, 32>}, {pipeline_mode = #tpu.pipeline_mode<synchronous>, transform_indices = @transform_6, window_bounds = array<i64: 1, 32>}, {transform_indices = @transform_7, window_bounds = array<i64: 1, 32, 256>}]} {
    %c0 = arith.constant 0 : index
    %c0_0 = arith.constant 0 : index
    %c0_1 = arith.constant 0 : index
    %c0_2 = arith.constant 0 : index
    %0 = vector.load %arg1[%c0, %c0_0, %c0_1, %c0_2] : memref<1x16x16x32xf32, #tpu.memory_space<vmem>>, vector<1x16x16x32xf32>
    %1 = vector.shape_cast %0 : vector<1x16x16x32xf32> to vector<16x16x32xf32>
    %cst = arith.constant 0.000000e+00 : f32
    %2 = vector.broadcast %cst : f32 to vector<16x1x32xf32>
    %3 = tpu.concatenate %2, %1, %2 in 1 : vector<16x1x32xf32>, vector<16x16x32xf32>, vector<16x1x32xf32> -> vector<16x18x32xf32>
    %cst_3 = arith.constant 0.000000e+00 : f32
    %4 = vector.broadcast %cst_3 : f32 to vector<1x18x32xf32>
    %5 = tpu.concatenate %4, %3, %4 in 0 : vector<1x18x32xf32>, vector<16x18x32xf32>, vector<1x18x32xf32> -> vector<18x18x32xf32>
    %6 = vector.extract_strided_slice %5 {offsets = [0, 0, 0], sizes = [16, 16, 32], strides = [1, 1, 1]} : vector<18x18x32xf32> to vector<16x16x32xf32>
    %7 = vector.extract_strided_slice %5 {offsets = [0, 1, 0], sizes = [16, 16, 32], strides = [1, 1, 1]} : vector<18x18x32xf32> to vector<16x16x32xf32>
    %8 = vector.extract_strided_slice %5 {offsets = [0, 2, 0], sizes = [16, 16, 32], strides = [1, 1, 1]} : vector<18x18x32xf32> to vector<16x16x32xf32>
    %9 = vector.extract_strided_slice %5 {offsets = [1, 0, 0], sizes = [16, 16, 32], strides = [1, 1, 1]} : vector<18x18x32xf32> to vector<16x16x32xf32>
    %10 = vector.extract_strided_slice %5 {offsets = [1, 1, 0], sizes = [16, 16, 32], strides = [1, 1, 1]} : vector<18x18x32xf32> to vector<16x16x32xf32>
    %11 = vector.extract_strided_slice %5 {offsets = [1, 2, 0], sizes = [16, 16, 32], strides = [1, 1, 1]} : vector<18x18x32xf32> to vector<16x16x32xf32>
    %12 = vector.extract_strided_slice %5 {offsets = [2, 0, 0], sizes = [16, 16, 32], strides = [1, 1, 1]} : vector<18x18x32xf32> to vector<16x16x32xf32>
    %13 = vector.extract_strided_slice %5 {offsets = [2, 1, 0], sizes = [16, 16, 32], strides = [1, 1, 1]} : vector<18x18x32xf32> to vector<16x16x32xf32>
    %14 = vector.extract_strided_slice %5 {offsets = [2, 2, 0], sizes = [16, 16, 32], strides = [1, 1, 1]} : vector<18x18x32xf32> to vector<16x16x32xf32>
    %15 = tpu.concatenate %6, %7, %8, %9, %10, %11, %12, %13, %14 in 2 : vector<16x16x32xf32>, vector<16x16x32xf32>, vector<16x16x32xf32>, vector<16x16x32xf32>, vector<16x16x32xf32>, vector<16x16x32xf32>, vector<16x16x32xf32>, vector<16x16x32xf32>, vector<16x16x32xf32> -> vector<16x16x288xf32>
    %16 = vector.shape_cast %15 : vector<16x16x288xf32> to vector<256x288xf32>
    %c0_4 = arith.constant 0 : index
    %c0_5 = arith.constant 0 : index
    %c0_6 = arith.constant 0 : index
    %17 = vector.load %arg2[%c0_4, %c0_5, %c0_6] : memref<2x288x32xf32, #tpu.memory_space<vmem>>, vector<1x288x32xf32>
    %18 = vector.shape_cast %17 : vector<1x288x32xf32> to vector<288x32xf32>
    %cst_7 = arith.constant dense<0.000000e+00> : vector<256x32xf32>
    %19 = tpu.matmul %16, %18, %cst_7 {dimension_numbers = #tpu.dot_dimension_numbers<[1], [0], [0], [1], [0, 0, 1, 1], [], []>} : vector<256x288xf32>, vector<288x32xf32>, vector<256x32xf32> -> vector<256x32xf32>
    %c0_8 = arith.constant 0 : index
    %c0_9 = arith.constant 0 : index
    %20 = vector.load %arg3[%c0_8, %c0_9] : memref<2x32xf32, #tpu.memory_space<vmem>>, vector<1x32xf32>
    %21 = vector.broadcast %20 : vector<1x32xf32> to vector<256x32xf32>
    %22 = arith.addf %19, %21 : vector<256x32xf32>
    %cst_10 = arith.constant dense<0.000000e+00> : vector<32xf32>
    %23 = vector.multi_reduction <add>, %22, %cst_10 [0] : vector<256x32xf32> to vector<32xf32>
    %24 = vector.shape_cast %23 : vector<32xf32> to vector<1x32xf32>
    %cst_11 = arith.constant 3.906250e-03 : f32
    %25 = vector.broadcast %cst_11 : f32 to vector<1x32xf32>
    %26 = arith.mulf %24, %25 : vector<1x32xf32>
    %27 = vector.broadcast %26 : vector<1x32xf32> to vector<256x32xf32>
    %28 = arith.subf %22, %27 : vector<256x32xf32>
    %29 = arith.mulf %28, %28 : vector<256x32xf32>
    %cst_12 = arith.constant dense<0.000000e+00> : vector<32xf32>
    %30 = vector.multi_reduction <add>, %29, %cst_12 [0] : vector<256x32xf32> to vector<32xf32>
    %31 = vector.shape_cast %30 : vector<32xf32> to vector<1x32xf32>
    %cst_13 = arith.constant 3.906250e-03 : f32
    %32 = vector.broadcast %cst_13 : f32 to vector<1x32xf32>
    %33 = arith.mulf %31, %32 : vector<1x32xf32>
    %cst_14 = arith.constant 9.99999974E-6 : f32
    %34 = vector.broadcast %cst_14 : f32 to vector<1x32xf32>
    %35 = arith.addf %33, %34 : vector<1x32xf32>
    %36 = math.rsqrt %35 : vector<1x32xf32>
    %37 = vector.broadcast %36 : vector<1x32xf32> to vector<256x32xf32>
    %38 = arith.mulf %28, %37 : vector<256x32xf32>
    %c0_15 = arith.constant 0 : index
    %c0_16 = arith.constant 0 : index
    %39 = vector.load %arg4[%c0_15, %c0_16] : memref<2x32xf32, #tpu.memory_space<vmem>>, vector<1x32xf32>
    %40 = vector.broadcast %39 : vector<1x32xf32> to vector<256x32xf32>
    %41 = arith.mulf %38, %40 : vector<256x32xf32>
    %c0_17 = arith.constant 0 : index
    %c0_18 = arith.constant 0 : index
    %42 = vector.load %arg5[%c0_17, %c0_18] : memref<2x32xf32, #tpu.memory_space<vmem>>, vector<1x32xf32>
    %43 = vector.broadcast %42 : vector<1x32xf32> to vector<256x32xf32>
    %44 = arith.addf %41, %43 : vector<256x32xf32>
    %cst_19 = arith.constant 0.000000e+00 : f32
    %45 = vector.broadcast %cst_19 : f32 to vector<256x32xf32>
    %46 = arith.maximumf %44, %45 : vector<256x32xf32>
    %47 = vector.shape_cast %46 : vector<256x32xf32> to vector<16x16x32xf32>
    %cst_20 = arith.constant 0.000000e+00 : f32
    %48 = vector.broadcast %cst_20 : f32 to vector<16x1x32xf32>
    %49 = tpu.concatenate %48, %47, %48 in 1 : vector<16x1x32xf32>, vector<16x16x32xf32>, vector<16x1x32xf32> -> vector<16x18x32xf32>
    %cst_21 = arith.constant 0.000000e+00 : f32
    %50 = vector.broadcast %cst_21 : f32 to vector<1x18x32xf32>
    %51 = tpu.concatenate %50, %49, %50 in 0 : vector<1x18x32xf32>, vector<16x18x32xf32>, vector<1x18x32xf32> -> vector<18x18x32xf32>
    %52 = vector.extract_strided_slice %51 {offsets = [0, 0, 0], sizes = [16, 16, 32], strides = [1, 1, 1]} : vector<18x18x32xf32> to vector<16x16x32xf32>
    %53 = vector.extract_strided_slice %51 {offsets = [0, 1, 0], sizes = [16, 16, 32], strides = [1, 1, 1]} : vector<18x18x32xf32> to vector<16x16x32xf32>
    %54 = vector.extract_strided_slice %51 {offsets = [0, 2, 0], sizes = [16, 16, 32], strides = [1, 1, 1]} : vector<18x18x32xf32> to vector<16x16x32xf32>
    %55 = vector.extract_strided_slice %51 {offsets = [1, 0, 0], sizes = [16, 16, 32], strides = [1, 1, 1]} : vector<18x18x32xf32> to vector<16x16x32xf32>
    %56 = vector.extract_strided_slice %51 {offsets = [1, 1, 0], sizes = [16, 16, 32], strides = [1, 1, 1]} : vector<18x18x32xf32> to vector<16x16x32xf32>
    %57 = vector.extract_strided_slice %51 {offsets = [1, 2, 0], sizes = [16, 16, 32], strides = [1, 1, 1]} : vector<18x18x32xf32> to vector<16x16x32xf32>
    %58 = vector.extract_strided_slice %51 {offsets = [2, 0, 0], sizes = [16, 16, 32], strides = [1, 1, 1]} : vector<18x18x32xf32> to vector<16x16x32xf32>
    %59 = vector.extract_strided_slice %51 {offsets = [2, 1, 0], sizes = [16, 16, 32], strides = [1, 1, 1]} : vector<18x18x32xf32> to vector<16x16x32xf32>
    %60 = vector.extract_strided_slice %51 {offsets = [2, 2, 0], sizes = [16, 16, 32], strides = [1, 1, 1]} : vector<18x18x32xf32> to vector<16x16x32xf32>
    %61 = tpu.concatenate %52, %53, %54, %55, %56, %57, %58, %59, %60 in 2 : vector<16x16x32xf32>, vector<16x16x32xf32>, vector<16x16x32xf32>, vector<16x16x32xf32>, vector<16x16x32xf32>, vector<16x16x32xf32>, vector<16x16x32xf32>, vector<16x16x32xf32>, vector<16x16x32xf32> -> vector<16x16x288xf32>
    %62 = vector.shape_cast %61 : vector<16x16x288xf32> to vector<256x288xf32>
    %c1 = arith.constant 1 : index
    %c0_22 = arith.constant 0 : index
    %c0_23 = arith.constant 0 : index
    %63 = vector.load %arg2[%c1, %c0_22, %c0_23] : memref<2x288x32xf32, #tpu.memory_space<vmem>>, vector<1x288x32xf32>
    %64 = vector.shape_cast %63 : vector<1x288x32xf32> to vector<288x32xf32>
    %cst_24 = arith.constant dense<0.000000e+00> : vector<256x32xf32>
    %65 = tpu.matmul %62, %64, %cst_24 {dimension_numbers = #tpu.dot_dimension_numbers<[1], [0], [0], [1], [0, 0, 1, 1], [], []>} : vector<256x288xf32>, vector<288x32xf32>, vector<256x32xf32> -> vector<256x32xf32>
    %c1_25 = arith.constant 1 : index
    %c0_26 = arith.constant 0 : index
    %66 = vector.load %arg3[%c1_25, %c0_26] : memref<2x32xf32, #tpu.memory_space<vmem>>, vector<1x32xf32>
    %67 = vector.broadcast %66 : vector<1x32xf32> to vector<256x32xf32>
    %68 = arith.addf %65, %67 : vector<256x32xf32>
    %cst_27 = arith.constant dense<0.000000e+00> : vector<32xf32>
    %69 = vector.multi_reduction <add>, %68, %cst_27 [0] : vector<256x32xf32> to vector<32xf32>
    %70 = vector.shape_cast %69 : vector<32xf32> to vector<1x32xf32>
    %cst_28 = arith.constant 3.906250e-03 : f32
    %71 = vector.broadcast %cst_28 : f32 to vector<1x32xf32>
    %72 = arith.mulf %70, %71 : vector<1x32xf32>
    %73 = vector.broadcast %72 : vector<1x32xf32> to vector<256x32xf32>
    %74 = arith.subf %68, %73 : vector<256x32xf32>
    %75 = arith.mulf %74, %74 : vector<256x32xf32>
    %cst_29 = arith.constant dense<0.000000e+00> : vector<32xf32>
    %76 = vector.multi_reduction <add>, %75, %cst_29 [0] : vector<256x32xf32> to vector<32xf32>
    %77 = vector.shape_cast %76 : vector<32xf32> to vector<1x32xf32>
    %cst_30 = arith.constant 3.906250e-03 : f32
    %78 = vector.broadcast %cst_30 : f32 to vector<1x32xf32>
    %79 = arith.mulf %77, %78 : vector<1x32xf32>
    %cst_31 = arith.constant 9.99999974E-6 : f32
    %80 = vector.broadcast %cst_31 : f32 to vector<1x32xf32>
    %81 = arith.addf %79, %80 : vector<1x32xf32>
    %82 = math.rsqrt %81 : vector<1x32xf32>
    %83 = vector.broadcast %82 : vector<1x32xf32> to vector<256x32xf32>
    %84 = arith.mulf %74, %83 : vector<256x32xf32>
    %c1_32 = arith.constant 1 : index
    %c0_33 = arith.constant 0 : index
    %85 = vector.load %arg4[%c1_32, %c0_33] : memref<2x32xf32, #tpu.memory_space<vmem>>, vector<1x32xf32>
    %86 = vector.broadcast %85 : vector<1x32xf32> to vector<256x32xf32>
    %87 = arith.mulf %84, %86 : vector<256x32xf32>
    %c1_34 = arith.constant 1 : index
    %c0_35 = arith.constant 0 : index
    %88 = vector.load %arg5[%c1_34, %c0_35] : memref<2x32xf32, #tpu.memory_space<vmem>>, vector<1x32xf32>
    %89 = vector.broadcast %88 : vector<1x32xf32> to vector<256x32xf32>
    %90 = arith.addf %87, %89 : vector<256x32xf32>
    %cst_36 = arith.constant 0.000000e+00 : f32
    %91 = vector.broadcast %cst_36 : f32 to vector<256x32xf32>
    %92 = arith.maximumf %90, %91 : vector<256x32xf32>
    %93 = vector.shape_cast %92 : vector<256x32xf32> to vector<16x16x32xf32>
    %cst_37 = arith.constant 0.000000e+00 : f32
    %94 = vector.broadcast %cst_37 : f32 to vector<16x1x32xf32>
    %95 = tpu.concatenate %94, %93, %94 in 1 : vector<16x1x32xf32>, vector<16x16x32xf32>, vector<16x1x32xf32> -> vector<16x18x32xf32>
    %cst_38 = arith.constant 0.000000e+00 : f32
    %96 = vector.broadcast %cst_38 : f32 to vector<1x18x32xf32>
    %97 = tpu.concatenate %96, %95, %96 in 0 : vector<1x18x32xf32>, vector<16x18x32xf32>, vector<1x18x32xf32> -> vector<18x18x32xf32>
    %98 = vector.extract_strided_slice %97 {offsets = [0, 0, 0], sizes = [16, 16, 32], strides = [1, 1, 1]} : vector<18x18x32xf32> to vector<16x16x32xf32>
    %99 = vector.extract_strided_slice %97 {offsets = [0, 1, 0], sizes = [16, 16, 32], strides = [1, 1, 1]} : vector<18x18x32xf32> to vector<16x16x32xf32>
    %100 = vector.extract_strided_slice %97 {offsets = [0, 2, 0], sizes = [16, 16, 32], strides = [1, 1, 1]} : vector<18x18x32xf32> to vector<16x16x32xf32>
    %101 = vector.extract_strided_slice %97 {offsets = [1, 0, 0], sizes = [16, 16, 32], strides = [1, 1, 1]} : vector<18x18x32xf32> to vector<16x16x32xf32>
    %102 = vector.extract_strided_slice %97 {offsets = [1, 1, 0], sizes = [16, 16, 32], strides = [1, 1, 1]} : vector<18x18x32xf32> to vector<16x16x32xf32>
    %103 = vector.extract_strided_slice %97 {offsets = [1, 2, 0], sizes = [16, 16, 32], strides = [1, 1, 1]} : vector<18x18x32xf32> to vector<16x16x32xf32>
    %104 = vector.extract_strided_slice %97 {offsets = [2, 0, 0], sizes = [16, 16, 32], strides = [1, 1, 1]} : vector<18x18x32xf32> to vector<16x16x32xf32>
    %105 = vector.extract_strided_slice %97 {offsets = [2, 1, 0], sizes = [16, 16, 32], strides = [1, 1, 1]} : vector<18x18x32xf32> to vector<16x16x32xf32>
    %106 = vector.extract_strided_slice %97 {offsets = [2, 2, 0], sizes = [16, 16, 32], strides = [1, 1, 1]} : vector<18x18x32xf32> to vector<16x16x32xf32>
    %107 = tpu.concatenate %98, %99, %100, %101, %102, %103, %104, %105, %106 in 2 : vector<16x16x32xf32>, vector<16x16x32xf32>, vector<16x16x32xf32>, vector<16x16x32xf32>, vector<16x16x32xf32>, vector<16x16x32xf32>, vector<16x16x32xf32>, vector<16x16x32xf32>, vector<16x16x32xf32> -> vector<16x16x288xf32>
    %108 = vector.shape_cast %107 : vector<16x16x288xf32> to vector<256x288xf32>
    %c0_39 = arith.constant 0 : index
    %c0_40 = arith.constant 0 : index
    %109 = vector.load %arg6[%c0_39, %c0_40] : memref<288x32xf32, #tpu.memory_space<vmem>>, vector<288x32xf32>
    %cst_41 = arith.constant dense<0.000000e+00> : vector<256x32xf32>
    %110 = tpu.matmul %108, %109, %cst_41 {dimension_numbers = #tpu.dot_dimension_numbers<[1], [0], [0], [1], [0, 0, 1, 1], [], []>} : vector<256x288xf32>, vector<288x32xf32>, vector<256x32xf32> -> vector<256x32xf32>
    %c0_42 = arith.constant 0 : index
    %c0_43 = arith.constant 0 : index
    %111 = vector.load %arg7[%c0_42, %c0_43] : memref<1x32xf32, #tpu.memory_space<vmem>>, vector<1x32xf32>
    %112 = vector.broadcast %111 : vector<1x32xf32> to vector<256x32xf32>
    %113 = arith.addf %110, %112 : vector<256x32xf32>
    %114 = tpu.transpose %113, [1, 0] : vector<256x32xf32> -> vector<32x256xf32>
    %c0_44 = arith.constant 0 : index
    %c0_45 = arith.constant 0 : index
    %c0_46 = arith.constant 0 : index
    %115 = vector.load %arg8[%c0_44, %c0_45, %c0_46] : memref<1x32x256xf32, #tpu.memory_space<vmem>>, vector<1x32x256xf32>
    %116 = vector.shape_cast %115 : vector<1x32x256xf32> to vector<32x256xf32>
    %117 = vector.shape_cast %114 : vector<32x256xf32> to vector<1x32x256xf32>
    tpu.vector_store %arg8[%c0_44, %c0_45, %c0_46], %117 {strides = array<i32>} : memref<1x32x256xf32, #tpu.memory_space<vmem>>, vector<1x32x256xf32>,
    return
  }
  func.func @transform_0(%arg0: i32) -> (i32, i32, i32, i32) {
    %c0_i32 = arith.constant 0 : i32
    %c0_i32_0 = arith.constant 0 : i32
    %c0_i32_1 = arith.constant 0 : i32
    %c0_i32_2 = arith.constant 0 : i32
    return %arg0, %c0_i32, %c0_i32_0, %c0_i32_1 : i32, i32, i32, i32
  }
  func.func @transform_1(%arg0: i32) -> (i32, i32, i32) {
    %c0_i32 = arith.constant 0 : i32
    %c0_i32_0 = arith.constant 0 : i32
    %c0_i32_1 = arith.constant 0 : i32
    %c0_i32_2 = arith.constant 0 : i32
    return %c0_i32, %c0_i32_0, %c0_i32_1 : i32, i32, i32
  }
  func.func @transform_2(%arg0: i32) -> (i32, i32) {
    %c0_i32 = arith.constant 0 : i32
    %c0_i32_0 = arith.constant 0 : i32
    %c0_i32_1 = arith.constant 0 : i32
    return %c0_i32, %c0_i32_0 : i32, i32
  }
  func.func @transform_3(%arg0: i32) -> (i32, i32) {
    %c0_i32 = arith.constant 0 : i32
    %c0_i32_0 = arith.constant 0 : i32
    %c0_i32_1 = arith.constant 0 : i32
    return %c0_i32, %c0_i32_0 : i32, i32
  }
  func.func @transform_4(%arg0: i32) -> (i32, i32) {
    %c0_i32 = arith.constant 0 : i32
    %c0_i32_0 = arith.constant 0 : i32
    %c0_i32_1 = arith.constant 0 : i32
    return %c0_i32, %c0_i32_0 : i32, i32
  }
  func.func @transform_5(%arg0: i32) -> (i32, i32) {
    %c0_i32 = arith.constant 0 : i32
    %c0_i32_0 = arith.constant 0 : i32
    %c0_i32_1 = arith.constant 0 : i32
    return %c0_i32, %c0_i32_0 : i32, i32
  }
  func.func @transform_6(%arg0: i32) -> (i32, i32) {
    %c0_i32 = arith.constant 0 : i32
    %c0_i32_0 = arith.constant 0 : i32
    %c0_i32_1 = arith.constant 0 : i32
    return %c0_i32, %c0_i32_0 : i32, i32
  }
  func.func @transform_7(%arg0: i32) -> (i32, i32, i32) {
    %c0_i32 = arith.constant 0 : i32
    %c0_i32_0 = arith.constant 0 : i32
    %c0_i32_1 = arith.constant 0 : i32
    return %arg0, %c0_i32, %c0_i32_0 : i32, i32, i32
  }
}

</mosaic_0001>

<llo_original>
// kernel: tpu_custom_call.1
$region0: #{tpu_custom_call.1}
  #allocation0 [shape = 'u32[]', space=smem, size = 0x4, offset = 0x4, fixed_abs, tag = 'smem constant byte address 0x4 - core index']
  #allocation1 [shape = 'u32[144,128]{1,0:T(1,128)}', space=vmem, size = 0x12000, scoped, tag = 'internal scratch']
  %s0 = inlined_call_operand.vmem [shape: f32[4,16,16,32], index: 0, kind: input, shape index: {}]
  %s1 = inlined_call_operand.vmem [shape: f32[2,288,32], index: 1, kind: input, shape index: {}]
  %s2 = inlined_call_operand.vmem [shape: f32[2,32], index: 2, kind: input, shape index: {}]
  %s3 = inlined_call_operand.vmem [shape: f32[2,32], index: 3, kind: input, shape index: {}]
  %s4 = inlined_call_operand.vmem [shape: f32[2,32], index: 4, kind: input, shape index: {}]
  %s5 = inlined_call_operand.vmem [shape: f32[288,32], index: 5, kind: input, shape index: {}]
  %s6 = inlined_call_operand.vmem [shape: f32[1,32], index: 6, kind: input, shape index: {}]
  %s7 = inlined_call_operand.hbm [shape: f32[4,32,256], index: 7, kind: output, shape index: {}]
  %s8 = sld [smem:[#allocation0]]
  $region61: #{tpu_custom_call.1} parent=0
    _
  %s10 = ssub.s32 1, %s8
  %s11 = scalar_select 0, %s10, %s8
  $region1: #{tpu_custom_call.1} parent=0
    #allocation2 [shape = 'u8[65536]{0}', space=vmem, size = 0x10000, scoped, tag = 'output window, operand 0']
    #allocation3 [shape = 's32[2]{0}', space=sflag, size = 0x8, scoped, tag = 'scoped memory for tpu_custom_call.1']
    %12 = vsyncpa [#allocation3], 0
    %s13 = scalar_lea.sflag [#allocation3], 1
    %14 = vsyncpa %s13, 0
    loop: start=0, step=1, limit=6
    $region2: #{tpu_custom_call.1} parent=1 // loop_pre_header
      _
    $region3: #{tpu_custom_call.1} parent=1 // loop_header
      %s16 = sphi 0, %s20
      %p17 = scmp.ge.s32.totalorder %s16, 6
      %s26 = sphi 0, %s28
      %s29 = sphi 0, %s26
      %s30 = sphi 0, %s29
      %s46 = sphi 0, %s30
      %s50 = sphi 0, %s50
      %s52 = sphi 0, %s50
      %s53 = sphi 0, %s52
      %s67 = sphi 0, %s53
      %s71 = sphi 0, %s71
      %s73 = sphi 0, %s71
      %s74 = sphi 0, %s73
      %s88 = sphi 0, %s74
      %s92 = sphi 0, %s92
      %s94 = sphi 0, %s92
      %s95 = sphi 0, %s94
      %s109 = sphi 0, %s95
      %s113 = sphi 0, %s113
      %s115 = sphi 0, %s113
      %s116 = sphi 0, %s115
      %s130 = sphi 0, %s116
      %s134 = sphi 0, %s134
      %s136 = sphi 0, %s134
      %s137 = sphi 0, %s136
      %s151 = sphi 0, %s137
      %s155 = sphi 0, %s155
      %s157 = sphi 0, %s155
      %s158 = sphi 0, %s157
      %s172 = sphi 0, %s158
      %s178 = sphi 0, %s180
      %s181 = sphi 0, %s178
      %s182 = sphi 0, %s181
      %s198 = sphi 0, %s182
    $region4: #{tpu_custom_call.1} parent=1 // loop_header_branch
      %19 = sbr.rel (%p17) target = $region8
    $region5: #{tpu_custom_call.1} parent=1 // loop_body
      %s21 = ssub.s32 %s16, 1
      %s22 = ssub.s32 %s16, 2
      %s23 = sadd.s32 %s16, 1
      %s24 = ssub.s32 %s16, %s23
      %p25 = scmp.eq.s32.totalorder %s24, 0
      %s27 = sadd.s32 %s26, 1
      %s28 = scalar_select %p25, %s26, %s27
      %p31 = pneg %p25
      %p32 = scmp.eq.s32.totalorder %s16, 3
      %p33 = por %p31, %p32
      %p34 = scmp.ne.s32.totalorder %s26, %s29
      %p35 = scmp.eq.s32.totalorder %s16, 0
      %p36 = por %p34, %p35
      %p37 = scmp.ne.s32.totalorder %s26, %s29
      %p38 = scmp.eq.s32.totalorder %s21, 3
      %p39 = por %p37, %p38
      %p40 = scmp.ne.s32.totalorder %s29, %s30
      %p41 = scmp.eq.s32.totalorder %s21, 0
      %p42 = por %p40, %p41
      %p43 = scmp.ne.s32.totalorder %s29, %s30
      %p44 = scmp.eq.s32.totalorder %s22, 3
      %p45 = por %p43, %p44
      %p47 = scmp.ne.s32.totalorder %s30, %s46
      %p48 = scmp.eq.s32.totalorder %s22, 0
      %p49 = por %p47, %p48
      %s51 = sadd.s32 %s50, 1
      %p54 = scmp.eq.s32.totalorder %s16, 3
      %p55 = scmp.ne.s32.totalorder %s50, %s52
      %p56 = scmp.eq.s32.totalorder %s16, 0
      %p57 = por %p55, %p56
      %p58 = scmp.ne.s32.totalorder %s50, %s52
      %p59 = scmp.eq.s32.totalorder %s21, 3
      %p60 = por %p58, %p59
      %p61 = scmp.ne.s32.totalorder %s52, %s53
      %p62 = scmp.eq.s32.totalorder %s21, 0
      %p63 = por %p61, %p62
      %p64 = scmp.ne.s32.totalorder %s52, %s53
      %p65 = scmp.eq.s32.totalorder %s22, 3
      %p66 = por %p64, %p65
      %p68 = scmp.ne.s32.totalorder %s53, %s67
      %p69 = scmp.eq.s32.totalorder %s22, 0
      %p70 = por %p68, %p69
      %s72 = sadd.s32 %s71, 1
      %p75 = scmp.eq.s32.totalorder %s16, 3
      %p76 = scmp.ne.s32.totalorder %s71, %s73
      %p77 = scmp.eq.s32.totalorder %s16, 0
      %p78 = por %p76, %p77
      %p79 = scmp.ne.s32.totalorder %s71, %s73
      %p80 = scmp.eq.s32.totalorder %s21, 3
      %p81 = por %p79, %p80
      %p82 = scmp.ne.s32.totalorder %s73, %s74
      %p83 = scmp.eq.s32.totalorder %s21, 0
      %p84 = por %p82, %p83
      %p85 = scmp.ne.s32.totalorder %s73, %s74
      %p86 = scmp.eq.s32.totalorder %s22, 3
      %p87 = por %p85, %p86
      %p89 = scmp.ne.s32.totalorder %s74, %s88
      %p90 = scmp.eq.s32.totalorder %s22, 0
      %p91 = por %p89, %p90
      %s93 = sadd.s32 %s92, 1
      %p96 = scmp.eq.s32.totalorder %s16, 3
      %p97 = scmp.ne.s32.totalorder %s92, %s94
      %p98 = scmp.eq.s32.totalorder %s16, 0
      %p99 = por %p97, %p98
      %p100 = scmp.ne.s32.totalorder %s92, %s94
      %p101 = scmp.eq.s32.totalorder %s21, 3
      %p102 = por %p100, %p101
      %p103 = scmp.ne.s32.totalorder %s94, %s95
      %p104 = scmp.eq.s32.totalorder %s21, 0
      %p105 = por %p103, %p104
      %p106 = scmp.ne.s32.totalorder %s94, %s95
      %p107 = scmp.eq.s32.totalorder %s22, 3
      %p108 = por %p106, %p107
      %p110 = scmp.ne.s32.totalorder %s95, %s109
      %p111 = scmp.eq.s32.totalorder %s22, 0
      %p112 = por %p110, %p111
      %s114 = sadd.s32 %s113, 1
      %p117 = scmp.eq.s32.totalorder %s16, 3
      %p118 = scmp.ne.s32.totalorder %s113, %s115
      %p119 = scmp.eq.s32.totalorder %s16, 0
      %p120 = por %p118, %p119
      %p121 = scmp.ne.s32.totalorder %s113, %s115
      %p122 = scmp.eq.s32.totalorder %s21, 3
      %p123 = por %p121, %p122
      %p124 = scmp.ne.s32.totalorder %s115, %s116
      %p125 = scmp.eq.s32.totalorder %s21, 0
      %p126 = por %p124, %p125
      %p127 = scmp.ne.s32.totalorder %s115, %s116
      %p128 = scmp.eq.s32.totalorder %s22, 3
      %p129 = por %p127, %p128
      %p131 = scmp.ne.s32.totalorder %s116, %s130
      %p132 = scmp.eq.s32.totalorder %s22, 0
      %p133 = por %p131, %p132
      %s135 = sadd.s32 %s134, 1
      %p138 = scmp.eq.s32.totalorder %s16, 3
      %p139 = scmp.ne.s32.totalorder %s134, %s136
      %p140 = scmp.eq.s32.totalorder %s16, 0
      %p141 = por %p139, %p140
      %p142 = scmp.ne.s32.totalorder %s134, %s136
      %p143 = scmp.eq.s32.totalorder %s21, 3
      %p144 = por %p142, %p143
      %p145 = scmp.ne.s32.totalorder %s136, %s137
      %p146 = scmp.eq.s32.totalorder %s21, 0
      %p147 = por %p145, %p146
      %p148 = scmp.ne.s32.totalorder %s136, %s137
      %p149 = scmp.eq.s32.totalorder %s22, 3
      %p150 = por %p148, %p149
      %p152 = scmp.ne.s32.totalorder %s137, %s151
      %p153 = scmp.eq.s32.totalorder %s22, 0
      %p154 = por %p152, %p153
      %s156 = sadd.s32 %s155, 1
      %p159 = scmp.eq.s32.totalorder %s16, 3
      %p160 = scmp.ne.s32.totalorder %s155, %s157
      %p161 = scmp.eq.s32.totalorder %s16, 0
      %p162 = por %p160, %p161
      %p163 = scmp.ne.s32.totalorder %s155, %s157
      %p164 = scmp.eq.s32.totalorder %s21, 3
      %p165 = por %p163, %p164
      %p166 = scmp.ne.s32.totalorder %s157, %s158
      %p167 = scmp.eq.s32.totalorder %s21, 0
      %p168 = por %p166, %p167
      %p169 = scmp.ne.s32.totalorder %s157, %s158
      %p170 = scmp.eq.s32.totalorder %s22, 3
      %p171 = por %p169, %p170
      %p173 = scmp.ne.s32.totalorder %s158, %s172
      %p174 = scmp.eq.s32.totalorder %s22, 0
      %p175 = por %p173, %p174
      %s176 = ssub.s32 %s16, %s23
      %p177 = scmp.eq.s32.totalorder %s176, 0
      %s179 = sadd.s32 %s178, 1
      %s180 = scalar_select %p177, %s178, %s179
      %p183 = pneg %p177
      %p184 = scmp.eq.s32.totalorder %s16, 3
      %p185 = por %p183, %p184
      %p186 = scmp.ne.s32.totalorder %s178, %s181
      %p187 = scmp.eq.s32.totalorder %s16, 0
      %p188 = por %p186, %p187
      %p189 = scmp.ne.s32.totalorder %s178, %s181
      %p190 = scmp.eq.s32.totalorder %s21, 3
      %p191 = por %p189, %p190
      %p192 = scmp.ne.s32.totalorder %s181, %s182
      %p193 = scmp.eq.s32.totalorder %s21, 0
      %p194 = por %p192, %p193
      %p195 = scmp.ne.s32.totalorder %s181, %s182
      %p196 = scmp.eq.s32.totalorder %s22, 3
      %p197 = por %p195, %p196
      %p199 = scmp.ne.s32.totalorder %s182, %s198
      %p200 = scmp.eq.s32.totalorder %s22, 0
      %p201 = por %p199, %p200
      %p202 = scmp.le.s32.totalorder 1, %s16
      %p203 = scmp.lt.s32.totalorder %s16, 5
      %p204 = pnand %p202, %p203
      %p205 = pneg %p204
      // Predicated region
      $region9: #{tpu_custom_call.1} parent=5 // pred_check
        _
      $region10: #{tpu_custom_call.1} parent=5 // pred_check_branch
        %207 = sbr.rel (%p204) target = $region12
      $region11: #{tpu_custom_call.1} parent=5 // pred_region
        %s208 = ssub.s32 %s16, 1
        // Predicated region
        $region13: #{tpu_custom_call.1} parent=11 // pred_check
          %p209 = pneg %p63
        $region14: #{tpu_custom_call.1} parent=11 // pred_check_branch
          %211 = sbr.rel (%p209) target = $region16
        $region15: #{tpu_custom_call.1} parent=11 // pred_region
          _
        $region16: #{tpu_custom_call.1} parent=11 // pred_fallthru
          _
        // Predicated region
        $region17: #{tpu_custom_call.1} parent=11 // pred_check
          %p212 = pneg %p84
        $region18: #{tpu_custom_call.1} parent=11 // pred_check_branch
          %214 = sbr.rel (%p212) target = $region20
        $region19: #{tpu_custom_call.1} parent=11 // pred_region
          _
        $region20: #{tpu_custom_call.1} parent=11 // pred_fallthru
          _
        // Predicated region
        $region21: #{tpu_custom_call.1} parent=11 // pred_check
          %p215 = pneg %p105
        $region22: #{tpu_custom_call.1} parent=11 // pred_check_branch
          %217 = sbr.rel (%p215) target = $region24
        $region23: #{tpu_custom_call.1} parent=11 // pred_region
          _
        $region24: #{tpu_custom_call.1} parent=11 // pred_fallthru
          _
        // Predicated region
        $region25: #{tpu_custom_call.1} parent=11 // pred_check
          %p218 = pneg %p126
        $region26: #{tpu_custom_call.1} parent=11 // pred_check_branch
          %220 = sbr.rel (%p218) target = $region28
        $region27: #{tpu_custom_call.1} parent=11 // pred_region
          _
        $region28: #{tpu_custom_call.1} parent=11 // pred_fallthru
          _
        // Predicated region
        $region29: #{tpu_custom_call.1} parent=11 // pred_check
          %p221 = pneg %p147
        $region30: #{tpu_custom_call.1} parent=11 // pred_check_branch
          %223 = sbr.rel (%p221) target = $region32
        $region31: #{tpu_custom_call.1} parent=11 // pred_region
          _
        $region32: #{tpu_custom_call.1} parent=11 // pred_fallthru
          _
        // Predicated region
        $region33: #{tpu_custom_call.1} parent=11 // pred_check
          %p224 = pneg %p168
        $region34: #{tpu_custom_call.1} parent=11 // pred_check_branch
          %226 = sbr.rel (%p224) target = $region36
        $region35: #{tpu_custom_call.1} parent=11 // pred_region
          _
        $region36: #{tpu_custom_call.1} parent=11 // pred_fallthru
          _
      $region12: #{tpu_custom_call.1} parent=5 // pred_fallthru
        _
      %p227 = scmp.lt.s32.totalorder %s16, 4
      // Predicated region
      $region37: #{tpu_custom_call.1} parent=5 // pred_check
        %p228 = pneg %p227
      $region38: #{tpu_custom_call.1} parent=5 // pred_check_branch
        %230 = sbr.rel (%p228) target = $region40
      $region39: #{tpu_custom_call.1} parent=5 // pred_region
        // Predicated region
        $region41: #{tpu_custom_call.1} parent=39 // pred_check
          %p231 = pneg %p36
        $region42: #{tpu_custom_call.1} parent=39 // pred_check_branch
          %233 = sbr.rel (%p231) target = $region44
        $region43: #{tpu_custom_call.1} parent=39 // pred_region
          %p234 = scmp.lt.s32.totalorder %s16, 3
          %s235 = scalar_select %p234, %s16, 3
          %s236 = smul.addr %s235, 32
          %s237 = smul.addr %s236, 8
          %s238 = scalar_lea.vmem %s0, %s237
        $region44: #{tpu_custom_call.1} parent=39 // pred_fallthru
          _
      $region40: #{tpu_custom_call.1} parent=5 // pred_fallthru
        _
      %p239 = scmp.le.s32.totalorder 1, %s16
      %p240 = scmp.lt.s32.totalorder %s16, 5
      %p241 = pnand %p239, %p240
      %p242 = pneg %p241
      // Predicated region
      $region45: #{tpu_custom_call.1} parent=5 // pred_check
        _
      $region46: #{tpu_custom_call.1} parent=5 // pred_check_branch
        %244 = sbr.rel (%p241) target = $region48
      $region47: #{tpu_custom_call.1} parent=5 // pred_region
        %s245 = ssub.s32 %s16, 1
        %p246 = scmp.lt.s32.totalorder %s21, 3
        %s247 = scalar_select %p246, %s21, 3
        %s248 = smul.addr %s247, 32
        %s249 = smul.addr %s248, 8
        %s250 = scalar_lea.vmem %s0, %s249
        %p251 = pneg %p42
        %p252 = pneg %p39
        %p253 = pneg %p63
        %p254 = pneg %p60
        %p255 = pneg %p84
        %p256 = pneg %p81
        %p257 = pneg %p105
        %p258 = pneg %p102
        %p259 = pneg %p126
        %p260 = pneg %p123
        %p261 = pneg %p147
        %p262 = pneg %p144
        %p263 = pneg %p168
        %p264 = pneg %p165
        %p265 = pneg %p194
        %p266 = pneg %p191
        %s267 = sand.u32 %s181, 1
        %s268 = scalar_lea.sflag [#allocation3], %s267
        %s269 = sand.u32 %s181, 1
        %s270 = smul.addr %s269, 64
        %s271 = scalar_lea.vmem [#allocation2], %s270
        %p272 = scmp.lt.s32.totalorder %s21, 3
        %s273 = scalar_select %p272, %s21, 3
        %s274 = smul.addr %s273, 32
        %s275 = smul.addr %s274, 8
        %s276 = scalar_lea.vmem %s0, %s275
        %v277 = vld [vmem:[%s276] sm:$0xff]
        %v278 = vld [vmem:[%s276 + $0x8] sm:$0xff]
        %v279 = vld [vmem:[%s276 + $0x10] sm:$0xff]
        %v280 = vld [vmem:[%s276 + $0x18] sm:$0xff]
        %v281 = vld [vmem:[%s276 + $0x20] sm:$0xff]
        %v282 = vld [vmem:[%s276 + $0x28] sm:$0xff]
        %v283 = vld [vmem:[%s276 + $0x30] sm:$0xff]
        %v284 = vld [vmem:[%s276 + $0x38] sm:$0xff]
        %v285 = vld [vmem:[%s276 + $0x40] sm:$0xff]
        %v286 = vld [vmem:[%s276 + $0x48] sm:$0xff]
        %v287 = vld [vmem:[%s276 + $0x50] sm:$0xff]
        %v288 = vld [vmem:[%s276 + $0x58] sm:$0xff]
        %v289 = vld [vmem:[%s276 + $0x60] sm:$0xff]
        %v290 = vld [vmem:[%s276 + $0x68] sm:$0xff]
        %v291 = vld [vmem:[%s276 + $0x70] sm:$0xff]
        %v292 = vld [vmem:[%s276 + $0x78] sm:$0xff]
        %v293 = vld [vmem:[%s276 + $0x80] sm:$0xff]
        %v294 = vld [vmem:[%s276 + $0x88] sm:$0xff]
        %v295 = vld [vmem:[%s276 + $0x90] sm:$0xff]
        %v296 = vld [vmem:[%s276 + $0x98] sm:$0xff]
        %v297 = vld [vmem:[%s276 + $0xa0] sm:$0xff]
        %v298 = vld [vmem:[%s276 + $0xa8] sm:$0xff]
        %v299 = vld [vmem:[%s276 + $0xb0] sm:$0xff]
        %v300 = vld [vmem:[%s276 + $0xb8] sm:$0xff]
        %v301 = vld [vmem:[%s276 + $0xc0] sm:$0xff]
        %v302 = vld [vmem:[%s276 + $0xc8] sm:$0xff]
        %v303 = vld [vmem:[%s276 + $0xd0] sm:$0xff]
        %v304 = vld [vmem:[%s276 + $0xd8] sm:$0xff]
        %v305 = vld [vmem:[%s276 + $0xe0] sm:$0xff]
        %v306 = vld [vmem:[%s276 + $0xe8] sm:$0xff]
        %v307 = vld [vmem:[%s276 + $0xf0] sm:$0xff]
        %v308 = vld [vmem:[%s276 + $0xf8] sm:$0xff]
        %vm341 = vcmask 1040384
        %v342 = vrot.slane %v277, 7
        %v343 = vrot.slane %v278, 7
        %v344 = vsel %vm341, %v342, %v343
        %v345 = vrot.slane %v279, 7
        %v346 = vrot.slane %v280, 7
        %v347 = vsel %vm341, %v345, %v346
        %v348 = vrot.slane %v281, 7
        %v349 = vrot.slane %v282, 7
        %v350 = vsel %vm341, %v348, %v349
        %v351 = vrot.slane %v283, 7
        %v352 = vrot.slane %v284, 7
        %v353 = vsel %vm341, %v351, %v352
        %v354 = vrot.slane %v285, 7
        %v355 = vrot.slane %v286, 7
        %v356 = vsel %vm341, %v354, %v355
        %v357 = vrot.slane %v287, 7
        %v358 = vrot.slane %v288, 7
        %v359 = vsel %vm341, %v357, %v358
        %v360 = vrot.slane %v289, 7
        %v361 = vrot.slane %v290, 7
        %v362 = vsel %vm341, %v360, %v361
        %v363 = vrot.slane %v291, 7
        %v364 = vrot.slane %v292, 7
        %v365 = vsel %vm341, %v363, %v364
        %v366 = vrot.slane %v293, 7
        %v367 = vrot.slane %v294, 7
        %v368 = vsel %vm341, %v366, %v367
        %v369 = vrot.slane %v295, 7
        %v370 = vrot.slane %v296, 7
        %v371 = vsel %vm341, %v369, %v370
        %v372 = vrot.slane %v297, 7
        %v373 = vrot.slane %v298, 7
        %v374 = vsel %vm341, %v372, %v373
        %v375 = vrot.slane %v299, 7
        %v376 = vrot.slane %v300, 7
        %v377 = vsel %vm341, %v375, %v376
        %v378 = vrot.slane %v301, 7
        %v379 = vrot.slane %v302, 7
        %v380 = vsel %vm341, %v378, %v379
        %v381 = vrot.slane %v303, 7
        %v382 = vrot.slane %v304, 7
        %v383 = vsel %vm341, %v381, %v382
        %v384 = vrot.slane %v305, 7
        %v385 = vrot.slane %v306, 7
        %v386 = vsel %vm341, %v384, %v385
        %v387 = vrot.slane %v307, 7
        %v388 = vrot.slane %v308, 7
        %v389 = vsel %vm341, %v387, %v388
        %v437 = vsel %vm341, 0.0, %v342
        %v438 = vsel %vm341, 0.0, %v345
        %v439 = vsel %vm341, 0.0, %v348
        %v440 = vsel %vm341, 0.0, %v351
        %v441 = vsel %vm341, 0.0, %v354
        %v442 = vsel %vm341, 0.0, %v357
        %v443 = vsel %vm341, 0.0, %v360
        %v444 = vsel %vm341, 0.0, %v363
        %v445 = vsel %vm341, 0.0, %v366
        %v446 = vsel %vm341, 0.0, %v369
        %v447 = vsel %vm341, 0.0, %v372
        %v448 = vsel %vm341, 0.0, %v375
        %v449 = vsel %vm341, 0.0, %v378
        %v450 = vsel %vm341, 0.0, %v381
        %v451 = vsel %vm341, 0.0, %v384
        %v452 = vsel %vm341, 0.0, %v387
        %v453 = vsel %vm341, %v343, 0.0
        %v454 = vsel %vm341, %v346, 0.0
        %v455 = vsel %vm341, %v349, 0.0
        %v456 = vsel %vm341, %v352, 0.0
        %v457 = vsel %vm341, %v355, 0.0
        %v458 = vsel %vm341, %v358, 0.0
        %v459 = vsel %vm341, %v361, 0.0
        %v460 = vsel %vm341, %v364, 0.0
        %v461 = vsel %vm341, %v367, 0.0
        %v462 = vsel %vm341, %v370, 0.0
        %v463 = vsel %vm341, %v373, 0.0
        %v464 = vsel %vm341, %v376, 0.0
        %v465 = vsel %vm341, %v379, 0.0
        %v466 = vsel %vm341, %v382, 0.0
        %v467 = vsel %vm341, %v385, 0.0
        %v468 = vsel %vm341, %v388, 0.0
        %vm500 = vcmask 1046528
        %v501 = vrot.slane 0.0, 1
        %v502 = vsel %vm500, %v501, %v501
        %v503 = vrot.slane %v437, 1
        %v504 = vrot.slane %v344, 1
        %v505 = vsel %vm500, %v503, %v504
        %v506 = vrot.slane %v453, 1
        %v507 = vsel %vm500, %v504, %v506
        %v508 = vrot.slane %v438, 1
        %v509 = vrot.slane %v347, 1
        %v510 = vsel %vm500, %v508, %v509
        %v511 = vrot.slane %v454, 1
        %v512 = vsel %vm500, %v509, %v511
        %v513 = vrot.slane %v439, 1
        %v514 = vrot.slane %v350, 1
        %v515 = vsel %vm500, %v513, %v514
        %v516 = vrot.slane %v455, 1
        %v517 = vsel %vm500, %v514, %v516
        %v518 = vrot.slane %v440, 1
        %v519 = vrot.slane %v353, 1
        %v520 = vsel %vm500, %v518, %v519
        %v521 = vrot.slane %v456, 1
        %v522 = vsel %vm500, %v519, %v521
        %v523 = vrot.slane %v441, 1
        %v524 = vrot.slane %v356, 1
        %v525 = vsel %vm500, %v523, %v524
        %v526 = vrot.slane %v457, 1
        %v527 = vsel %vm500, %v524, %v526
        %v528 = vrot.slane %v442, 1
        %v529 = vrot.slane %v359, 1
        %v530 = vsel %vm500, %v528, %v529
        %v531 = vrot.slane %v458, 1
        %v532 = vsel %vm500, %v529, %v531
        %v533 = vrot.slane %v443, 1
        %v534 = vrot.slane %v362, 1
        %v535 = vsel %vm500, %v533, %v534
        %v536 = vrot.slane %v459, 1
        %v537 = vsel %vm500, %v534, %v536
        %v538 = vrot.slane %v444, 1
        %v539 = vrot.slane %v365, 1
        %v540 = vsel %vm500, %v538, %v539
        %v541 = vrot.slane %v460, 1
        %v542 = vsel %vm500, %v539, %v541
        %v543 = vrot.slane %v445, 1
        %v544 = vrot.slane %v368, 1
        %v545 = vsel %vm500, %v543, %v544
        %v546 = vrot.slane %v461, 1
        %v547 = vsel %vm500, %v544, %v546
        %v548 = vrot.slane %v446, 1
        %v549 = vrot.slane %v371, 1
        %v550 = vsel %vm500, %v548, %v549
        %v551 = vrot.slane %v462, 1
        %v552 = vsel %vm500, %v549, %v551
        %v553 = vrot.slane %v447, 1
        %v554 = vrot.slane %v374, 1
        %v555 = vsel %vm500, %v553, %v554
        %v556 = vrot.slane %v463, 1
        %v557 = vsel %vm500, %v554, %v556
        %v558 = vrot.slane %v448, 1
        %v559 = vrot.slane %v377, 1
        %v560 = vsel %vm500, %v558, %v559
        %v561 = vrot.slane %v464, 1
        %v562 = vsel %vm500, %v559, %v561
        %v563 = vrot.slane %v449, 1
        %v564 = vrot.slane %v380, 1
        %v565 = vsel %vm500, %v563, %v564
        %v566 = vrot.slane %v465, 1
        %v567 = vsel %vm500, %v564, %v566
        %v568 = vrot.slane %v450, 1
        %v569 = vrot.slane %v383, 1
        %v570 = vsel %vm500, %v568, %v569
        %v571 = vrot.slane %v466, 1
        %v572 = vsel %vm500, %v569, %v571
        %v573 = vrot.slane %v451, 1
        %v574 = vrot.slane %v386, 1
        %v575 = vsel %vm500, %v573, %v574
        %v576 = vrot.slane %v467, 1
        %v577 = vsel %vm500, %v574, %v576
        %578 = vrot.lane.b32.xlu0 %v502, 32
        %v579 = vpop.permute.xlu0 %578
        %580 = vrot.lane.b32.xlu0 %v505, 32
        %v581 = vpop.permute.xlu0 %580
        %582 = vrot.lane.b32.xlu0 %v507, 32
        %v583 = vpop.permute.xlu0 %582
        %584 = vrot.lane.b32.xlu0 %v510, 32
        %v585 = vpop.permute.xlu0 %584
        %586 = vrot.lane.b32.xlu0 %v512, 32
        %v587 = vpop.permute.xlu0 %586
        %588 = vrot.lane.b32.xlu0 %v515, 32
        %v589 = vpop.permute.xlu0 %588
        %590 = vrot.lane.b32.xlu0 %v517, 32
        %v591 = vpop.permute.xlu0 %590
        %592 = vrot.lane.b32.xlu0 %v520, 32
        %v593 = vpop.permute.xlu0 %592
        %594 = vrot.lane.b32.xlu0 %v522, 32
        %v595 = vpop.permute.xlu0 %594
        %596 = vrot.lane.b32.xlu0 %v525, 32
        %v597 = vpop.permute.xlu0 %596
        %598 = vrot.lane.b32.xlu0 %v527, 32
        %v599 = vpop.permute.xlu0 %598
        %600 = vrot.lane.b32.xlu0 %v530, 32
        %v601 = vpop.permute.xlu0 %600
        %602 = vrot.lane.b32.xlu0 %v532, 32
        %v603 = vpop.permute.xlu0 %602
        %604 = vrot.lane.b32.xlu0 %v535, 32
        %v605 = vpop.permute.xlu0 %604
        %606 = vrot.lane.b32.xlu0 %v537, 32
        %v607 = vpop.permute.xlu0 %606
        %608 = vrot.lane.b32.xlu0 %v540, 32
        %v609 = vpop.permute.xlu0 %608
        %610 = vrot.lane.b32.xlu0 %v542, 32
        %v611 = vpop.permute.xlu0 %610
        %612 = vrot.lane.b32.xlu0 %v545, 32
        %v613 = vpop.permute.xlu0 %612
        %614 = vrot.lane.b32.xlu0 %v547, 32
        %v615 = vpop.permute.xlu0 %614
        %616 = vrot.lane.b32.xlu0 %v550, 32
        %v617 = vpop.permute.xlu0 %616
        %618 = vrot.lane.b32.xlu0 %v552, 32
        %v619 = vpop.permute.xlu0 %618
        %620 = vrot.lane.b32.xlu0 %v555, 32
        %v621 = vpop.permute.xlu0 %620
        %622 = vrot.lane.b32.xlu0 %v557, 32
        %v623 = vpop.permute.xlu0 %622
        %624 = vrot.lane.b32.xlu0 %v560, 32
        %v625 = vpop.permute.xlu0 %624
        %626 = vrot.lane.b32.xlu0 %v562, 32
        %v627 = vpop.permute.xlu0 %626
        %628 = vrot.lane.b32.xlu0 %v565, 32
        %v629 = vpop.permute.xlu0 %628
        %630 = vrot.lane.b32.xlu0 %v567, 32
        %v631 = vpop.permute.xlu0 %630
        %632 = vrot.lane.b32.xlu0 %v570, 32
        %v633 = vpop.permute.xlu0 %632
        %634 = vrot.lane.b32.xlu0 %v572, 32
        %v635 = vpop.permute.xlu0 %634
        %636 = vrot.lane.b32.xlu0 %v575, 32
        %v637 = vpop.permute.xlu0 %636
        %638 = vrot.lane.b32.xlu0 %v577, 32
        %v639 = vpop.permute.xlu0 %638
        %vm671 = vcmask 1045504
        %v672 = vrot.slane 0.0, 2
        %v673 = vsel %vm671, %v672, %v672
        %v674 = vrot.slane %v437, 2
        %v675 = vrot.slane %v344, 2
        %v676 = vsel %vm671, %v674, %v675
        %v677 = vrot.slane %v453, 2
        %v678 = vsel %vm671, %v675, %v677
        %v679 = vrot.slane %v438, 2
        %v680 = vrot.slane %v347, 2
        %v681 = vsel %vm671, %v679, %v680
        %v682 = vrot.slane %v454, 2
        %v683 = vsel %vm671, %v680, %v682
        %v684 = vrot.slane %v439, 2
        %v685 = vrot.slane %v350, 2
        %v686 = vsel %vm671, %v684, %v685
        %v687 = vrot.slane %v455, 2
        %v688 = vsel %vm671, %v685, %v687
        %v689 = vrot.slane %v440, 2
        %v690 = vrot.slane %v353, 2
        %v691 = vsel %vm671, %v689, %v690
        %v692 = vrot.slane %v456, 2
        %v693 = vsel %vm671, %v690, %v692
        %v694 = vrot.slane %v441, 2
        %v695 = vrot.slane %v356, 2
        %v696 = vsel %vm671, %v694, %v695
        %v697 = vrot.slane %v457, 2
        %v698 = vsel %vm671, %v695, %v697
        %v699 = vrot.slane %v442, 2
        %v700 = vrot.slane %v359, 2
        %v701 = vsel %vm671, %v699, %v700
        %v702 = vrot.slane %v458, 2
        %v703 = vsel %vm671, %v700, %v702
        %v704 = vrot.slane %v443, 2
        %v705 = vrot.slane %v362, 2
        %v706 = vsel %vm671, %v704, %v705
        %v707 = vrot.slane %v459, 2
        %v708 = vsel %vm671, %v705, %v707
        %v709 = vrot.slane %v444, 2
        %v710 = vrot.slane %v365, 2
        %v711 = vsel %vm671, %v709, %v710
        %v712 = vrot.slane %v460, 2
        %v713 = vsel %vm671, %v710, %v712
        %v714 = vrot.slane %v445, 2
        %v715 = vrot.slane %v368, 2
        %v716 = vsel %vm671, %v714, %v715
        %v717 = vrot.slane %v461, 2
        %v718 = vsel %vm671, %v715, %v717
        %v719 = vrot.slane %v446, 2
        %v720 = vrot.slane %v371, 2
        %v721 = vsel %vm671, %v719, %v720
        %v722 = vrot.slane %v462, 2
        %v723 = vsel %vm671, %v720, %v722
        %v724 = vrot.slane %v447, 2
        %v725 = vrot.slane %v374, 2
        %v726 = vsel %vm671, %v724, %v725
        %v727 = vrot.slane %v463, 2
        %v728 = vsel %vm671, %v725, %v727
        %v729 = vrot.slane %v448, 2
        %v730 = vrot.slane %v377, 2
        %v731 = vsel %vm671, %v729, %v730
        %v732 = vrot.slane %v464, 2
        %v733 = vsel %vm671, %v730, %v732
        %v734 = vrot.slane %v449, 2
        %v735 = vrot.slane %v380, 2
        %v736 = vsel %vm671, %v734, %v735
        %v737 = vrot.slane %v465, 2
        %v738 = vsel %vm671, %v735, %v737
        %v739 = vrot.slane %v450, 2
        %v740 = vrot.slane %v383, 2
        %v741 = vsel %vm671, %v739, %v740
        %v742 = vrot.slane %v466, 2
        %v743 = vsel %vm671, %v740, %v742
        %v744 = vrot.slane %v451, 2
        %v745 = vrot.slane %v386, 2
        %v746 = vsel %vm671, %v744, %v745
        %v747 = vrot.slane %v467, 2
        %v748 = vsel %vm671, %v745, %v747
        %749 = vrot.lane.b32.xlu0 %v673, 64
        %v750 = vpop.permute.xlu0 %749
        %751 = vrot.lane.b32.xlu0 %v676, 64
        %v752 = vpop.permute.xlu0 %751
        %753 = vrot.lane.b32.xlu0 %v678, 64
        %v754 = vpop.permute.xlu0 %753
        %755 = vrot.lane.b32.xlu0 %v681, 64
        %v756 = vpop.permute.xlu0 %755
        %757 = vrot.lane.b32.xlu0 %v683, 64
        %v758 = vpop.permute.xlu0 %757
        %759 = vrot.lane.b32.xlu0 %v686, 64
        %v760 = vpop.permute.xlu0 %759
        %761 = vrot.lane.b32.xlu0 %v688, 64
        %v762 = vpop.permute.xlu0 %761
        %763 = vrot.lane.b32.xlu0 %v691, 64
        %v764 = vpop.permute.xlu0 %763
        %765 = vrot.lane.b32.xlu0 %v693, 64
        %v766 = vpop.permute.xlu0 %765
        %767 = vrot.lane.b32.xlu0 %v696, 64
        %v768 = vpop.permute.xlu0 %767
        %769 = vrot.lane.b32.xlu0 %v698, 64
        %v770 = vpop.permute.xlu0 %769
        %771 = vrot.lane.b32.xlu0 %v701, 64
        %v772 = vpop.permute.xlu0 %771
        %773 = vrot.lane.b32.xlu0 %v703, 64
        %v774 = vpop.permute.xlu0 %773
        %775 = vrot.lane.b32.xlu0 %v706, 64
        %v776 = vpop.permute.xlu0 %775
        %777 = vrot.lane.b32.xlu0 %v708, 64
        %v778 = vpop.permute.xlu0 %777
        %779 = vrot.lane.b32.xlu0 %v711, 64
        %v780 = vpop.permute.xlu0 %779
        %781 = vrot.lane.b32.xlu0 %v713, 64
        %v782 = vpop.permute.xlu0 %781
        %783 = vrot.lane.b32.xlu0 %v716, 64
        %v784 = vpop.permute.xlu0 %783
        %785 = vrot.lane.b32.xlu0 %v718, 64
        %v786 = vpop.permute.xlu0 %785
        %787 = vrot.lane.b32.xlu0 %v721, 64
        %v788 = vpop.permute.xlu0 %787
        %789 = vrot.lane.b32.xlu0 %v723, 64
        %v790 = vpop.permute.xlu0 %789
        %791 = vrot.lane.b32.xlu0 %v726, 64
        %v792 = vpop.permute.xlu0 %791
        %793 = vrot.lane.b32.xlu0 %v728, 64
        %v794 = vpop.permute.xlu0 %793
        %795 = vrot.lane.b32.xlu0 %v731, 64
        %v796 = vpop.permute.xlu0 %795
        %797 = vrot.lane.b32.xlu0 %v733, 64
        %v798 = vpop.permute.xlu0 %797
        %799 = vrot.lane.b32.xlu0 %v736, 64
        %v800 = vpop.permute.xlu0 %799
        %801 = vrot.lane.b32.xlu0 %v738, 64
        %v802 = vpop.permute.xlu0 %801
        %803 = vrot.lane.b32.xlu0 %v741, 64
        %v804 = vpop.permute.xlu0 %803
        %805 = vrot.lane.b32.xlu0 %v743, 64
        %v806 = vpop.permute.xlu0 %805
        %807 = vrot.lane.b32.xlu0 %v746, 64
        %v808 = vpop.permute.xlu0 %807
        %809 = vrot.lane.b32.xlu0 %v748, 64
        %v810 = vpop.permute.xlu0 %809
        %843 = vrot.lane.b32.xlu0 %v437, 96
        %v844 = vpop.permute.xlu0 %843
        %845 = vrot.lane.b32.xlu0 %v344, 96
        %v846 = vpop.permute.xlu0 %845
        %847 = vrot.lane.b32.xlu0 %v438, 96
        %v848 = vpop.permute.xlu0 %847
        %849 = vrot.lane.b32.xlu0 %v347, 96
        %v850 = vpop.permute.xlu0 %849
        %851 = vrot.lane.b32.xlu0 %v439, 96
        %v852 = vpop.permute.xlu0 %851
        %853 = vrot.lane.b32.xlu0 %v350, 96
        %v854 = vpop.permute.xlu0 %853
        %855 = vrot.lane.b32.xlu0 %v440, 96
        %v856 = vpop.permute.xlu0 %855
        %857 = vrot.lane.b32.xlu0 %v353, 96
        %v858 = vpop.permute.xlu0 %857
        %859 = vrot.lane.b32.xlu0 %v441, 96
        %v860 = vpop.permute.xlu0 %859
        %861 = vrot.lane.b32.xlu0 %v356, 96
        %v862 = vpop.permute.xlu0 %861
        %863 = vrot.lane.b32.xlu0 %v442, 96
        %v864 = vpop.permute.xlu0 %863
        %865 = vrot.lane.b32.xlu0 %v359, 96
        %v866 = vpop.permute.xlu0 %865
        %867 = vrot.lane.b32.xlu0 %v443, 96
        %v868 = vpop.permute.xlu0 %867
        %869 = vrot.lane.b32.xlu0 %v362, 96
        %v870 = vpop.permute.xlu0 %869
        %871 = vrot.lane.b32.xlu0 %v444, 96
        %v872 = vpop.permute.xlu0 %871
        %873 = vrot.lane.b32.xlu0 %v365, 96
        %v874 = vpop.permute.xlu0 %873
        %875 = vrot.lane.b32.xlu0 %v445, 96
        %v876 = vpop.permute.xlu0 %875
        %877 = vrot.lane.b32.xlu0 %v368, 96
        %v878 = vpop.permute.xlu0 %877
        %879 = vrot.lane.b32.xlu0 %v446, 96
        %v880 = vpop.permute.xlu0 %879
        %881 = vrot.lane.b32.xlu0 %v371, 96
        %v882 = vpop.permute.xlu0 %881
        %883 = vrot.lane.b32.xlu0 %v447, 96
        %v884 = vpop.permute.xlu0 %883
        %885 = vrot.lane.b32.xlu0 %v374, 96
        %v886 = vpop.permute.xlu0 %885
        %887 = vrot.lane.b32.xlu0 %v448, 96
        %v888 = vpop.permute.xlu0 %887
        %889 = vrot.lane.b32.xlu0 %v377, 96
        %v890 = vpop.permute.xlu0 %889
        %891 = vrot.lane.b32.xlu0 %v449, 96
        %v892 = vpop.permute.xlu0 %891
        %893 = vrot.lane.b32.xlu0 %v380, 96
        %v894 = vpop.permute.xlu0 %893
        %895 = vrot.lane.b32.xlu0 %v450, 96
        %v896 = vpop.permute.xlu0 %895
        %897 = vrot.lane.b32.xlu0 %v383, 96
        %v898 = vpop.permute.xlu0 %897
        %899 = vrot.lane.b32.xlu0 %v451, 96
        %v900 = vpop.permute.xlu0 %899
        %901 = vrot.lane.b32.xlu0 %v386, 96
        %v902 = vpop.permute.xlu0 %901
        %903 = vrot.lane.b32.xlu0 %v452, 96
        %v904 = vpop.permute.xlu0 %903
        %905 = vrot.lane.b32.xlu0 %v389, 96
        %v906 = vpop.permute.xlu0 %905
        %v940 = vrot.slane %v452, 1
        %v941 = vrot.slane %v389, 1
        %v942 = vsel %vm500, %v940, %v941
        %v943 = vrot.slane %v468, 1
        %v944 = vsel %vm500, %v941, %v943
        %v977 = vrot.slane %v452, 2
        %v978 = vrot.slane %v389, 2
        %v979 = vsel %vm671, %v977, %v978
        %v980 = vrot.slane %v468, 2
        %v981 = vsel %vm671, %v978, %v980
        %982 = vrot.lane.b32.xlu0 %v676, 32
        %v983 = vpop.permute.xlu0 %982
        %984 = vrot.lane.b32.xlu0 %v678, 32
        %v985 = vpop.permute.xlu0 %984
        %986 = vrot.lane.b32.xlu0 %v681, 32
        %v987 = vpop.permute.xlu0 %986
        %988 = vrot.lane.b32.xlu0 %v683, 32
        %v989 = vpop.permute.xlu0 %988
        %990 = vrot.lane.b32.xlu0 %v686, 32
        %v991 = vpop.permute.xlu0 %990
        %992 = vrot.lane.b32.xlu0 %v688, 32
        %v993 = vpop.permute.xlu0 %992
        %994 = vrot.lane.b32.xlu0 %v691, 32
        %v995 = vpop.permute.xlu0 %994
        %996 = vrot.lane.b32.xlu0 %v693, 32
        %v997 = vpop.permute.xlu0 %996
        %998 = vrot.lane.b32.xlu0 %v696, 32
        %v999 = vpop.permute.xlu0 %998
        %1000 = vrot.lane.b32.xlu0 %v698, 32
        %v1001 = vpop.permute.xlu0 %1000
        %1002 = vrot.lane.b32.xlu0 %v701, 32
        %v1003 = vpop.permute.xlu0 %1002
        %1004 = vrot.lane.b32.xlu0 %v703, 32
        %v1005 = vpop.permute.xlu0 %1004
        %1006 = vrot.lane.b32.xlu0 %v706, 32
        %v1007 = vpop.permute.xlu0 %1006
        %1008 = vrot.lane.b32.xlu0 %v708, 32
        %v1009 = vpop.permute.xlu0 %1008
        %1010 = vrot.lane.b32.xlu0 %v711, 32
        %v1011 = vpop.permute.xlu0 %1010
        %1012 = vrot.lane.b32.xlu0 %v713, 32
        %v1013 = vpop.permute.xlu0 %1012
        %1014 = vrot.lane.b32.xlu0 %v716, 32
        %v1015 = vpop.permute.xlu0 %1014
        %1016 = vrot.lane.b32.xlu0 %v718, 32
        %v1017 = vpop.permute.xlu0 %1016
        %1018 = vrot.lane.b32.xlu0 %v721, 32
        %v1019 = vpop.permute.xlu0 %1018
        %1020 = vrot.lane.b32.xlu0 %v723, 32
        %v1021 = vpop.permute.xlu0 %1020
        %1022 = vrot.lane.b32.xlu0 %v726, 32
        %v1023 = vpop.permute.xlu0 %1022
        %1024 = vrot.lane.b32.xlu0 %v728, 32
        %v1025 = vpop.permute.xlu0 %1024
        %1026 = vrot.lane.b32.xlu0 %v731, 32
        %v1027 = vpop.permute.xlu0 %1026
        %1028 = vrot.lane.b32.xlu0 %v733, 32
        %v1029 = vpop.permute.xlu0 %1028
        %1030 = vrot.lane.b32.xlu0 %v736, 32
        %v1031 = vpop.permute.xlu0 %1030
        %1032 = vrot.lane.b32.xlu0 %v738, 32
        %v1033 = vpop.permute.xlu0 %1032
        %1034 = vrot.lane.b32.xlu0 %v741, 32
        %v1035 = vpop.permute.xlu0 %1034
        %1036 = vrot.lane.b32.xlu0 %v743, 32
        %v1037 = vpop.permute.xlu0 %1036
        %1038 = vrot.lane.b32.xlu0 %v746, 32
        %v1039 = vpop.permute.xlu0 %1038
        %1040 = vrot.lane.b32.xlu0 %v748, 32
        %v1041 = vpop.permute.xlu0 %1040
        %1042 = vrot.lane.b32.xlu0 %v979, 32
        %v1043 = vpop.permute.xlu0 %1042
        %1044 = vrot.lane.b32.xlu0 %v981, 32
        %v1045 = vpop.permute.xlu0 %1044
        %1078 = vrot.lane.b32.xlu0 %v438, 64
        %v1079 = vpop.permute.xlu0 %1078
        %1080 = vrot.lane.b32.xlu0 %v347, 64
        %v1081 = vpop.permute.xlu0 %1080
        %1082 = vrot.lane.b32.xlu0 %v439, 64
        %v1083 = vpop.permute.xlu0 %1082
        %1084 = vrot.lane.b32.xlu0 %v350, 64
        %v1085 = vpop.permute.xlu0 %1084
        %1086 = vrot.lane.b32.xlu0 %v440, 64
        %v1087 = vpop.permute.xlu0 %1086
        %1088 = vrot.lane.b32.xlu0 %v353, 64
        %v1089 = vpop.permute.xlu0 %1088
        %1090 = vrot.lane.b32.xlu0 %v441, 64
        %v1091 = vpop.permute.xlu0 %1090
        %1092 = vrot.lane.b32.xlu0 %v356, 64
        %v1093 = vpop.permute.xlu0 %1092
        %1094 = vrot.lane.b32.xlu0 %v442, 64
        %v1095 = vpop.permute.xlu0 %1094
        %1096 = vrot.lane.b32.xlu0 %v359, 64
        %v1097 = vpop.permute.xlu0 %1096
        %1098 = vrot.lane.b32.xlu0 %v443, 64
        %v1099 = vpop.permute.xlu0 %1098
        %1100 = vrot.lane.b32.xlu0 %v362, 64
        %v1101 = vpop.permute.xlu0 %1100
        %1102 = vrot.lane.b32.xlu0 %v444, 64
        %v1103 = vpop.permute.xlu0 %1102
        %1104 = vrot.lane.b32.xlu0 %v365, 64
        %v1105 = vpop.permute.xlu0 %1104
        %1106 = vrot.lane.b32.xlu0 %v445, 64
        %v1107 = vpop.permute.xlu0 %1106
        %1108 = vrot.lane.b32.xlu0 %v368, 64
        %v1109 = vpop.permute.xlu0 %1108
        %1110 = vrot.lane.b32.xlu0 %v446, 64
        %v1111 = vpop.permute.xlu0 %1110
        %1112 = vrot.lane.b32.xlu0 %v371, 64
        %v1113 = vpop.permute.xlu0 %1112
        %1114 = vrot.lane.b32.xlu0 %v447, 64
        %v1115 = vpop.permute.xlu0 %1114
        %1116 = vrot.lane.b32.xlu0 %v374, 64
        %v1117 = vpop.permute.xlu0 %1116
        %1118 = vrot.lane.b32.xlu0 %v448, 64
        %v1119 = vpop.permute.xlu0 %1118
        %1120 = vrot.lane.b32.xlu0 %v377, 64
        %v1121 = vpop.permute.xlu0 %1120
        %1122 = vrot.lane.b32.xlu0 %v449, 64
        %v1123 = vpop.permute.xlu0 %1122
        %1124 = vrot.lane.b32.xlu0 %v380, 64
        %v1125 = vpop.permute.xlu0 %1124
        %1126 = vrot.lane.b32.xlu0 %v450, 64
        %v1127 = vpop.permute.xlu0 %1126
        %1128 = vrot.lane.b32.xlu0 %v383, 64
        %v1129 = vpop.permute.xlu0 %1128
        %1130 = vrot.lane.b32.xlu0 %v451, 64
        %v1131 = vpop.permute.xlu0 %1130
        %1132 = vrot.lane.b32.xlu0 %v386, 64
        %v1133 = vpop.permute.xlu0 %1132
        %1134 = vrot.lane.b32.xlu0 %v452, 64
        %v1135 = vpop.permute.xlu0 %1134
        %1136 = vrot.lane.b32.xlu0 %v389, 64
        %v1137 = vpop.permute.xlu0 %1136
        %1138 = vrot.lane.b32.xlu0 0.0, 64
        %v1139 = vpop.permute.xlu0 %1138
        %1171 = vrot.lane.b32.xlu0 %v510, 96
        %v1172 = vpop.permute.xlu0 %1171
        %1173 = vrot.lane.b32.xlu0 %v512, 96
        %v1174 = vpop.permute.xlu0 %1173
        %1175 = vrot.lane.b32.xlu0 %v515, 96
        %v1176 = vpop.permute.xlu0 %1175
        %1177 = vrot.lane.b32.xlu0 %v517, 96
        %v1178 = vpop.permute.xlu0 %1177
        %1179 = vrot.lane.b32.xlu0 %v520, 96
        %v1180 = vpop.permute.xlu0 %1179
        %1181 = vrot.lane.b32.xlu0 %v522, 96
        %v1182 = vpop.permute.xlu0 %1181
        %1183 = vrot.lane.b32.xlu0 %v525, 96
        %v1184 = vpop.permute.xlu0 %1183
        %1185 = vrot.lane.b32.xlu0 %v527, 96
        %v1186 = vpop.permute.xlu0 %1185
        %1187 = vrot.lane.b32.xlu0 %v530, 96
        %v1188 = vpop.permute.xlu0 %1187
        %1189 = vrot.lane.b32.xlu0 %v532, 96
        %v1190 = vpop.permute.xlu0 %1189
        %1191 = vrot.lane.b32.xlu0 %v535, 96
        %v1192 = vpop.permute.xlu0 %1191
        %1193 = vrot.lane.b32.xlu0 %v537, 96
        %v1194 = vpop.permute.xlu0 %1193
        %1195 = vrot.lane.b32.xlu0 %v540, 96
        %v1196 = vpop.permute.xlu0 %1195
        %1197 = vrot.lane.b32.xlu0 %v542, 96
        %v1198 = vpop.permute.xlu0 %1197
        %1199 = vrot.lane.b32.xlu0 %v545, 96
        %v1200 = vpop.permute.xlu0 %1199
        %1201 = vrot.lane.b32.xlu0 %v547, 96
        %v1202 = vpop.permute.xlu0 %1201
        %1203 = vrot.lane.b32.xlu0 %v550, 96
        %v1204 = vpop.permute.xlu0 %1203
        %1205 = vrot.lane.b32.xlu0 %v552, 96
        %v1206 = vpop.permute.xlu0 %1205
        %1207 = vrot.lane.b32.xlu0 %v555, 96
        %v1208 = vpop.permute.xlu0 %1207
        %1209 = vrot.lane.b32.xlu0 %v557, 96
        %v1210 = vpop.permute.xlu0 %1209
        %1211 = vrot.lane.b32.xlu0 %v560, 96
        %v1212 = vpop.permute.xlu0 %1211
        %1213 = vrot.lane.b32.xlu0 %v562, 96
        %v1214 = vpop.permute.xlu0 %1213
        %1215 = vrot.lane.b32.xlu0 %v565, 96
        %v1216 = vpop.permute.xlu0 %1215
        %1217 = vrot.lane.b32.xlu0 %v567, 96
        %v1218 = vpop.permute.xlu0 %1217
        %1219 = vrot.lane.b32.xlu0 %v570, 96
        %v1220 = vpop.permute.xlu0 %1219
        %1221 = vrot.lane.b32.xlu0 %v572, 96
        %v1222 = vpop.permute.xlu0 %1221
        %1223 = vrot.lane.b32.xlu0 %v575, 96
        %v1224 = vpop.permute.xlu0 %1223
        %1225 = vrot.lane.b32.xlu0 %v577, 96
        %v1226 = vpop.permute.xlu0 %1225
        %1227 = vrot.lane.b32.xlu0 %v942, 96
        %v1228 = vpop.permute.xlu0 %1227
        %1229 = vrot.lane.b32.xlu0 %v944, 96
        %v1230 = vpop.permute.xlu0 %1229
        %1231 = vrot.lane.b32.xlu0 %v502, 96
        %v1232 = vpop.permute.xlu0 %1231
        %vm1264 = vcmask 261120
        %v1265 = vsel %vm1264, 0.0, %v579
        %v1266 = vsel %vm1264, %v437, %v581
        %v1267 = vsel %vm1264, %v344, %v583
        %v1268 = vsel %vm1264, %v438, %v585
        %v1269 = vsel %vm1264, %v347, %v587
        %v1270 = vsel %vm1264, %v439, %v589
        %v1271 = vsel %vm1264, %v350, %v591
        %v1272 = vsel %vm1264, %v440, %v593
        %v1273 = vsel %vm1264, %v353, %v595
        %v1274 = vsel %vm1264, %v441, %v597
        %v1275 = vsel %vm1264, %v356, %v599
        %v1276 = vsel %vm1264, %v442, %v601
        %v1277 = vsel %vm1264, %v359, %v603
        %v1278 = vsel %vm1264, %v443, %v605
        %v1279 = vsel %vm1264, %v362, %v607
        %v1280 = vsel %vm1264, %v444, %v609
        %v1281 = vsel %vm1264, %v365, %v611
        %v1282 = vsel %vm1264, %v445, %v613
        %v1283 = vsel %vm1264, %v368, %v615
        %v1284 = vsel %vm1264, %v446, %v617
        %v1285 = vsel %vm1264, %v371, %v619
        %v1286 = vsel %vm1264, %v447, %v621
        %v1287 = vsel %vm1264, %v374, %v623
        %v1288 = vsel %vm1264, %v448, %v625
        %v1289 = vsel %vm1264, %v377, %v627
        %v1290 = vsel %vm1264, %v449, %v629
        %v1291 = vsel %vm1264, %v380, %v631
        %v1292 = vsel %vm1264, %v450, %v633
        %v1293 = vsel %vm1264, %v383, %v635
        %v1294 = vsel %vm1264, %v451, %v637
        %v1295 = vsel %vm1264, %v386, %v639
        %vm1296 = vcmask 523264
        %v1297 = vsel %vm1296, %v1265, %v750
        %v1298 = vsel %vm1296, %v1266, %v752
        %v1299 = vsel %vm1296, %v1267, %v754
        %v1300 = vsel %vm1296, %v1268, %v756
        %v1301 = vsel %vm1296, %v1269, %v758
        %v1302 = vsel %vm1296, %v1270, %v760
        %v1303 = vsel %vm1296, %v1271, %v762
        %v1304 = vsel %vm1296, %v1272, %v764
        %v1305 = vsel %vm1296, %v1273, %v766
        %v1306 = vsel %vm1296, %v1274, %v768
        %v1307 = vsel %vm1296, %v1275, %v770
        %v1308 = vsel %vm1296, %v1276, %v772
        %v1309 = vsel %vm1296, %v1277, %v774
        %v1310 = vsel %vm1296, %v1278, %v776
        %v1311 = vsel %vm1296, %v1279, %v778
        %v1312 = vsel %vm1296, %v1280, %v780
        %v1313 = vsel %vm1296, %v1281, %v782
        %v1314 = vsel %vm1296, %v1282, %v784
        %v1315 = vsel %vm1296, %v1283, %v786
        %v1316 = vsel %vm1296, %v1284, %v788
        %v1317 = vsel %vm1296, %v1285, %v790
        %v1318 = vsel %vm1296, %v1286, %v792
        %v1319 = vsel %vm1296, %v1287, %v794
        %v1320 = vsel %vm1296, %v1288, %v796
        %v1321 = vsel %vm1296, %v1289, %v798
        %v1322 = vsel %vm1296, %v1290, %v800
        %v1323 = vsel %vm1296, %v1291, %v802
        %v1324 = vsel %vm1296, %v1292, %v804
        %v1325 = vsel %vm1296, %v1293, %v806
        %v1326 = vsel %vm1296, %v1294, %v808
        %v1327 = vsel %vm1296, %v1295, %v810
        %vm1328 = vcmask 785408
        %v1329 = vsel %vm1328, %v1297, %v844
        %v1330 = vsel %vm1328, %v1297, %v846
        %v1331 = vsel %vm1328, %v1298, %v848
        %v1332 = vsel %vm1328, %v1299, %v850
        %v1333 = vsel %vm1328, %v1300, %v852
        %v1334 = vsel %vm1328, %v1301, %v854
        %v1335 = vsel %vm1328, %v1302, %v856
        %v1336 = vsel %vm1328, %v1303, %v858
        %v1337 = vsel %vm1328, %v1304, %v860
        %v1338 = vsel %vm1328, %v1305, %v862
        %v1339 = vsel %vm1328, %v1306, %v864
        %v1340 = vsel %vm1328, %v1307, %v866
        %v1341 = vsel %vm1328, %v1308, %v868
        %v1342 = vsel %vm1328, %v1309, %v870
        %v1343 = vsel %vm1328, %v1310, %v872
        %v1344 = vsel %vm1328, %v1311, %v874
        %v1345 = vsel %vm1328, %v1312, %v876
        %v1346 = vsel %vm1328, %v1313, %v878
        %v1347 = vsel %vm1328, %v1314, %v880
        %v1348 = vsel %vm1328, %v1315, %v882
        %v1349 = vsel %vm1328, %v1316, %v884
        %v1350 = vsel %vm1328, %v1317, %v886
        %v1351 = vsel %vm1328, %v1318, %v888
        %v1352 = vsel %vm1328, %v1319, %v890
        %v1353 = vsel %vm1328, %v1320, %v892
        %v1354 = vsel %vm1328, %v1321, %v894
        %v1355 = vsel %vm1328, %v1322, %v896
        %v1356 = vsel %vm1328, %v1323, %v898
        %v1357 = vsel %vm1328, %v1324, %v900
        %v1358 = vsel %vm1328, %v1325, %v902
        %v1359 = vsel %vm1328, %v1326, %v904
        %v1360 = vsel %vm1328, %v1327, %v906
        %v1361 = vsel %vm1264, %v505, %v983
        %v1362 = vsel %vm1264, %v507, %v985
        %v1363 = vsel %vm1264, %v510, %v987
        %v1364 = vsel %vm1264, %v512, %v989
        %v1365 = vsel %vm1264, %v515, %v991
        %v1366 = vsel %vm1264, %v517, %v993
        %v1367 = vsel %vm1264, %v520, %v995
        %v1368 = vsel %vm1264, %v522, %v997
        %v1369 = vsel %vm1264, %v525, %v999
        %v1370 = vsel %vm1264, %v527, %v1001
        %v1371 = vsel %vm1264, %v530, %v1003
        %v1372 = vsel %vm1264, %v532, %v1005
        %v1373 = vsel %vm1264, %v535, %v1007
        %v1374 = vsel %vm1264, %v537, %v1009
        %v1375 = vsel %vm1264, %v540, %v1011
        %v1376 = vsel %vm1264, %v542, %v1013
        %v1377 = vsel %vm1264, %v545, %v1015
        %v1378 = vsel %vm1264, %v547, %v1017
        %v1379 = vsel %vm1264, %v550, %v1019
        %v1380 = vsel %vm1264, %v552, %v1021
        %v1381 = vsel %vm1264, %v555, %v1023
        %v1382 = vsel %vm1264, %v557, %v1025
        %v1383 = vsel %vm1264, %v560, %v1027
        %v1384 = vsel %vm1264, %v562, %v1029
        %v1385 = vsel %vm1264, %v565, %v1031
        %v1386 = vsel %vm1264, %v567, %v1033
        %v1387 = vsel %vm1264, %v570, %v1035
        %v1388 = vsel %vm1264, %v572, %v1037
        %v1389 = vsel %vm1264, %v575, %v1039
        %v1390 = vsel %vm1264, %v577, %v1041
        %v1391 = vsel %vm1264, %v942, %v1043
        %v1392 = vsel %vm1264, %v944, %v1045
        %v1393 = vsel %vm1296, %v1361, %v1079
        %v1394 = vsel %vm1296, %v1362, %v1081
        %v1395 = vsel %vm1296, %v1363, %v1083
        %v1396 = vsel %vm1296, %v1364, %v1085
        %v1397 = vsel %vm1296, %v1365, %v1087
        %v1398 = vsel %vm1296, %v1366, %v1089
        %v1399 = vsel %vm1296, %v1367, %v1091
        %v1400 = vsel %vm1296, %v1368, %v1093
        %v1401 = vsel %vm1296, %v1369, %v1095
        %v1402 = vsel %vm1296, %v1370, %v1097
        %v1403 = vsel %vm1296, %v1371, %v1099
        %v1404 = vsel %vm1296, %v1372, %v1101
        %v1405 = vsel %vm1296, %v1373, %v1103
        %v1406 = vsel %vm1296, %v1374, %v1105
        %v1407 = vsel %vm1296, %v1375, %v1107
        %v1408 = vsel %vm1296, %v1376, %v1109
        %v1409 = vsel %vm1296, %v1377, %v1111
        %v1410 = vsel %vm1296, %v1378, %v1113
        %v1411 = vsel %vm1296, %v1379, %v1115
        %v1412 = vsel %vm1296, %v1380, %v1117
        %v1413 = vsel %vm1296, %v1381, %v1119
        %v1414 = vsel %vm1296, %v1382, %v1121
        %v1415 = vsel %vm1296, %v1383, %v1123
        %v1416 = vsel %vm1296, %v1384, %v1125
        %v1417 = vsel %vm1296, %v1385, %v1127
        %v1418 = vsel %vm1296, %v1386, %v1129
        %v1419 = vsel %vm1296, %v1387, %v1131
        %v1420 = vsel %vm1296, %v1388, %v1133
        %v1421 = vsel %vm1296, %v1389, %v1135
        %v1422 = vsel %vm1296, %v1390, %v1137
        %v1423 = vsel %vm1296, %v1391, %v1139
        %v1424 = vsel %vm1296, %v1392, %v1139
        %v1425 = vsel %vm1328, %v1393, %v1172
        %v1426 = vsel %vm1328, %v1394, %v1174
        %v1427 = vsel %vm1328, %v1395, %v1176
        %v1428 = vsel %vm1328, %v1396, %v1178
        %v1429 = vsel %vm1328, %v1397, %v1180
        %v1430 = vsel %vm1328, %v1398, %v1182
        %v1431 = vsel %vm1328, %v1399, %v1184
        %v1432 = vsel %vm1328, %v1400, %v1186
        %v1433 = vsel %vm1328, %v1401, %v1188
        %v1434 = vsel %vm1328, %v1402, %v1190
        %v1435 = vsel %vm1328, %v1403, %v1192
        %v1436 = vsel %vm1328, %v1404, %v1194
        %v1437 = vsel %vm1328, %v1405, %v1196
        %v1438 = vsel %vm1328, %v1406, %v1198
        %v1439 = vsel %vm1328, %v1407, %v1200
        %v1440 = vsel %vm1328, %v1408, %v1202
        %v1441 = vsel %vm1328, %v1409, %v1204
        %v1442 = vsel %vm1328, %v1410, %v1206
        %v1443 = vsel %vm1328, %v1411, %v1208
        %v1444 = vsel %vm1328, %v1412, %v1210
        %v1445 = vsel %vm1328, %v1413, %v1212
        %v1446 = vsel %vm1328, %v1414, %v1214
        %v1447 = vsel %vm1328, %v1415, %v1216
        %v1448 = vsel %vm1328, %v1416, %v1218
        %v1449 = vsel %vm1328, %v1417, %v1220
        %v1450 = vsel %vm1328, %v1418, %v1222
        %v1451 = vsel %vm1328, %v1419, %v1224
        %v1452 = vsel %vm1328, %v1420, %v1226
        %v1453 = vsel %vm1328, %v1421, %v1228
        %v1454 = vsel %vm1328, %v1422, %v1230
        %v1455 = vsel %vm1328, %v1423, %v1232
        %v1456 = vsel %vm1328, %v1424, %v1232
        %v1457 = vld [vmem:[%s1] sm:$0xff]
        %v1458 = vld [vmem:[%s1 + $0x8] sm:$0xff]
        %v1459 = vld [vmem:[%s1 + $0x10] sm:$0xff]
        %v1460 = vld [vmem:[%s1 + $0x18] sm:$0xff]
        %v1461 = vld [vmem:[%s1 + $0x20] sm:$0xff]
        %v1462 = vld [vmem:[%s1 + $0x28] sm:$0xff]
        %v1463 = vld [vmem:[%s1 + $0x30] sm:$0xff]
        %v1464 = vld [vmem:[%s1 + $0x38] sm:$0xff]
        %v1465 = vld [vmem:[%s1 + $0x40] sm:$0xff]
        %v1466 = vld [vmem:[%s1 + $0x48] sm:$0xff]
        %v1467 = vld [vmem:[%s1 + $0x50] sm:$0xff]
        %v1468 = vld [vmem:[%s1 + $0x58] sm:$0xff]
        %v1469 = vld [vmem:[%s1 + $0x60] sm:$0xff]
        %v1470 = vld [vmem:[%s1 + $0x68] sm:$0xff]
        %v1471 = vld [vmem:[%s1 + $0x70] sm:$0xff]
        %v1472 = vld [vmem:[%s1 + $0x78] sm:$0xff]
        %v1473 = vld [vmem:[%s1 + $0x80] sm:$0xff]
        %v1474 = vld [vmem:[%s1 + $0x88] sm:$0xff]
        %v1475 = vld [vmem:[%s1 + $0x90] sm:$0xff]
        %v1476 = vld [vmem:[%s1 + $0x98] sm:$0xff]
        %v1477 = vld [vmem:[%s1 + $0xa0] sm:$0xff]
        %v1478 = vld [vmem:[%s1 + $0xa8] sm:$0xff]
        %v1479 = vld [vmem:[%s1 + $0xb0] sm:$0xff]
        %v1480 = vld [vmem:[%s1 + $0xb8] sm:$0xff]
        %v1481 = vld [vmem:[%s1 + $0xc0] sm:$0xff]
        %v1482 = vld [vmem:[%s1 + $0xc8] sm:$0xff]
        %v1483 = vld [vmem:[%s1 + $0xd0] sm:$0xff]
        %v1484 = vld [vmem:[%s1 + $0xd8] sm:$0xff]
        %v1485 = vld [vmem:[%s1 + $0xe0] sm:$0xff]
        %v1486 = vld [vmem:[%s1 + $0xe8] sm:$0xff]
        %v1487 = vld [vmem:[%s1 + $0xf0] sm:$0xff]
        %v1488 = vld [vmem:[%s1 + $0xf8] sm:$0xff]
        %v1489 = vld [vmem:[%s1 + $0x100] sm:$0xff]
        %v1490 = vld [vmem:[%s1 + $0x108] sm:$0xff]
        %v1491 = vld [vmem:[%s1 + $0x110] sm:$0xff]
        %v1492 = vld [vmem:[%s1 + $0x118] sm:$0xff]
        %v1493 = vld [vmem:[%s2] sm:$0x1]
        %v1494 = vlaneseq
        %v1495 = vshrl.u32 %v1494, 7
        %v1496 = vsub.s32 0, %v1495
        %v1497 = vrot.slane %v1493, %v1496
        %v1498 = vsel %vm1264, %v681, 0
        %v1500 = vsel %vm1264, %v683, 0
        %v1502 = vsel %vm1264, %v686, 0
        %v1504 = vsel %vm1264, %v688, 0
        %v1506 = vsel %vm1264, %v691, 0
        %v1508 = vsel %vm1264, %v693, 0
        %v1510 = vsel %vm1264, %v696, 0
        %v1512 = vsel %vm1264, %v698, 0
        %v1514 = vsel %vm1264, %v701, 0
        %v1516 = vsel %vm1264, %v703, 0
        %v1518 = vsel %vm1264, %v706, 0
        %v1520 = vsel %vm1264, %v708, 0
        %v1522 = vsel %vm1264, %v711, 0
        %v1524 = vsel %vm1264, %v713, 0
        %v1526 = vsel %vm1264, %v716, 0
        %v1528 = vsel %vm1264, %v718, 0
        %v1530 = vsel %vm1264, %v721, 0
        %v1532 = vsel %vm1264, %v723, 0
        %v1534 = vsel %vm1264, %v726, 0
        %v1536 = vsel %vm1264, %v728, 0
        %v1538 = vsel %vm1264, %v731, 0
        %v1540 = vsel %vm1264, %v733, 0
        %v1542 = vsel %vm1264, %v736, 0
        %v1544 = vsel %vm1264, %v738, 0
        %v1546 = vsel %vm1264, %v741, 0
        %v1548 = vsel %vm1264, %v743, 0
        %v1550 = vsel %vm1264, %v746, 0
        %v1552 = vsel %vm1264, %v748, 0
        %v1554 = vsel %vm1264, %v979, 0
        %v1556 = vsel %vm1264, %v981, 0
        %v1558 = vsel %vm1264, %v673, 0
        %1560 = vmatprep.subr.mxu0 0.0
        %1561 = vmatpush1.msra.mxu0 %v1472
        %1562 = vmatprep.subr.mxu0 0.0
        %1563 = vmatpush1.msra.mxu0 %v1471
        %1564 = vmatprep.subr.mxu0 0.0
        %1565 = vmatpush1.msra.mxu0 %v1470
        %1566 = vmatprep.subr.mxu0 0.0
        %1567 = vmatpush1.msra.mxu0 %v1469
        %1568 = vmatprep.subr.mxu0 0.0
        %1569 = vmatpush1.msra.mxu0 %v1468
        %1570 = vmatprep.subr.mxu0 0.0
        %1571 = vmatpush1.msra.mxu0 %v1467
        %1572 = vmatprep.subr.mxu0 0.0
        %1573 = vmatpush1.msra.mxu0 %v1466
        %1574 = vmatprep.subr.mxu0 0.0
        %1575 = vmatpush1.msra.mxu0 %v1465
        %1576 = vmatprep.subr.mxu0 0.0
        %1577 = vmatpush1.msra.mxu0 %v1464
        %1578 = vmatprep.subr.mxu0 0.0
        %1579 = vmatpush1.msra.mxu0 %v1463
        %1580 = vmatprep.subr.mxu0 0.0
        %1581 = vmatpush1.msra.mxu0 %v1462
        %1582 = vmatprep.subr.mxu0 0.0
        %1583 = vmatpush1.msra.mxu0 %v1461
        %1584 = vmatprep.subr.mxu0 0.0
        %1585 = vmatpush1.msra.mxu0 %v1460
        %1586 = vmatprep.subr.mxu0 0.0
        %1587 = vmatpush1.msra.mxu0 %v1459
        %1588 = vmatprep.subr.mxu0 0.0
        %1589 = vmatpush1.msra.mxu0 %v1458
        %1590 = vmatprep.subr.mxu0 0.0
        %1591 = vmatpush1.msra.mxu0 %v1457
        %1592 = vmatprep.subr.mxu0 0.0
        %1593 = vmatpush2.msra.mxu0 %v1488
        %1594 = vmatprep.subr.mxu0 0.0
        %1595 = vmatpush2.msra.mxu0 %v1487
        %1596 = vmatprep.subr.mxu0 0.0
        %1597 = vmatpush2.msra.mxu0 %v1486
        %1598 = vmatprep.subr.mxu0 0.0
        %1599 = vmatpush2.msra.mxu0 %v1485
        %1600 = vmatprep.subr.mxu0 0.0
        %1601 = vmatpush2.msra.mxu0 %v1484
        %1602 = vmatprep.subr.mxu0 0.0
        %1603 = vmatpush2.msra.mxu0 %v1483
        %1604 = vmatprep.subr.mxu0 0.0
        %1605 = vmatpush2.msra.mxu0 %v1482
        %1606 = vmatprep.subr.mxu0 0.0
        %1607 = vmatpush2.msra.mxu0 %v1481
        %1608 = vmatprep.subr.mxu0 0.0
        %1609 = vmatpush2.msra.mxu0 %v1480
        %1610 = vmatprep.subr.mxu0 0.0
        %1611 = vmatpush2.msra.mxu0 %v1479
        %1612 = vmatprep.subr.mxu0 0.0
        %1613 = vmatpush2.msra.mxu0 %v1478
        %1614 = vmatprep.subr.mxu0 0.0
        %1615 = vmatpush2.msra.mxu0 %v1477
        %1616 = vmatprep.subr.mxu0 0.0
        %1617 = vmatpush2.msra.mxu0 %v1476
        %1618 = vmatprep.subr.mxu0 0.0
        %1619 = vmatpush2.msra.mxu0 %v1475
        %1620 = vmatprep.subr.mxu0 0.0
        %1621 = vmatpush2.msra.mxu0 %v1474
        %1622 = vmatprep.subr.mxu0 0.0
        %1623 = vmatpush2.msra.mxu0 %v1473
        %1624 = vmatprep.mubr.f32.mxu0 %v1425
        %1625 = vmatmul.mubr.f32.gmra.mxu0 %v1329
        %v1626 = vpop.f32.mrf.mxu0
        %v1627 = vadd.f32 %v1497, %v1626
        %v1628 = vpop.f32.mrf.mxu0
        %1629 = vmatprep.mubr.f32.mxu0 %v1426
        %1630 = vmatmul.mubr.f32.gmra.mxu0 %v1330
        %v1631 = vpop.f32.mrf.mxu0
        %v1632 = vadd.f32 %v1497, %v1631
        %v1633 = vpop.f32.mrf.mxu0
        %1634 = vmatprep.mubr.f32.mxu0 %v1427
        %1635 = vmatmul.mubr.f32.gmra.mxu0 %v1331
        %v1636 = vpop.f32.mrf.mxu0
        %v1637 = vadd.f32 %v1497, %v1636
        %v1638 = vpop.f32.mrf.mxu0
        %1639 = vmatprep.mubr.f32.mxu0 %v1428
        %1640 = vmatmul.mubr.f32.gmra.mxu0 %v1332
        %v1641 = vpop.f32.mrf.mxu0
        %v1642 = vadd.f32 %v1497, %v1641
        %v1643 = vpop.f32.mrf.mxu0
        %1644 = vmatprep.mubr.f32.mxu0 %v1429
        %1645 = vmatmul.mubr.f32.gmra.mxu0 %v1333
        %v1646 = vpop.f32.mrf.mxu0
        %v1647 = vadd.f32 %v1497, %v1646
        %v1648 = vpop.f32.mrf.mxu0
        %1649 = vmatprep.mubr.f32.mxu0 %v1430
        %1650 = vmatmul.mubr.f32.gmra.mxu0 %v1334
        %v1651 = vpop.f32.mrf.mxu0
        %v1652 = vadd.f32 %v1497, %v1651
        %v1653 = vpop.f32.mrf.mxu0
        %1654 = vmatprep.mubr.f32.mxu0 %v1431
        %1655 = vmatmul.mubr.f32.gmra.mxu0 %v1335
        %v1656 = vpop.f32.mrf.mxu0
        %v1657 = vadd.f32 %v1497, %v1656
        %v1658 = vpop.f32.mrf.mxu0
        %1659 = vmatprep.mubr.f32.mxu0 %v1432
        %1660 = vmatmul.mubr.f32.gmra.mxu0 %v1336
        %v1661 = vpop.f32.mrf.mxu0
        %v1662 = vadd.f32 %v1497, %v1661
        %v1663 = vpop.f32.mrf.mxu0
        %1664 = vmatprep.mubr.f32.mxu0 %v1433
        %1665 = vmatmul.mubr.f32.gmra.mxu0 %v1337
        %v1666 = vpop.f32.mrf.mxu0
        %v1667 = vadd.f32 %v1497, %v1666
        %v1668 = vpop.f32.mrf.mxu0
        %1669 = vmatprep.mubr.f32.mxu0 %v1434
        %1670 = vmatmul.mubr.f32.gmra.mxu0 %v1338
        %v1671 = vpop.f32.mrf.mxu0
        %v1672 = vadd.f32 %v1497, %v1671
        %v1673 = vpop.f32.mrf.mxu0
        %1674 = vmatprep.mubr.f32.mxu0 %v1435
        %1675 = vmatmul.mubr.f32.gmra.mxu0 %v1339
        %v1676 = vpop.f32.mrf.mxu0
        %v1677 = vadd.f32 %v1497, %v1676
        %v1678 = vpop.f32.mrf.mxu0
        %1679 = vmatprep.mubr.f32.mxu0 %v1436
        %1680 = vmatmul.mubr.f32.gmra.mxu0 %v1340
        %v1681 = vpop.f32.mrf.mxu0
        %v1682 = vadd.f32 %v1497, %v1681
        %v1683 = vpop.f32.mrf.mxu0
        %1684 = vmatprep.mubr.f32.mxu0 %v1437
        %1685 = vmatmul.mubr.f32.gmra.mxu0 %v1341
        %v1686 = vpop.f32.mrf.mxu0
        %v1687 = vadd.f32 %v1497, %v1686
        %v1688 = vpop.f32.mrf.mxu0
        %1689 = vmatprep.mubr.f32.mxu0 %v1438
        %1690 = vmatmul.mubr.f32.gmra.mxu0 %v1342
        %v1691 = vpop.f32.mrf.mxu0
        %v1692 = vadd.f32 %v1497, %v1691
        %v1693 = vpop.f32.mrf.mxu0
        %1694 = vmatprep.mubr.f32.mxu0 %v1439
        %1695 = vmatmul.mubr.f32.gmra.mxu0 %v1343
        %v1696 = vpop.f32.mrf.mxu0
        %v1697 = vadd.f32 %v1497, %v1696
        %v1698 = vpop.f32.mrf.mxu0
        %1699 = vmatprep.mubr.f32.mxu0 %v1440
        %1700 = vmatmul.mubr.f32.gmra.mxu0 %v1344
        %v1701 = vpop.f32.mrf.mxu0
        %v1702 = vadd.f32 %v1497, %v1701
        %v1703 = vpop.f32.mrf.mxu0
        %1704 = vmatprep.mubr.f32.mxu0 %v1441
        %1705 = vmatmul.mubr.f32.gmra.mxu0 %v1345
        %v1706 = vpop.f32.mrf.mxu0
        %v1707 = vadd.f32 %v1497, %v1706
        %v1708 = vpop.f32.mrf.mxu0
        %1709 = vmatprep.mubr.f32.mxu0 %v1442
        %1710 = vmatmul.mubr.f32.gmra.mxu0 %v1346
        %v1711 = vpop.f32.mrf.mxu0
        %v1712 = vadd.f32 %v1497, %v1711
        %v1713 = vpop.f32.mrf.mxu0
        %1714 = vmatprep.mubr.f32.mxu0 %v1443
        %1715 = vmatmul.mubr.f32.gmra.mxu0 %v1347
        %v1716 = vpop.f32.mrf.mxu0
        %v1717 = vadd.f32 %v1497, %v1716
        %v1718 = vpop.f32.mrf.mxu0
        %1719 = vmatprep.mubr.f32.mxu0 %v1444
        %1720 = vmatmul.mubr.f32.gmra.mxu0 %v1348
        %v1721 = vpop.f32.mrf.mxu0
        %v1722 = vadd.f32 %v1497, %v1721
        %v1723 = vpop.f32.mrf.mxu0
        %1724 = vmatprep.mubr.f32.mxu0 %v1445
        %1725 = vmatmul.mubr.f32.gmra.mxu0 %v1349
        %v1726 = vpop.f32.mrf.mxu0
        %v1727 = vadd.f32 %v1497, %v1726
        %v1728 = vpop.f32.mrf.mxu0
        %1729 = vmatprep.mubr.f32.mxu0 %v1446
        %1730 = vmatmul.mubr.f32.gmra.mxu0 %v1350
        %v1731 = vpop.f32.mrf.mxu0
        %v1732 = vadd.f32 %v1497, %v1731
        %v1733 = vpop.f32.mrf.mxu0
        %1734 = vmatprep.mubr.f32.mxu0 %v1447
        %1735 = vmatmul.mubr.f32.gmra.mxu0 %v1351
        %v1736 = vpop.f32.mrf.mxu0
        %v1737 = vadd.f32 %v1497, %v1736
        %v1738 = vpop.f32.mrf.mxu0
        %1739 = vmatprep.mubr.f32.mxu0 %v1448
        %1740 = vmatmul.mubr.f32.gmra.mxu0 %v1352
        %v1741 = vpop.f32.mrf.mxu0
        %v1742 = vadd.f32 %v1497, %v1741
        %v1743 = vpop.f32.mrf.mxu0
        %1744 = vmatprep.mubr.f32.mxu0 %v1449
        %1745 = vmatmul.mubr.f32.gmra.mxu0 %v1353
        %v1746 = vpop.f32.mrf.mxu0
        %v1747 = vadd.f32 %v1497, %v1746
        %v1748 = vpop.f32.mrf.mxu0
        %1749 = vmatprep.mubr.f32.mxu0 %v1450
        %1750 = vmatmul.mubr.f32.gmra.mxu0 %v1354
        %v1751 = vpop.f32.mrf.mxu0
        %v1752 = vadd.f32 %v1497, %v1751
        %v1753 = vpop.f32.mrf.mxu0
        %1754 = vmatprep.mubr.f32.mxu0 %v1451
        %1755 = vmatmul.mubr.f32.gmra.mxu0 %v1355
        %v1756 = vpop.f32.mrf.mxu0
        %v1757 = vadd.f32 %v1497, %v1756
        %v1758 = vpop.f32.mrf.mxu0
        %1759 = vmatprep.mubr.f32.mxu0 %v1452
        %1760 = vmatmul.mubr.f32.gmra.mxu0 %v1356
        %v1761 = vpop.f32.mrf.mxu0
        %v1762 = vadd.f32 %v1497, %v1761
        %v1763 = vpop.f32.mrf.mxu0
        %1764 = vmatprep.mubr.f32.mxu0 %v1453
        %1765 = vmatmul.mubr.f32.gmra.mxu0 %v1357
        %v1766 = vpop.f32.mrf.mxu0
        %v1767 = vadd.f32 %v1497, %v1766
        %v1768 = vpop.f32.mrf.mxu0
        %1769 = vmatprep.mubr.f32.mxu0 %v1454
        %1770 = vmatmul.mubr.f32.gmra.mxu0 %v1358
        %v1771 = vpop.f32.mrf.mxu0
        %v1772 = vadd.f32 %v1497, %v1771
        %v1773 = vpop.f32.mrf.mxu0
        %1774 = vmatprep.mubr.f32.mxu0 %v1455
        %1775 = vmatmul.mubr.f32.gmra.mxu0 %v1359
        %v1776 = vpop.f32.mrf.mxu0
        %v1777 = vadd.f32 %v1497, %v1776
        %v1778 = vpop.f32.mrf.mxu0
        %1779 = vmatprep.mubr.f32.mxu0 %v1456
        %1780 = vmatmul.mubr.f32.gmra.mxu0 %v1360
        %v1781 = vpop.f32.mrf.mxu0
        %v1782 = vadd.f32 %v1497, %v1781
        %v1783 = vpop.f32.mrf.mxu0
        %1784 = vdwg.mxu0
        %1785 = vmatprep.subr.mxu0 0.0
        %1786 = vmatpush1.msra.mxu0 0.0
        %1787 = vmatprep.subr.mxu0 0.0
        %1788 = vmatpush1.msra.mxu0 0.0
        %1789 = vmatprep.subr.mxu0 0.0
        %1790 = vmatpush1.msra.mxu0 0.0
        %1791 = vmatprep.subr.mxu0 0.0
        %1792 = vmatpush1.msra.mxu0 0.0
        %1793 = vmatprep.subr.mxu0 0.0
        %1794 = vmatpush1.msra.mxu0 0.0
        %1795 = vmatprep.subr.mxu0 0.0
        %1796 = vmatpush1.msra.mxu0 0.0
        %1797 = vmatprep.subr.mxu0 0.0
        %1798 = vmatpush1.msra.mxu0 0.0
        %1799 = vmatprep.subr.mxu0 0.0
        %1800 = vmatpush1.msra.mxu0 0.0
        %1801 = vmatprep.subr.mxu0 0.0
        %1802 = vmatpush1.msra.mxu0 0.0
        %1803 = vmatprep.subr.mxu0 0.0
        %1804 = vmatpush1.msra.mxu0 0.0
        %1805 = vmatprep.subr.mxu0 0.0
        %1806 = vmatpush1.msra.mxu0 0.0
        %1807 = vmatprep.subr.mxu0 0.0
        %1808 = vmatpush1.msra.mxu0 0.0
        %1809 = vmatprep.subr.mxu0 0.0
        %1810 = vmatpush1.msra.mxu0 %v1492
        %1811 = vmatprep.subr.mxu0 0.0
        %1812 = vmatpush1.msra.mxu0 %v1491
        %1813 = vmatprep.subr.mxu0 0.0
        %1814 = vmatpush1.msra.mxu0 %v1490
        %1815 = vmatprep.subr.mxu0 0.0
        %1816 = vmatpush1.msra.mxu0 %v1489
        %1817 = vmatprep.subr.mxu0 0.0
        %1818 = vmatpush2.msra.mxu0 0.0
        %1819 = vmatprep.subr.mxu0 0.0
        %1820 = vmatpush2.msra.mxu0 0.0
        %1821 = vmatprep.subr.mxu0 0.0
        %1822 = vmatpush2.msra.mxu0 0.0
        %1823 = vmatprep.subr.mxu0 0.0
        %1824 = vmatpush2.msra.mxu0 0.0
        %1825 = vmatprep.subr.mxu0 0.0
        %1826 = vmatpush2.msra.mxu0 0.0
        %1827 = vmatprep.subr.mxu0 0.0
        %1828 = vmatpush2.msra.mxu0 0.0
        %1829 = vmatprep.subr.mxu0 0.0
        %1830 = vmatpush2.msra.mxu0 0.0
        %1831 = vmatprep.subr.mxu0 0.0
        %1832 = vmatpush2.msra.mxu0 0.0
        %1833 = vmatprep.subr.mxu0 0.0
        %1834 = vmatpush2.msra.mxu0 0.0
        %1835 = vmatprep.subr.mxu0 0.0
        %1836 = vmatpush2.msra.mxu0 0.0
        %1837 = vmatprep.subr.mxu0 0.0
        %1838 = vmatpush2.msra.mxu0 0.0
        %1839 = vmatprep.subr.mxu0 0.0
        %1840 = vmatpush2.msra.mxu0 0.0
        %1841 = vmatprep.subr.mxu0 0.0
        %1842 = vmatpush2.msra.mxu0 0.0
        %1843 = vmatprep.subr.mxu0 0.0
        %1844 = vmatpush2.msra.mxu0 0.0
        %1845 = vmatprep.subr.mxu0 0.0
        %1846 = vmatpush2.msra.mxu0 0.0
        %1847 = vmatprep.subr.mxu0 0.0
        %1848 = vmatpush2.msra.mxu0 0.0
        %1849 = vmatprep.mubr.f32.mxu0 0.0
        %1850 = vmatmul.mubr.f32.gmra.mxu0 %v1498
        %v1851 = vpop.f32.mrf.mxu0
        %v1852 = vadd.f32 %v1627, %v1851
        %v1853 = vpop.f32.mrf.mxu0
        %1854 = vmatprep.mubr.f32.mxu0 0.0
        %1855 = vmatmul.mubr.f32.gmra.mxu0 %v1500
        %v1856 = vpop.f32.mrf.mxu0
        %v1857 = vadd.f32 %v1632, %v1856
        %v1858 = vpop.f32.mrf.mxu0
        %1859 = vmatprep.mubr.f32.mxu0 0.0
        %1860 = vmatmul.mubr.f32.gmra.mxu0 %v1502
        %v1861 = vpop.f32.mrf.mxu0
        %v1862 = vadd.f32 %v1637, %v1861
        %v1863 = vpop.f32.mrf.mxu0
        %1864 = vmatprep.mubr.f32.mxu0 0.0
        %1865 = vmatmul.mubr.f32.gmra.mxu0 %v1504
        %v1866 = vpop.f32.mrf.mxu0
        %v1867 = vadd.f32 %v1642, %v1866
        %v1868 = vpop.f32.mrf.mxu0
        %1869 = vmatprep.mubr.f32.mxu0 0.0
        %1870 = vmatmul.mubr.f32.gmra.mxu0 %v1506
        %v1871 = vpop.f32.mrf.mxu0
        %v1872 = vadd.f32 %v1647, %v1871
        %v1873 = vpop.f32.mrf.mxu0
        %1874 = vmatprep.mubr.f32.mxu0 0.0
        %1875 = vmatmul.mubr.f32.gmra.mxu0 %v1508
        %v1876 = vpop.f32.mrf.mxu0
        %v1877 = vadd.f32 %v1652, %v1876
        %v1878 = vpop.f32.mrf.mxu0
        %1879 = vmatprep.mubr.f32.mxu0 0.0
        %1880 = vmatmul.mubr.f32.gmra.mxu0 %v1510
        %v1881 = vpop.f32.mrf.mxu0
        %v1882 = vadd.f32 %v1657, %v1881
        %v1883 = vpop.f32.mrf.mxu0
        %1884 = vmatprep.mubr.f32.mxu0 0.0
        %1885 = vmatmul.mubr.f32.gmra.mxu0 %v1512
        %v1886 = vpop.f32.mrf.mxu0
        %v1887 = vadd.f32 %v1662, %v1886
        %v1888 = vpop.f32.mrf.mxu0
        %1889 = vmatprep.mubr.f32.mxu0 0.0
        %1890 = vmatmul.mubr.f32.gmra.mxu0 %v1514
        %v1891 = vpop.f32.mrf.mxu0
        %v1892 = vadd.f32 %v1667, %v1891
        %v1893 = vpop.f32.mrf.mxu0
        %1894 = vmatprep.mubr.f32.mxu0 0.0
        %1895 = vmatmul.mubr.f32.gmra.mxu0 %v1516
        %v1896 = vpop.f32.mrf.mxu0
        %v1897 = vadd.f32 %v1672, %v1896
        %v1898 = vpop.f32.mrf.mxu0
        %1899 = vmatprep.mubr.f32.mxu0 0.0
        %1900 = vmatmul.mubr.f32.gmra.mxu0 %v1518
        %v1901 = vpop.f32.mrf.mxu0
        %v1902 = vadd.f32 %v1677, %v1901
        %v1903 = vpop.f32.mrf.mxu0
        %1904 = vmatprep.mubr.f32.mxu0 0.0
        %1905 = vmatmul.mubr.f32.gmra.mxu0 %v1520
        %v1906 = vpop.f32.mrf.mxu0
        %v1907 = vadd.f32 %v1682, %v1906
        %v1908 = vpop.f32.mrf.mxu0
        %1909 = vmatprep.mubr.f32.mxu0 0.0
        %1910 = vmatmul.mubr.f32.gmra.mxu0 %v1522
        %v1911 = vpop.f32.mrf.mxu0
        %v1912 = vadd.f32 %v1687, %v1911
        %v1913 = vpop.f32.mrf.mxu0
        %1914 = vmatprep.mubr.f32.mxu0 0.0
        %1915 = vmatmul.mubr.f32.gmra.mxu0 %v1524
        %v1916 = vpop.f32.mrf.mxu0
        %v1917 = vadd.f32 %v1692, %v1916
        %v1918 = vpop.f32.mrf.mxu0
        %1919 = vmatprep.mubr.f32.mxu0 0.0
        %1920 = vmatmul.mubr.f32.gmra.mxu0 %v1526
        %v1921 = vpop.f32.mrf.mxu0
        %v1922 = vadd.f32 %v1697, %v1921
        %v1923 = vpop.f32.mrf.mxu0
        %1924 = vmatprep.mubr.f32.mxu0 0.0
        %1925 = vmatmul.mubr.f32.gmra.mxu0 %v1528
        %v1926 = vpop.f32.mrf.mxu0
        %v1927 = vadd.f32 %v1702, %v1926
        %v1928 = vpop.f32.mrf.mxu0
        %1929 = vmatprep.mubr.f32.mxu0 0.0
        %1930 = vmatmul.mubr.f32.gmra.mxu0 %v1530
        %v1931 = vpop.f32.mrf.mxu0
        %v1932 = vadd.f32 %v1707, %v1931
        %v1933 = vpop.f32.mrf.mxu0
        %1934 = vmatprep.mubr.f32.mxu0 0.0
        %1935 = vmatmul.mubr.f32.gmra.mxu0 %v1532
        %v1936 = vpop.f32.mrf.mxu0
        %v1937 = vadd.f32 %v1712, %v1936
        %v1938 = vpop.f32.mrf.mxu0
        %1939 = vmatprep.mubr.f32.mxu0 0.0
        %1940 = vmatmul.mubr.f32.gmra.mxu0 %v1534
        %v1941 = vpop.f32.mrf.mxu0
        %v1942 = vadd.f32 %v1717, %v1941
        %v1943 = vpop.f32.mrf.mxu0
        %1944 = vmatprep.mubr.f32.mxu0 0.0
        %1945 = vmatmul.mubr.f32.gmra.mxu0 %v1536
        %v1946 = vpop.f32.mrf.mxu0
        %v1947 = vadd.f32 %v1722, %v1946
        %v1948 = vpop.f32.mrf.mxu0
        %1949 = vmatprep.mubr.f32.mxu0 0.0
        %1950 = vmatmul.mubr.f32.gmra.mxu0 %v1538
        %v1951 = vpop.f32.mrf.mxu0
        %v1952 = vadd.f32 %v1727, %v1951
        %v1953 = vpop.f32.mrf.mxu0
        %1954 = vmatprep.mubr.f32.mxu0 0.0
        %1955 = vmatmul.mubr.f32.gmra.mxu0 %v1540
        %v1956 = vpop.f32.mrf.mxu0
        %v1957 = vadd.f32 %v1732, %v1956
        %v1958 = vpop.f32.mrf.mxu0
        %1959 = vmatprep.mubr.f32.mxu0 0.0
        %1960 = vmatmul.mubr.f32.gmra.mxu0 %v1542
        %v1961 = vpop.f32.mrf.mxu0
        %v1962 = vadd.f32 %v1737, %v1961
        %v1963 = vpop.f32.mrf.mxu0
        %1964 = vmatprep.mubr.f32.mxu0 0.0
        %1965 = vmatmul.mubr.f32.gmra.mxu0 %v1544
        %v1966 = vpop.f32.mrf.mxu0
        %v1967 = vadd.f32 %v1742, %v1966
        %v1968 = vpop.f32.mrf.mxu0
        %1969 = vmatprep.mubr.f32.mxu0 0.0
        %1970 = vmatmul.mubr.f32.gmra.mxu0 %v1546
        %v1971 = vpop.f32.mrf.mxu0
        %v1972 = vadd.f32 %v1747, %v1971
        %v1973 = vpop.f32.mrf.mxu0
        %1974 = vmatprep.mubr.f32.mxu0 0.0
        %1975 = vmatmul.mubr.f32.gmra.mxu0 %v1548
        %v1976 = vpop.f32.mrf.mxu0
        %v1977 = vadd.f32 %v1752, %v1976
        %v1978 = vpop.f32.mrf.mxu0
        %1979 = vmatprep.mubr.f32.mxu0 0.0
        %1980 = vmatmul.mubr.f32.gmra.mxu0 %v1550
        %v1981 = vpop.f32.mrf.mxu0
        %v1982 = vadd.f32 %v1757, %v1981
        %v1983 = vpop.f32.mrf.mxu0
        %1984 = vmatprep.mubr.f32.mxu0 0.0
        %1985 = vmatmul.mubr.f32.gmra.mxu0 %v1552
        %v1986 = vpop.f32.mrf.mxu0
        %v1987 = vadd.f32 %v1762, %v1986
        %v1988 = vpop.f32.mrf.mxu0
        %1989 = vmatprep.mubr.f32.mxu0 0.0
        %1990 = vmatmul.mubr.f32.gmra.mxu0 %v1554
        %v1991 = vpop.f32.mrf.mxu0
        %v1992 = vadd.f32 %v1767, %v1991
        %v1993 = vpop.f32.mrf.mxu0
        %1994 = vmatprep.mubr.f32.mxu0 0.0
        %1995 = vmatmul.mubr.f32.gmra.mxu0 %v1556
        %v1996 = vpop.f32.mrf.mxu0
        %v1997 = vadd.f32 %v1772, %v1996
        %v1998 = vpop.f32.mrf.mxu0
        %1999 = vmatprep.mubr.f32.mxu0 0.0
        %2000 = vmatmul.mubr.f32.gmra.mxu0 %v1558
        %v2001 = vpop.f32.mrf.mxu0
        %v2002 = vadd.f32 %v1777, %v2001
        %v2003 = vpop.f32.mrf.mxu0
        %2004 = vmatprep.mubr.f32.mxu0 0.0
        %2005 = vmatmul.mubr.f32.gmra.mxu0 %v1558
        %v2006 = vpop.f32.mrf.mxu0
        %v2007 = vadd.f32 %v1782, %v2006
        %v2008 = vpop.f32.mrf.mxu0
        %2009 = vdwg.mxu0
        %v2010 = vsel %vm1264, %v1852, 0.0
        %v2011 = vsel %vm1264, %v1857, 0.0
        %v2012 = vadd.f32 %v2010, %v2011
        %v2013 = vsel %vm1264, %v1862, 0.0
        %v2014 = vadd.f32 %v2012, %v2013
        %v2015 = vsel %vm1264, %v1867, 0.0
        %v2016 = vadd.f32 %v2014, %v2015
        %v2017 = vsel %vm1264, %v1872, 0.0
        %v2018 = vadd.f32 %v2016, %v2017
        %v2019 = vsel %vm1264, %v1877, 0.0
        %v2020 = vadd.f32 %v2018, %v2019
        %v2021 = vsel %vm1264, %v1882, 0.0
        %v2022 = vadd.f32 %v2020, %v2021
        %v2023 = vsel %vm1264, %v1887, 0.0
        %v2024 = vadd.f32 %v2022, %v2023
        %v2025 = vsel %vm1264, %v1892, 0.0
        %v2026 = vadd.f32 %v2024, %v2025
        %v2027 = vsel %vm1264, %v1897, 0.0
        %v2028 = vadd.f32 %v2026, %v2027
        %v2029 = vsel %vm1264, %v1902, 0.0
        %v2030 = vadd.f32 %v2028, %v2029
        %v2031 = vsel %vm1264, %v1907, 0.0
        %v2032 = vadd.f32 %v2030, %v2031
        %v2033 = vsel %vm1264, %v1912, 0.0
        %v2034 = vadd.f32 %v2032, %v2033
        %v2035 = vsel %vm1264, %v1917, 0.0
        %v2036 = vadd.f32 %v2034, %v2035
        %v2037 = vsel %vm1264, %v1922, 0.0
        %v2038 = vadd.f32 %v2036, %v2037
        %v2039 = vsel %vm1264, %v1927, 0.0
        %v2040 = vadd.f32 %v2038, %v2039
        %v2041 = vsel %vm1264, %v1932, 0.0
        %v2042 = vadd.f32 %v2040, %v2041
        %v2043 = vsel %vm1264, %v1937, 0.0
        %v2044 = vadd.f32 %v2042, %v2043
        %v2045 = vsel %vm1264, %v1942, 0.0
        %v2046 = vadd.f32 %v2044, %v2045
        %v2047 = vsel %vm1264, %v1947, 0.0
        %v2048 = vadd.f32 %v2046, %v2047
        %v2049 = vsel %vm1264, %v1952, 0.0
        %v2050 = vadd.f32 %v2048, %v2049
        %v2051 = vsel %vm1264, %v1957, 0.0
        %v2052 = vadd.f32 %v2050, %v2051
        %v2053 = vsel %vm1264, %v1962, 0.0
        %v2054 = vadd.f32 %v2052, %v2053
        %v2055 = vsel %vm1264, %v1967, 0.0
        %v2056 = vadd.f32 %v2054, %v2055
        %v2057 = vsel %vm1264, %v1972, 0.0
        %v2058 = vadd.f32 %v2056, %v2057
        %v2059 = vsel %vm1264, %v1977, 0.0
        %v2060 = vadd.f32 %v2058, %v2059
        %v2061 = vsel %vm1264, %v1982, 0.0
        %v2062 = vadd.f32 %v2060, %v2061
        %v2063 = vsel %vm1264, %v1987, 0.0
        %v2064 = vadd.f32 %v2062, %v2063
        %v2065 = vsel %vm1264, %v1992, 0.0
        %v2066 = vadd.f32 %v2064, %v2065
        %v2067 = vsel %vm1264, %v1997, 0.0
        %v2068 = vadd.f32 %v2066, %v2067
        %v2069 = vsel %vm1264, %v2002, 0.0
        %v2070 = vadd.f32 %v2068, %v2069
        %v2071 = vsel %vm1264, %v2007, 0.0
        %v2072 = vadd.f32 %v2070, %v2071
        %v2073 = vrot.slane %v2072, 4
        %v2074 = vadd.f32 %v2072, %v2073
        %v2075 = vrot.slane %v2074, 2
        %v2076 = vadd.f32 %v2074, %v2075
        %v2077 = vrot.slane %v2076, 1
        %v2078 = vadd.f32 %v2076, %v2077
        %v2079 = vmul.f32 %v2078, 0.00390625
        %v2080 = vsub.f32 %v1852, %v2079
        %v2081 = vsub.f32 %v1857, %v2079
        %v2082 = vsub.f32 %v1862, %v2079
        %v2083 = vsub.f32 %v1867, %v2079
        %v2084 = vsub.f32 %v1872, %v2079
        %v2085 = vsub.f32 %v1877, %v2079
        %v2086 = vsub.f32 %v1882, %v2079
        %v2087 = vsub.f32 %v1887, %v2079
        %v2088 = vsub.f32 %v1892, %v2079
        %v2089 = vsub.f32 %v1897, %v2079
        %v2090 = vsub.f32 %v1902, %v2079
        %v2091 = vsub.f32 %v1907, %v2079
        %v2092 = vsub.f32 %v1912, %v2079
        %v2093 = vsub.f32 %v1917, %v2079
        %v2094 = vsub.f32 %v1922, %v2079
        %v2095 = vsub.f32 %v1927, %v2079
        %v2096 = vsub.f32 %v1932, %v2079
        %v2097 = vsub.f32 %v1937, %v2079
        %v2098 = vsub.f32 %v1942, %v2079
        %v2099 = vsub.f32 %v1947, %v2079
        %v2100 = vsub.f32 %v1952, %v2079
        %v2101 = vsub.f32 %v1957, %v2079
        %v2102 = vsub.f32 %v1962, %v2079
        %v2103 = vsub.f32 %v1967, %v2079
        %v2104 = vsub.f32 %v1972, %v2079
        %v2105 = vsub.f32 %v1977, %v2079
        %v2106 = vsub.f32 %v1982, %v2079
        %v2107 = vsub.f32 %v1987, %v2079
        %v2108 = vsub.f32 %v1992, %v2079
        %v2109 = vsub.f32 %v1997, %v2079
        %v2110 = vsub.f32 %v2002, %v2079
        %v2111 = vsub.f32 %v2007, %v2079
        %v2112 = vmul.f32 %v2080, %v2080
        %v2113 = vmul.f32 %v2081, %v2081
        %v2114 = vmul.f32 %v2082, %v2082
        %v2115 = vmul.f32 %v2083, %v2083
        %v2116 = vmul.f32 %v2084, %v2084
        %v2117 = vmul.f32 %v2085, %v2085
        %v2118 = vmul.f32 %v2086, %v2086
        %v2119 = vmul.f32 %v2087, %v2087
        %v2120 = vmul.f32 %v2088, %v2088
        %v2121 = vmul.f32 %v2089, %v2089
        %v2122 = vmul.f32 %v2090, %v2090
        %v2123 = vmul.f32 %v2091, %v2091
        %v2124 = vmul.f32 %v2092, %v2092
        %v2125 = vmul.f32 %v2093, %v2093
        %v2126 = vmul.f32 %v2094, %v2094
        %v2127 = vmul.f32 %v2095, %v2095
        %v2128 = vmul.f32 %v2096, %v2096
        %v2129 = vmul.f32 %v2097, %v2097
        %v2130 = vmul.f32 %v2098, %v2098
        %v2131 = vmul.f32 %v2099, %v2099
        %v2132 = vmul.f32 %v2100, %v2100
        %v2133 = vmul.f32 %v2101, %v2101
        %v2134 = vmul.f32 %v2102, %v2102
        %v2135 = vmul.f32 %v2103, %v2103
        %v2136 = vmul.f32 %v2104, %v2104
        %v2137 = vmul.f32 %v2105, %v2105
        %v2138 = vmul.f32 %v2106, %v2106
        %v2139 = vmul.f32 %v2107, %v2107
        %v2140 = vmul.f32 %v2108, %v2108
        %v2141 = vmul.f32 %v2109, %v2109
        %v2142 = vmul.f32 %v2110, %v2110
        %v2143 = vmul.f32 %v2111, %v2111
        %v2144 = vsel %vm1264, %v2112, 0.0
        %v2145 = vsel %vm1264, %v2113, 0.0
        %v2146 = vadd.f32 %v2144, %v2145
        %v2147 = vsel %vm1264, %v2114, 0.0
        %v2148 = vadd.f32 %v2146, %v2147
        %v2149 = vsel %vm1264, %v2115, 0.0
        %v2150 = vadd.f32 %v2148, %v2149
        %v2151 = vsel %vm1264, %v2116, 0.0
        %v2152 = vadd.f32 %v2150, %v2151
        %v2153 = vsel %vm1264, %v2117, 0.0
        %v2154 = vadd.f32 %v2152, %v2153
        %v2155 = vsel %vm1264, %v2118, 0.0
        %v2156 = vadd.f32 %v2154, %v2155
        %v2157 = vsel %vm1264, %v2119, 0.0
        %v2158 = vadd.f32 %v2156, %v2157
        %v2159 = vsel %vm1264, %v2120, 0.0
        %v2160 = vadd.f32 %v2158, %v2159
        %v2161 = vsel %vm1264, %v2121, 0.0
        %v2162 = vadd.f32 %v2160, %v2161
        %v2163 = vsel %vm1264, %v2122, 0.0
        %v2164 = vadd.f32 %v2162, %v2163
        %v2165 = vsel %vm1264, %v2123, 0.0
        %v2166 = vadd.f32 %v2164, %v2165
        %v2167 = vsel %vm1264, %v2124, 0.0
        %v2168 = vadd.f32 %v2166, %v2167
        %v2169 = vsel %vm1264, %v2125, 0.0
        %v2170 = vadd.f32 %v2168, %v2169
        %v2171 = vsel %vm1264, %v2126, 0.0
        %v2172 = vadd.f32 %v2170, %v2171
        %v2173 = vsel %vm1264, %v2127, 0.0
        %v2174 = vadd.f32 %v2172, %v2173
        %v2175 = vsel %vm1264, %v2128, 0.0
        %v2176 = vadd.f32 %v2174, %v2175
        %v2177 = vsel %vm1264, %v2129, 0.0
        %v2178 = vadd.f32 %v2176, %v2177
        %v2179 = vsel %vm1264, %v2130, 0.0
        %v2180 = vadd.f32 %v2178, %v2179
        %v2181 = vsel %vm1264, %v2131, 0.0
        %v2182 = vadd.f32 %v2180, %v2181
        %v2183 = vsel %vm1264, %v2132, 0.0
        %v2184 = vadd.f32 %v2182, %v2183
        %v2185 = vsel %vm1264, %v2133, 0.0
        %v2186 = vadd.f32 %v2184, %v2185
        %v2187 = vsel %vm1264, %v2134, 0.0
        %v2188 = vadd.f32 %v2186, %v2187
        %v2189 = vsel %vm1264, %v2135, 0.0
        %v2190 = vadd.f32 %v2188, %v2189
        %v2191 = vsel %vm1264, %v2136, 0.0
        %v2192 = vadd.f32 %v2190, %v2191
        %v2193 = vsel %vm1264, %v2137, 0.0
        %v2194 = vadd.f32 %v2192, %v2193
        %v2195 = vsel %vm1264, %v2138, 0.0
        %v2196 = vadd.f32 %v2194, %v2195
        %v2197 = vsel %vm1264, %v2139, 0.0
        %v2198 = vadd.f32 %v2196, %v2197
        %v2199 = vsel %vm1264, %v2140, 0.0
        %v2200 = vadd.f32 %v2198, %v2199
        %v2201 = vsel %vm1264, %v2141, 0.0
        %v2202 = vadd.f32 %v2200, %v2201
        %v2203 = vsel %vm1264, %v2142, 0.0
        %v2204 = vadd.f32 %v2202, %v2203
        %v2205 = vsel %vm1264, %v2143, 0.0
        %v2206 = vadd.f32 %v2204, %v2205
        %v2207 = vrot.slane %v2206, 4
        %v2208 = vadd.f32 %v2206, %v2207
        %v2209 = vrot.slane %v2208, 2
        %v2210 = vadd.f32 %v2208, %v2209
        %v2211 = vrot.slane %v2210, 1
        %v2212 = vadd.f32 %v2210, %v2211
        %v2213 = vmul.f32 %v2212, 0.00390625
        %v2214 = vadd.f32 %v2213, 1e-05
        %v2215 = vrsqrt.pop %v2214
        %v2216 = vmul.f32 %v2080, %v2215
        %v2217 = vmul.f32 %v2081, %v2215
        %v2218 = vmul.f32 %v2082, %v2215
        %v2219 = vmul.f32 %v2083, %v2215
        %v2220 = vmul.f32 %v2084, %v2215
        %v2221 = vmul.f32 %v2085, %v2215
        %v2222 = vmul.f32 %v2086, %v2215
        %v2223 = vmul.f32 %v2087, %v2215
        %v2224 = vmul.f32 %v2088, %v2215
        %v2225 = vmul.f32 %v2089, %v2215
        %v2226 = vmul.f32 %v2090, %v2215
        %v2227 = vmul.f32 %v2091, %v2215
        %v2228 = vmul.f32 %v2092, %v2215
        %v2229 = vmul.f32 %v2093, %v2215
        %v2230 = vmul.f32 %v2094, %v2215
        %v2231 = vmul.f32 %v2095, %v2215
        %v2232 = vmul.f32 %v2096, %v2215
        %v2233 = vmul.f32 %v2097, %v2215
        %v2234 = vmul.f32 %v2098, %v2215
        %v2235 = vmul.f32 %v2099, %v2215
        %v2236 = vmul.f32 %v2100, %v2215
        %v2237 = vmul.f32 %v2101, %v2215
        %v2238 = vmul.f32 %v2102, %v2215
        %v2239 = vmul.f32 %v2103, %v2215
        %v2240 = vmul.f32 %v2104, %v2215
        %v2241 = vmul.f32 %v2105, %v2215
        %v2242 = vmul.f32 %v2106, %v2215
        %v2243 = vmul.f32 %v2107, %v2215
        %v2244 = vmul.f32 %v2108, %v2215
        %v2245 = vmul.f32 %v2109, %v2215
        %v2246 = vmul.f32 %v2110, %v2215
        %v2247 = vmul.f32 %v2111, %v2215
        %v2248 = vld [vmem:[%s3] sm:$0x1]
        %v2249 = vlaneseq
        %v2250 = vshrl.u32 %v2249, 7
        %v2251 = vsub.s32 0, %v2250
        %v2252 = vrot.slane %v2248, %v2251
        %v2253 = vmul.f32 %v2216, %v2252
        %v2254 = vmul.f32 %v2217, %v2252
        %v2255 = vmul.f32 %v2218, %v2252
        %v2256 = vmul.f32 %v2219, %v2252
        %v2257 = vmul.f32 %v2220, %v2252
        %v2258 = vmul.f32 %v2221, %v2252
        %v2259 = vmul.f32 %v2222, %v2252
        %v2260 = vmul.f32 %v2223, %v2252
        %v2261 = vmul.f32 %v2224, %v2252
        %v2262 = vmul.f32 %v2225, %v2252
        %v2263 = vmul.f32 %v2226, %v2252
        %v2264 = vmul.f32 %v2227, %v2252
        %v2265 = vmul.f32 %v2228, %v2252
        %v2266 = vmul.f32 %v2229, %v2252
        %v2267 = vmul.f32 %v2230, %v2252
        %v2268 = vmul.f32 %v2231, %v2252
        %v2269 = vmul.f32 %v2232, %v2252
        %v2270 = vmul.f32 %v2233, %v2252
        %v2271 = vmul.f32 %v2234, %v2252
        %v2272 = vmul.f32 %v2235, %v2252
        %v2273 = vmul.f32 %v2236, %v2252
        %v2274 = vmul.f32 %v2237, %v2252
        %v2275 = vmul.f32 %v2238, %v2252
        %v2276 = vmul.f32 %v2239, %v2252
        %v2277 = vmul.f32 %v2240, %v2252
        %v2278 = vmul.f32 %v2241, %v2252
        %v2279 = vmul.f32 %v2242, %v2252
        %v2280 = vmul.f32 %v2243, %v2252
        %v2281 = vmul.f32 %v2244, %v2252
        %v2282 = vmul.f32 %v2245, %v2252
        %v2283 = vmul.f32 %v2246, %v2252
        %v2284 = vmul.f32 %v2247, %v2252
        %v2285 = vld [vmem:[%s4] sm:$0x1]
        %v2286 = vlaneseq
        %v2287 = vshrl.u32 %v2286, 7
        %v2288 = vsub.s32 0, %v2287
        %v2289 = vrot.slane %v2285, %v2288
        %v2290 = vadd.f32 %v2253, %v2289
        %v2291 = vadd.f32 %v2254, %v2289
        %v2292 = vadd.f32 %v2255, %v2289
        %v2293 = vadd.f32 %v2256, %v2289
        %v2294 = vadd.f32 %v2257, %v2289
        %v2295 = vadd.f32 %v2258, %v2289
        %v2296 = vadd.f32 %v2259, %v2289
        %v2297 = vadd.f32 %v2260, %v2289
        %v2298 = vadd.f32 %v2261, %v2289
        %v2299 = vadd.f32 %v2262, %v2289
        %v2300 = vadd.f32 %v2263, %v2289
        %v2301 = vadd.f32 %v2264, %v2289
        %v2302 = vadd.f32 %v2265, %v2289
        %v2303 = vadd.f32 %v2266, %v2289
        %v2304 = vadd.f32 %v2267, %v2289
        %v2305 = vadd.f32 %v2268, %v2289
        %v2306 = vadd.f32 %v2269, %v2289
        %v2307 = vadd.f32 %v2270, %v2289
        %v2308 = vadd.f32 %v2271, %v2289
        %v2309 = vadd.f32 %v2272, %v2289
        %v2310 = vadd.f32 %v2273, %v2289
        %v2311 = vadd.f32 %v2274, %v2289
        %v2312 = vadd.f32 %v2275, %v2289
        %v2313 = vadd.f32 %v2276, %v2289
        %v2314 = vadd.f32 %v2277, %v2289
        %v2315 = vadd.f32 %v2278, %v2289
        %v2316 = vadd.f32 %v2279, %v2289
        %v2317 = vadd.f32 %v2280, %v2289
        %v2318 = vadd.f32 %v2281, %v2289
        %v2319 = vadd.f32 %v2282, %v2289
        %v2320 = vadd.f32 %v2283, %v2289
        %v2321 = vadd.f32 %v2284, %v2289
        %v2322 = vmax.f32 %v2290, 0.0
        %v2323 = vmax.f32 %v2291, 0.0
        %v2324 = vmax.f32 %v2292, 0.0
        %v2325 = vmax.f32 %v2293, 0.0
        %v2326 = vmax.f32 %v2294, 0.0
        %v2327 = vmax.f32 %v2295, 0.0
        %v2328 = vmax.f32 %v2296, 0.0
        %v2329 = vmax.f32 %v2297, 0.0
        %v2330 = vmax.f32 %v2298, 0.0
        %v2331 = vmax.f32 %v2299, 0.0
        %v2332 = vmax.f32 %v2300, 0.0
        %v2333 = vmax.f32 %v2301, 0.0
        %v2334 = vmax.f32 %v2302, 0.0
        %v2335 = vmax.f32 %v2303, 0.0
        %v2336 = vmax.f32 %v2304, 0.0
        %v2337 = vmax.f32 %v2305, 0.0
        %v2338 = vmax.f32 %v2306, 0.0
        %v2339 = vmax.f32 %v2307, 0.0
        %v2340 = vmax.f32 %v2308, 0.0
        %v2341 = vmax.f32 %v2309, 0.0
        %v2342 = vmax.f32 %v2310, 0.0
        %v2343 = vmax.f32 %v2311, 0.0
        %v2344 = vmax.f32 %v2312, 0.0
        %v2345 = vmax.f32 %v2313, 0.0
        %v2346 = vmax.f32 %v2314, 0.0
        %v2347 = vmax.f32 %v2315, 0.0
        %v2348 = vmax.f32 %v2316, 0.0
        %v2349 = vmax.f32 %v2317, 0.0
        %v2350 = vmax.f32 %v2318, 0.0
        %v2351 = vmax.f32 %v2319, 0.0
        %v2352 = vmax.f32 %v2320, 0.0
        %v2353 = vmax.f32 %v2321, 0.0
        %v2386 = vrot.slane %v2322, 7
        %v2387 = vrot.slane %v2323, 7
        %v2388 = vsel %vm341, %v2386, %v2387
        %v2389 = vrot.slane %v2324, 7
        %v2390 = vrot.slane %v2325, 7
        %v2391 = vsel %vm341, %v2389, %v2390
        %v2392 = vrot.slane %v2326, 7
        %v2393 = vrot.slane %v2327, 7
        %v2394 = vsel %vm341, %v2392, %v2393
        %v2395 = vrot.slane %v2328, 7
        %v2396 = vrot.slane %v2329, 7
        %v2397 = vsel %vm341, %v2395, %v2396
        %v2398 = vrot.slane %v2330, 7
        %v2399 = vrot.slane %v2331, 7
        %v2400 = vsel %vm341, %v2398, %v2399
        %v2401 = vrot.slane %v2332, 7
        %v2402 = vrot.slane %v2333, 7
        %v2403 = vsel %vm341, %v2401, %v2402
        %v2404 = vrot.slane %v2334, 7
        %v2405 = vrot.slane %v2335, 7
        %v2406 = vsel %vm341, %v2404, %v2405
        %v2407 = vrot.slane %v2336, 7
        %v2408 = vrot.slane %v2337, 7
        %v2409 = vsel %vm341, %v2407, %v2408
        %v2410 = vrot.slane %v2338, 7
        %v2411 = vrot.slane %v2339, 7
        %v2412 = vsel %vm341, %v2410, %v2411
        %v2413 = vrot.slane %v2340, 7
        %v2414 = vrot.slane %v2341, 7
        %v2415 = vsel %vm341, %v2413, %v2414
        %v2416 = vrot.slane %v2342, 7
        %v2417 = vrot.slane %v2343, 7
        %v2418 = vsel %vm341, %v2416, %v2417
        %v2419 = vrot.slane %v2344, 7
        %v2420 = vrot.slane %v2345, 7
        %v2421 = vsel %vm341, %v2419, %v2420
        %v2422 = vrot.slane %v2346, 7
        %v2423 = vrot.slane %v2347, 7
        %v2424 = vsel %vm341, %v2422, %v2423
        %v2425 = vrot.slane %v2348, 7
        %v2426 = vrot.slane %v2349, 7
        %v2427 = vsel %vm341, %v2425, %v2426
        %v2428 = vrot.slane %v2350, 7
        %v2429 = vrot.slane %v2351, 7
        %v2430 = vsel %vm341, %v2428, %v2429
        %v2431 = vrot.slane %v2352, 7
        %v2432 = vrot.slane %v2353, 7
        %v2433 = vsel %vm341, %v2431, %v2432
        %v2481 = vsel %vm341, 0.0, %v2386
        %v2482 = vsel %vm341, 0.0, %v2389
        %v2483 = vsel %vm341, 0.0, %v2392
        %v2484 = vsel %vm341, 0.0, %v2395
        %v2485 = vsel %vm341, 0.0, %v2398
        %v2486 = vsel %vm341, 0.0, %v2401
        %v2487 = vsel %vm341, 0.0, %v2404
        %v2488 = vsel %vm341, 0.0, %v2407
        %v2489 = vsel %vm341, 0.0, %v2410
        %v2490 = vsel %vm341, 0.0, %v2413
        %v2491 = vsel %vm341, 0.0, %v2416
        %v2492 = vsel %vm341, 0.0, %v2419
        %v2493 = vsel %vm341, 0.0, %v2422
        %v2494 = vsel %vm341, 0.0, %v2425
        %v2495 = vsel %vm341, 0.0, %v2428
        %v2496 = vsel %vm341, 0.0, %v2431
        %v2497 = vsel %vm341, %v2387, 0.0
        %v2498 = vsel %vm341, %v2390, 0.0
        %v2499 = vsel %vm341, %v2393, 0.0
        %v2500 = vsel %vm341, %v2396, 0.0
        %v2501 = vsel %vm341, %v2399, 0.0
        %v2502 = vsel %vm341, %v2402, 0.0
        %v2503 = vsel %vm341, %v2405, 0.0
        %v2504 = vsel %vm341, %v2408, 0.0
        %v2505 = vsel %vm341, %v2411, 0.0
        %v2506 = vsel %vm341, %v2414, 0.0
        %v2507 = vsel %vm341, %v2417, 0.0
        %v2508 = vsel %vm341, %v2420, 0.0
        %v2509 = vsel %vm341, %v2423, 0.0
        %v2510 = vsel %vm341, %v2426, 0.0
        %v2511 = vsel %vm341, %v2429, 0.0
        %v2512 = vsel %vm341, %v2432, 0.0
        %v2543 = vrot.slane %v2481, 1
        %v2544 = vrot.slane %v2388, 1
        %v2545 = vsel %vm500, %v2543, %v2544
        %v2546 = vrot.slane %v2497, 1
        %v2547 = vsel %vm500, %v2544, %v2546
        %v2548 = vrot.slane %v2482, 1
        %v2549 = vrot.slane %v2391, 1
        %v2550 = vsel %vm500, %v2548, %v2549
        %v2551 = vrot.slane %v2498, 1
        %v2552 = vsel %vm500, %v2549, %v2551
        %v2553 = vrot.slane %v2483, 1
        %v2554 = vrot.slane %v2394, 1
        %v2555 = vsel %vm500, %v2553, %v2554
        %v2556 = vrot.slane %v2499, 1
        %v2557 = vsel %vm500, %v2554, %v2556
        %v2558 = vrot.slane %v2484, 1
        %v2559 = vrot.slane %v2397, 1
        %v2560 = vsel %vm500, %v2558, %v2559
        %v2561 = vrot.slane %v2500, 1
        %v2562 = vsel %vm500, %v2559, %v2561
        %v2563 = vrot.slane %v2485, 1
        %v2564 = vrot.slane %v2400, 1
        %v2565 = vsel %vm500, %v2563, %v2564
        %v2566 = vrot.slane %v2501, 1
        %v2567 = vsel %vm500, %v2564, %v2566
        %v2568 = vrot.slane %v2486, 1
        %v2569 = vrot.slane %v2403, 1
        %v2570 = vsel %vm500, %v2568, %v2569
        %v2571 = vrot.slane %v2502, 1
        %v2572 = vsel %vm500, %v2569, %v2571
        %v2573 = vrot.slane %v2487, 1
        %v2574 = vrot.slane %v2406, 1
        %v2575 = vsel %vm500, %v2573, %v2574
        %v2576 = vrot.slane %v2503, 1
        %v2577 = vsel %vm500, %v2574, %v2576
        %v2578 = vrot.slane %v2488, 1
        %v2579 = vrot.slane %v2409, 1
        %v2580 = vsel %vm500, %v2578, %v2579
        %v2581 = vrot.slane %v2504, 1
        %v2582 = vsel %vm500, %v2579, %v2581
        %v2583 = vrot.slane %v2489, 1
        %v2584 = vrot.slane %v2412, 1
        %v2585 = vsel %vm500, %v2583, %v2584
        %v2586 = vrot.slane %v2505, 1
        %v2587 = vsel %vm500, %v2584, %v2586
        %v2588 = vrot.slane %v2490, 1
        %v2589 = vrot.slane %v2415, 1
        %v2590 = vsel %vm500, %v2588, %v2589
        %v2591 = vrot.slane %v2506, 1
        %v2592 = vsel %vm500, %v2589, %v2591
        %v2593 = vrot.slane %v2491, 1
        %v2594 = vrot.slane %v2418, 1
        %v2595 = vsel %vm500, %v2593, %v2594
        %v2596 = vrot.slane %v2507, 1
        %v2597 = vsel %vm500, %v2594, %v2596
        %v2598 = vrot.slane %v2492, 1
        %v2599 = vrot.slane %v2421, 1
        %v2600 = vsel %vm500, %v2598, %v2599
        %v2601 = vrot.slane %v2508, 1
        %v2602 = vsel %vm500, %v2599, %v2601
        %v2603 = vrot.slane %v2493, 1
        %v2604 = vrot.slane %v2424, 1
        %v2605 = vsel %vm500, %v2603, %v2604
        %v2606 = vrot.slane %v2509, 1
        %v2607 = vsel %vm500, %v2604, %v2606
        %v2608 = vrot.slane %v2494, 1
        %v2609 = vrot.slane %v2427, 1
        %v2610 = vsel %vm500, %v2608, %v2609
        %v2611 = vrot.slane %v2510, 1
        %v2612 = vsel %vm500, %v2609, %v2611
        %v2613 = vrot.slane %v2495, 1
        %v2614 = vrot.slane %v2430, 1
        %v2615 = vsel %vm500, %v2613, %v2614
        %v2616 = vrot.slane %v2511, 1
        %v2617 = vsel %vm500, %v2614, %v2616
        %2618 = vrot.lane.b32.xlu0 %v2545, 32
        %v2619 = vpop.permute.xlu0 %2618
        %2620 = vrot.lane.b32.xlu0 %v2547, 32
        %v2621 = vpop.permute.xlu0 %2620
        %2622 = vrot.lane.b32.xlu0 %v2550, 32
        %v2623 = vpop.permute.xlu0 %2622
        %2624 = vrot.lane.b32.xlu0 %v2552, 32
        %v2625 = vpop.permute.xlu0 %2624
        %2626 = vrot.lane.b32.xlu0 %v2555, 32
        %v2627 = vpop.permute.xlu0 %2626
        %2628 = vrot.lane.b32.xlu0 %v2557, 32
        %v2629 = vpop.permute.xlu0 %2628
        %2630 = vrot.lane.b32.xlu0 %v2560, 32
        %v2631 = vpop.permute.xlu0 %2630
        %2632 = vrot.lane.b32.xlu0 %v2562, 32
        %v2633 = vpop.permute.xlu0 %2632
        %2634 = vrot.lane.b32.xlu0 %v2565, 32
        %v2635 = vpop.permute.xlu0 %2634
        %2636 = vrot.lane.b32.xlu0 %v2567, 32
        %v2637 = vpop.permute.xlu0 %2636
        %2638 = vrot.lane.b32.xlu0 %v2570, 32
        %v2639 = vpop.permute.xlu0 %2638
        %2640 = vrot.lane.b32.xlu0 %v2572, 32
        %v2641 = vpop.permute.xlu0 %2640
        %2642 = vrot.lane.b32.xlu0 %v2575, 32
        %v2643 = vpop.permute.xlu0 %2642
        %2644 = vrot.lane.b32.xlu0 %v2577, 32
        %v2645 = vpop.permute.xlu0 %2644
        %2646 = vrot.lane.b32.xlu0 %v2580, 32
        %v2647 = vpop.permute.xlu0 %2646
        %2648 = vrot.lane.b32.xlu0 %v2582, 32
        %v2649 = vpop.permute.xlu0 %2648
        %2650 = vrot.lane.b32.xlu0 %v2585, 32
        %v2651 = vpop.permute.xlu0 %2650
        %2652 = vrot.lane.b32.xlu0 %v2587, 32
        %v2653 = vpop.permute.xlu0 %2652
        %2654 = vrot.lane.b32.xlu0 %v2590, 32
        %v2655 = vpop.permute.xlu0 %2654
        %2656 = vrot.lane.b32.xlu0 %v2592, 32
        %v2657 = vpop.permute.xlu0 %2656
        %2658 = vrot.lane.b32.xlu0 %v2595, 32
        %v2659 = vpop.permute.xlu0 %2658
        %2660 = vrot.lane.b32.xlu0 %v2597, 32
        %v2661 = vpop.permute.xlu0 %2660
        %2662 = vrot.lane.b32.xlu0 %v2600, 32
        %v2663 = vpop.permute.xlu0 %2662
        %2664 = vrot.lane.b32.xlu0 %v2602, 32
        %v2665 = vpop.permute.xlu0 %2664
        %2666 = vrot.lane.b32.xlu0 %v2605, 32
        %v2667 = vpop.permute.xlu0 %2666
        %2668 = vrot.lane.b32.xlu0 %v2607, 32
        %v2669 = vpop.permute.xlu0 %2668
        %2670 = vrot.lane.b32.xlu0 %v2610, 32
        %v2671 = vpop.permute.xlu0 %2670
        %2672 = vrot.lane.b32.xlu0 %v2612, 32
        %v2673 = vpop.permute.xlu0 %2672
        %2674 = vrot.lane.b32.xlu0 %v2615, 32
        %v2675 = vpop.permute.xlu0 %2674
        %2676 = vrot.lane.b32.xlu0 %v2617, 32
        %v2677 = vpop.permute.xlu0 %2676
        %v2708 = vrot.slane %v2481, 2
        %v2709 = vrot.slane %v2388, 2
        %v2710 = vsel %vm671, %v2708, %v2709
        %v2711 = vrot.slane %v2497, 2
        %v2712 = vsel %vm671, %v2709, %v2711
        %v2713 = vrot.slane %v2482, 2
        %v2714 = vrot.slane %v2391, 2
        %v2715 = vsel %vm671, %v2713, %v2714
        %v2716 = vrot.slane %v2498, 2
        %v2717 = vsel %vm671, %v2714, %v2716
        %v2718 = vrot.slane %v2483, 2
        %v2719 = vrot.slane %v2394, 2
        %v2720 = vsel %vm671, %v2718, %v2719
        %v2721 = vrot.slane %v2499, 2
        %v2722 = vsel %vm671, %v2719, %v2721
        %v2723 = vrot.slane %v2484, 2
        %v2724 = vrot.slane %v2397, 2
        %v2725 = vsel %vm671, %v2723, %v2724
        %v2726 = vrot.slane %v2500, 2
        %v2727 = vsel %vm671, %v2724, %v2726
        %v2728 = vrot.slane %v2485, 2
        %v2729 = vrot.slane %v2400, 2
        %v2730 = vsel %vm671, %v2728, %v2729
        %v2731 = vrot.slane %v2501, 2
        %v2732 = vsel %vm671, %v2729, %v2731
        %v2733 = vrot.slane %v2486, 2
        %v2734 = vrot.slane %v2403, 2
        %v2735 = vsel %vm671, %v2733, %v2734
        %v2736 = vrot.slane %v2502, 2
        %v2737 = vsel %vm671, %v2734, %v2736
        %v2738 = vrot.slane %v2487, 2
        %v2739 = vrot.slane %v2406, 2
        %v2740 = vsel %vm671, %v2738, %v2739
        %v2741 = vrot.slane %v2503, 2
        %v2742 = vsel %vm671, %v2739, %v2741
        %v2743 = vrot.slane %v2488, 2
        %v2744 = vrot.slane %v2409, 2
        %v2745 = vsel %vm671, %v2743, %v2744
        %v2746 = vrot.slane %v2504, 2
        %v2747 = vsel %vm671, %v2744, %v2746
        %v2748 = vrot.slane %v2489, 2
        %v2749 = vrot.slane %v2412, 2
        %v2750 = vsel %vm671, %v2748, %v2749
        %v2751 = vrot.slane %v2505, 2
        %v2752 = vsel %vm671, %v2749, %v2751
        %v2753 = vrot.slane %v2490, 2
        %v2754 = vrot.slane %v2415, 2
        %v2755 = vsel %vm671, %v2753, %v2754
        %v2756 = vrot.slane %v2506, 2
        %v2757 = vsel %vm671, %v2754, %v2756
        %v2758 = vrot.slane %v2491, 2
        %v2759 = vrot.slane %v2418, 2
        %v2760 = vsel %vm671, %v2758, %v2759
        %v2761 = vrot.slane %v2507, 2
        %v2762 = vsel %vm671, %v2759, %v2761
        %v2763 = vrot.slane %v2492, 2
        %v2764 = vrot.slane %v2421, 2
        %v2765 = vsel %vm671, %v2763, %v2764
        %v2766 = vrot.slane %v2508, 2
        %v2767 = vsel %vm671, %v2764, %v2766
        %v2768 = vrot.slane %v2493, 2
        %v2769 = vrot.slane %v2424, 2
        %v2770 = vsel %vm671, %v2768, %v2769
        %v2771 = vrot.slane %v2509, 2
        %v2772 = vsel %vm671, %v2769, %v2771
        %v2773 = vrot.slane %v2494, 2
        %v2774 = vrot.slane %v2427, 2
        %v2775 = vsel %vm671, %v2773, %v2774
        %v2776 = vrot.slane %v2510, 2
        %v2777 = vsel %vm671, %v2774, %v2776
        %v2778 = vrot.slane %v2495, 2
        %v2779 = vrot.slane %v2430, 2
        %v2780 = vsel %vm671, %v2778, %v2779
        %v2781 = vrot.slane %v2511, 2
        %v2782 = vsel %vm671, %v2779, %v2781
        %2783 = vrot.lane.b32.xlu0 %v2710, 64
        %v2784 = vpop.permute.xlu0 %2783
        %2785 = vrot.lane.b32.xlu0 %v2712, 64
        %v2786 = vpop.permute.xlu0 %2785
        %2787 = vrot.lane.b32.xlu0 %v2715, 64
        %v2788 = vpop.permute.xlu0 %2787
        %2789 = vrot.lane.b32.xlu0 %v2717, 64
        %v2790 = vpop.permute.xlu0 %2789
        %2791 = vrot.lane.b32.xlu0 %v2720, 64
        %v2792 = vpop.permute.xlu0 %2791
        %2793 = vrot.lane.b32.xlu0 %v2722, 64
        %v2794 = vpop.permute.xlu0 %2793
        %2795 = vrot.lane.b32.xlu0 %v2725, 64
        %v2796 = vpop.permute.xlu0 %2795
        %2797 = vrot.lane.b32.xlu0 %v2727, 64
        %v2798 = vpop.permute.xlu0 %2797
        %2799 = vrot.lane.b32.xlu0 %v2730, 64
        %v2800 = vpop.permute.xlu0 %2799
        %2801 = vrot.lane.b32.xlu0 %v2732, 64
        %v2802 = vpop.permute.xlu0 %2801
        %2803 = vrot.lane.b32.xlu0 %v2735, 64
        %v2804 = vpop.permute.xlu0 %2803
        %2805 = vrot.lane.b32.xlu0 %v2737, 64
        %v2806 = vpop.permute.xlu0 %2805
        %2807 = vrot.lane.b32.xlu0 %v2740, 64
        %v2808 = vpop.permute.xlu0 %2807
        %2809 = vrot.lane.b32.xlu0 %v2742, 64
        %v2810 = vpop.permute.xlu0 %2809
        %2811 = vrot.lane.b32.xlu0 %v2745, 64
        %v2812 = vpop.permute.xlu0 %2811
        %2813 = vrot.lane.b32.xlu0 %v2747, 64
        %v2814 = vpop.permute.xlu0 %2813
        %2815 = vrot.lane.b32.xlu0 %v2750, 64
        %v2816 = vpop.permute.xlu0 %2815
        %2817 = vrot.lane.b32.xlu0 %v2752, 64
        %v2818 = vpop.permute.xlu0 %2817
        %2819 = vrot.lane.b32.xlu0 %v2755, 64
        %v2820 = vpop.permute.xlu0 %2819
        %2821 = vrot.lane.b32.xlu0 %v2757, 64
        %v2822 = vpop.permute.xlu0 %2821
        %2823 = vrot.lane.b32.xlu0 %v2760, 64
        %v2824 = vpop.permute.xlu0 %2823
        %2825 = vrot.lane.b32.xlu0 %v2762, 64
        %v2826 = vpop.permute.xlu0 %2825
        %2827 = vrot.lane.b32.xlu0 %v2765, 64
        %v2828 = vpop.permute.xlu0 %2827
        %2829 = vrot.lane.b32.xlu0 %v2767, 64
        %v2830 = vpop.permute.xlu0 %2829
        %2831 = vrot.lane.b32.xlu0 %v2770, 64
        %v2832 = vpop.permute.xlu0 %2831
        %2833 = vrot.lane.b32.xlu0 %v2772, 64
        %v2834 = vpop.permute.xlu0 %2833
        %2835 = vrot.lane.b32.xlu0 %v2775, 64
        %v2836 = vpop.permute.xlu0 %2835
        %2837 = vrot.lane.b32.xlu0 %v2777, 64
        %v2838 = vpop.permute.xlu0 %2837
        %2839 = vrot.lane.b32.xlu0 %v2780, 64
        %v2840 = vpop.permute.xlu0 %2839
        %2841 = vrot.lane.b32.xlu0 %v2782, 64
        %v2842 = vpop.permute.xlu0 %2841
        %2874 = vrot.lane.b32.xlu0 %v2481, 96
        %v2875 = vpop.permute.xlu0 %2874
        %2876 = vrot.lane.b32.xlu0 %v2388, 96
        %v2877 = vpop.permute.xlu0 %2876
        %2878 = vrot.lane.b32.xlu0 %v2482, 96
        %v2879 = vpop.permute.xlu0 %2878
        %2880 = vrot.lane.b32.xlu0 %v2391, 96
        %v2881 = vpop.permute.xlu0 %2880
        %2882 = vrot.lane.b32.xlu0 %v2483, 96
        %v2883 = vpop.permute.xlu0 %2882
        %2884 = vrot.lane.b32.xlu0 %v2394, 96
        %v2885 = vpop.permute.xlu0 %2884
        %2886 = vrot.lane.b32.xlu0 %v2484, 96
        %v2887 = vpop.permute.xlu0 %2886
        %2888 = vrot.lane.b32.xlu0 %v2397, 96
        %v2889 = vpop.permute.xlu0 %2888
        %2890 = vrot.lane.b32.xlu0 %v2485, 96
        %v2891 = vpop.permute.xlu0 %2890
        %2892 = vrot.lane.b32.xlu0 %v2400, 96
        %v2893 = vpop.permute.xlu0 %2892
        %2894 = vrot.lane.b32.xlu0 %v2486, 96
        %v2895 = vpop.permute.xlu0 %2894
        %2896 = vrot.lane.b32.xlu0 %v2403, 96
        %v2897 = vpop.permute.xlu0 %2896
        %2898 = vrot.lane.b32.xlu0 %v2487, 96
        %v2899 = vpop.permute.xlu0 %2898
        %2900 = vrot.lane.b32.xlu0 %v2406, 96
        %v2901 = vpop.permute.xlu0 %2900
        %2902 = vrot.lane.b32.xlu0 %v2488, 96
        %v2903 = vpop.permute.xlu0 %2902
        %2904 = vrot.lane.b32.xlu0 %v2409, 96
        %v2905 = vpop.permute.xlu0 %2904
        %2906 = vrot.lane.b32.xlu0 %v2489, 96
        %v2907 = vpop.permute.xlu0 %2906
        %2908 = vrot.lane.b32.xlu0 %v2412, 96
        %v2909 = vpop.permute.xlu0 %2908
        %2910 = vrot.lane.b32.xlu0 %v2490, 96
        %v2911 = vpop.permute.xlu0 %2910
        %2912 = vrot.lane.b32.xlu0 %v2415, 96
        %v2913 = vpop.permute.xlu0 %2912
        %2914 = vrot.lane.b32.xlu0 %v2491, 96
        %v2915 = vpop.permute.xlu0 %2914
        %2916 = vrot.lane.b32.xlu0 %v2418, 96
        %v2917 = vpop.permute.xlu0 %2916
        %2918 = vrot.lane.b32.xlu0 %v2492, 96
        %v2919 = vpop.permute.xlu0 %2918
        %2920 = vrot.lane.b32.xlu0 %v2421, 96
        %v2921 = vpop.permute.xlu0 %2920
        %2922 = vrot.lane.b32.xlu0 %v2493, 96
        %v2923 = vpop.permute.xlu0 %2922
        %2924 = vrot.lane.b32.xlu0 %v2424, 96
        %v2925 = vpop.permute.xlu0 %2924
        %2926 = vrot.lane.b32.xlu0 %v2494, 96
        %v2927 = vpop.permute.xlu0 %2926
        %2928 = vrot.lane.b32.xlu0 %v2427, 96
        %v2929 = vpop.permute.xlu0 %2928
        %2930 = vrot.lane.b32.xlu0 %v2495, 96
        %v2931 = vpop.permute.xlu0 %2930
        %2932 = vrot.lane.b32.xlu0 %v2430, 96
        %v2933 = vpop.permute.xlu0 %2932
        %2934 = vrot.lane.b32.xlu0 %v2496, 96
        %v2935 = vpop.permute.xlu0 %2934
        %2936 = vrot.lane.b32.xlu0 %v2433, 96
        %v2937 = vpop.permute.xlu0 %2936
        %v2971 = vrot.slane %v2496, 1
        %v2972 = vrot.slane %v2433, 1
        %v2973 = vsel %vm500, %v2971, %v2972
        %v2974 = vrot.slane %v2512, 1
        %v2975 = vsel %vm500, %v2972, %v2974
        %v3008 = vrot.slane %v2496, 2
        %v3009 = vrot.slane %v2433, 2
        %v3010 = vsel %vm671, %v3008, %v3009
        %v3011 = vrot.slane %v2512, 2
        %v3012 = vsel %vm671, %v3009, %v3011
        %3013 = vrot.lane.b32.xlu0 %v2710, 32
        %v3014 = vpop.permute.xlu0 %3013
        %3015 = vrot.lane.b32.xlu0 %v2712, 32
        %v3016 = vpop.permute.xlu0 %3015
        %3017 = vrot.lane.b32.xlu0 %v2715, 32
        %v3018 = vpop.permute.xlu0 %3017
        %3019 = vrot.lane.b32.xlu0 %v2717, 32
        %v3020 = vpop.permute.xlu0 %3019
        %3021 = vrot.lane.b32.xlu0 %v2720, 32
        %v3022 = vpop.permute.xlu0 %3021
        %3023 = vrot.lane.b32.xlu0 %v2722, 32
        %v3024 = vpop.permute.xlu0 %3023
        %3025 = vrot.lane.b32.xlu0 %v2725, 32
        %v3026 = vpop.permute.xlu0 %3025
        %3027 = vrot.lane.b32.xlu0 %v2727, 32
        %v3028 = vpop.permute.xlu0 %3027
        %3029 = vrot.lane.b32.xlu0 %v2730, 32
        %v3030 = vpop.permute.xlu0 %3029
        %3031 = vrot.lane.b32.xlu0 %v2732, 32
        %v3032 = vpop.permute.xlu0 %3031
        %3033 = vrot.lane.b32.xlu0 %v2735, 32
        %v3034 = vpop.permute.xlu0 %3033
        %3035 = vrot.lane.b32.xlu0 %v2737, 32
        %v3036 = vpop.permute.xlu0 %3035
        %3037 = vrot.lane.b32.xlu0 %v2740, 32
        %v3038 = vpop.permute.xlu0 %3037
        %3039 = vrot.lane.b32.xlu0 %v2742, 32
        %v3040 = vpop.permute.xlu0 %3039
        %3041 = vrot.lane.b32.xlu0 %v2745, 32
        %v3042 = vpop.permute.xlu0 %3041
        %3043 = vrot.lane.b32.xlu0 %v2747, 32
        %v3044 = vpop.permute.xlu0 %3043
        %3045 = vrot.lane.b32.xlu0 %v2750, 32
        %v3046 = vpop.permute.xlu0 %3045
        %3047 = vrot.lane.b32.xlu0 %v2752, 32
        %v3048 = vpop.permute.xlu0 %3047
        %3049 = vrot.lane.b32.xlu0 %v2755, 32
        %v3050 = vpop.permute.xlu0 %3049
        %3051 = vrot.lane.b32.xlu0 %v2757, 32
        %v3052 = vpop.permute.xlu0 %3051
        %3053 = vrot.lane.b32.xlu0 %v2760, 32
        %v3054 = vpop.permute.xlu0 %3053
        %3055 = vrot.lane.b32.xlu0 %v2762, 32
        %v3056 = vpop.permute.xlu0 %3055
        %3057 = vrot.lane.b32.xlu0 %v2765, 32
        %v3058 = vpop.permute.xlu0 %3057
        %3059 = vrot.lane.b32.xlu0 %v2767, 32
        %v3060 = vpop.permute.xlu0 %3059
        %3061 = vrot.lane.b32.xlu0 %v2770, 32
        %v3062 = vpop.permute.xlu0 %3061
        %3063 = vrot.lane.b32.xlu0 %v2772, 32
        %v3064 = vpop.permute.xlu0 %3063
        %3065 = vrot.lane.b32.xlu0 %v2775, 32
        %v3066 = vpop.permute.xlu0 %3065
        %3067 = vrot.lane.b32.xlu0 %v2777, 32
        %v3068 = vpop.permute.xlu0 %3067
        %3069 = vrot.lane.b32.xlu0 %v2780, 32
        %v3070 = vpop.permute.xlu0 %3069
        %3071 = vrot.lane.b32.xlu0 %v2782, 32
        %v3072 = vpop.permute.xlu0 %3071
        %3073 = vrot.lane.b32.xlu0 %v3010, 32
        %v3074 = vpop.permute.xlu0 %3073
        %3075 = vrot.lane.b32.xlu0 %v3012, 32
        %v3076 = vpop.permute.xlu0 %3075
        %3109 = vrot.lane.b32.xlu0 %v2482, 64
        %v3110 = vpop.permute.xlu0 %3109
        %3111 = vrot.lane.b32.xlu0 %v2391, 64
        %v3112 = vpop.permute.xlu0 %3111
        %3113 = vrot.lane.b32.xlu0 %v2483, 64
        %v3114 = vpop.permute.xlu0 %3113
        %3115 = vrot.lane.b32.xlu0 %v2394, 64
        %v3116 = vpop.permute.xlu0 %3115
        %3117 = vrot.lane.b32.xlu0 %v2484, 64
        %v3118 = vpop.permute.xlu0 %3117
        %3119 = vrot.lane.b32.xlu0 %v2397, 64
        %v3120 = vpop.permute.xlu0 %3119
        %3121 = vrot.lane.b32.xlu0 %v2485, 64
        %v3122 = vpop.permute.xlu0 %3121
        %3123 = vrot.lane.b32.xlu0 %v2400, 64
        %v3124 = vpop.permute.xlu0 %3123
        %3125 = vrot.lane.b32.xlu0 %v2486, 64
        %v3126 = vpop.permute.xlu0 %3125
        %3127 = vrot.lane.b32.xlu0 %v2403, 64
        %v3128 = vpop.permute.xlu0 %3127
        %3129 = vrot.lane.b32.xlu0 %v2487, 64
        %v3130 = vpop.permute.xlu0 %3129
        %3131 = vrot.lane.b32.xlu0 %v2406, 64
        %v3132 = vpop.permute.xlu0 %3131
        %3133 = vrot.lane.b32.xlu0 %v2488, 64
        %v3134 = vpop.permute.xlu0 %3133
        %3135 = vrot.lane.b32.xlu0 %v2409, 64
        %v3136 = vpop.permute.xlu0 %3135
        %3137 = vrot.lane.b32.xlu0 %v2489, 64
        %v3138 = vpop.permute.xlu0 %3137
        %3139 = vrot.lane.b32.xlu0 %v2412, 64
        %v3140 = vpop.permute.xlu0 %3139
        %3141 = vrot.lane.b32.xlu0 %v2490, 64
        %v3142 = vpop.permute.xlu0 %3141
        %3143 = vrot.lane.b32.xlu0 %v2415, 64
        %v3144 = vpop.permute.xlu0 %3143
        %3145 = vrot.lane.b32.xlu0 %v2491, 64
        %v3146 = vpop.permute.xlu0 %3145
        %3147 = vrot.lane.b32.xlu0 %v2418, 64
        %v3148 = vpop.permute.xlu0 %3147
        %3149 = vrot.lane.b32.xlu0 %v2492, 64
        %v3150 = vpop.permute.xlu0 %3149
        %3151 = vrot.lane.b32.xlu0 %v2421, 64
        %v3152 = vpop.permute.xlu0 %3151
        %3153 = vrot.lane.b32.xlu0 %v2493, 64
        %v3154 = vpop.permute.xlu0 %3153
        %3155 = vrot.lane.b32.xlu0 %v2424, 64
        %v3156 = vpop.permute.xlu0 %3155
        %3157 = vrot.lane.b32.xlu0 %v2494, 64
        %v3158 = vpop.permute.xlu0 %3157
        %3159 = vrot.lane.b32.xlu0 %v2427, 64
        %v3160 = vpop.permute.xlu0 %3159
        %3161 = vrot.lane.b32.xlu0 %v2495, 64
        %v3162 = vpop.permute.xlu0 %3161
        %3163 = vrot.lane.b32.xlu0 %v2430, 64
        %v3164 = vpop.permute.xlu0 %3163
        %3165 = vrot.lane.b32.xlu0 %v2496, 64
        %v3166 = vpop.permute.xlu0 %3165
        %3167 = vrot.lane.b32.xlu0 %v2433, 64
        %v3168 = vpop.permute.xlu0 %3167
        %3199 = vrot.lane.b32.xlu0 %v2550, 96
        %v3200 = vpop.permute.xlu0 %3199
        %3201 = vrot.lane.b32.xlu0 %v2552, 96
        %v3202 = vpop.permute.xlu0 %3201
        %3203 = vrot.lane.b32.xlu0 %v2555, 96
        %v3204 = vpop.permute.xlu0 %3203
        %3205 = vrot.lane.b32.xlu0 %v2557, 96
        %v3206 = vpop.permute.xlu0 %3205
        %3207 = vrot.lane.b32.xlu0 %v2560, 96
        %v3208 = vpop.permute.xlu0 %3207
        %3209 = vrot.lane.b32.xlu0 %v2562, 96
        %v3210 = vpop.permute.xlu0 %3209
        %3211 = vrot.lane.b32.xlu0 %v2565, 96
        %v3212 = vpop.permute.xlu0 %3211
        %3213 = vrot.lane.b32.xlu0 %v2567, 96
        %v3214 = vpop.permute.xlu0 %3213
        %3215 = vrot.lane.b32.xlu0 %v2570, 96
        %v3216 = vpop.permute.xlu0 %3215
        %3217 = vrot.lane.b32.xlu0 %v2572, 96
        %v3218 = vpop.permute.xlu0 %3217
        %3219 = vrot.lane.b32.xlu0 %v2575, 96
        %v3220 = vpop.permute.xlu0 %3219
        %3221 = vrot.lane.b32.xlu0 %v2577, 96
        %v3222 = vpop.permute.xlu0 %3221
        %3223 = vrot.lane.b32.xlu0 %v2580, 96
        %v3224 = vpop.permute.xlu0 %3223
        %3225 = vrot.lane.b32.xlu0 %v2582, 96
        %v3226 = vpop.permute.xlu0 %3225
        %3227 = vrot.lane.b32.xlu0 %v2585, 96
        %v3228 = vpop.permute.xlu0 %3227
        %3229 = vrot.lane.b32.xlu0 %v2587, 96
        %v3230 = vpop.permute.xlu0 %3229
        %3231 = vrot.lane.b32.xlu0 %v2590, 96
        %v3232 = vpop.permute.xlu0 %3231
        %3233 = vrot.lane.b32.xlu0 %v2592, 96
        %v3234 = vpop.permute.xlu0 %3233
        %3235 = vrot.lane.b32.xlu0 %v2595, 96
        %v3236 = vpop.permute.xlu0 %3235
        %3237 = vrot.lane.b32.xlu0 %v2597, 96
        %v3238 = vpop.permute.xlu0 %3237
        %3239 = vrot.lane.b32.xlu0 %v2600, 96
        %v3240 = vpop.permute.xlu0 %3239
        %3241 = vrot.lane.b32.xlu0 %v2602, 96
        %v3242 = vpop.permute.xlu0 %3241
        %3243 = vrot.lane.b32.xlu0 %v2605, 96
        %v3244 = vpop.permute.xlu0 %3243
        %3245 = vrot.lane.b32.xlu0 %v2607, 96
        %v3246 = vpop.permute.xlu0 %3245
        %3247 = vrot.lane.b32.xlu0 %v2610, 96
        %v3248 = vpop.permute.xlu0 %3247
        %3249 = vrot.lane.b32.xlu0 %v2612, 96
        %v3250 = vpop.permute.xlu0 %3249
        %3251 = vrot.lane.b32.xlu0 %v2615, 96
        %v3252 = vpop.permute.xlu0 %3251
        %3253 = vrot.lane.b32.xlu0 %v2617, 96
        %v3254 = vpop.permute.xlu0 %3253
        %3255 = vrot.lane.b32.xlu0 %v2973, 96
        %v3256 = vpop.permute.xlu0 %3255
        %3257 = vrot.lane.b32.xlu0 %v2975, 96
        %v3258 = vpop.permute.xlu0 %3257
        %v3289 = vsel %vm1264, %v2481, %v2619
        %v3290 = vsel %vm1264, %v2388, %v2621
        %v3291 = vsel %vm1264, %v2482, %v2623
        %v3292 = vsel %vm1264, %v2391, %v2625
        %v3293 = vsel %vm1264, %v2483, %v2627
        %v3294 = vsel %vm1264, %v2394, %v2629
        %v3295 = vsel %vm1264, %v2484, %v2631
        %v3296 = vsel %vm1264, %v2397, %v2633
        %v3297 = vsel %vm1264, %v2485, %v2635
        %v3298 = vsel %vm1264, %v2400, %v2637
        %v3299 = vsel %vm1264, %v2486, %v2639
        %v3300 = vsel %vm1264, %v2403, %v2641
        %v3301 = vsel %vm1264, %v2487, %v2643
        %v3302 = vsel %vm1264, %v2406, %v2645
        %v3303 = vsel %vm1264, %v2488, %v2647
        %v3304 = vsel %vm1264, %v2409, %v2649
        %v3305 = vsel %vm1264, %v2489, %v2651
        %v3306 = vsel %vm1264, %v2412, %v2653
        %v3307 = vsel %vm1264, %v2490, %v2655
        %v3308 = vsel %vm1264, %v2415, %v2657
        %v3309 = vsel %vm1264, %v2491, %v2659
        %v3310 = vsel %vm1264, %v2418, %v2661
        %v3311 = vsel %vm1264, %v2492, %v2663
        %v3312 = vsel %vm1264, %v2421, %v2665
        %v3313 = vsel %vm1264, %v2493, %v2667
        %v3314 = vsel %vm1264, %v2424, %v2669
        %v3315 = vsel %vm1264, %v2494, %v2671
        %v3316 = vsel %vm1264, %v2427, %v2673
        %v3317 = vsel %vm1264, %v2495, %v2675
        %v3318 = vsel %vm1264, %v2430, %v2677
        %v3319 = vsel %vm1296, %v3289, %v2784
        %v3320 = vsel %vm1296, %v3290, %v2786
        %v3321 = vsel %vm1296, %v3291, %v2788
        %v3322 = vsel %vm1296, %v3292, %v2790
        %v3323 = vsel %vm1296, %v3293, %v2792
        %v3324 = vsel %vm1296, %v3294, %v2794
        %v3325 = vsel %vm1296, %v3295, %v2796
        %v3326 = vsel %vm1296, %v3296, %v2798
        %v3327 = vsel %vm1296, %v3297, %v2800
        %v3328 = vsel %vm1296, %v3298, %v2802
        %v3329 = vsel %vm1296, %v3299, %v2804
        %v3330 = vsel %vm1296, %v3300, %v2806
        %v3331 = vsel %vm1296, %v3301, %v2808
        %v3332 = vsel %vm1296, %v3302, %v2810
        %v3333 = vsel %vm1296, %v3303, %v2812
        %v3334 = vsel %vm1296, %v3304, %v2814
        %v3335 = vsel %vm1296, %v3305, %v2816
        %v3336 = vsel %vm1296, %v3306, %v2818
        %v3337 = vsel %vm1296, %v3307, %v2820
        %v3338 = vsel %vm1296, %v3308, %v2822
        %v3339 = vsel %vm1296, %v3309, %v2824
        %v3340 = vsel %vm1296, %v3310, %v2826
        %v3341 = vsel %vm1296, %v3311, %v2828
        %v3342 = vsel %vm1296, %v3312, %v2830
        %v3343 = vsel %vm1296, %v3313, %v2832
        %v3344 = vsel %vm1296, %v3314, %v2834
        %v3345 = vsel %vm1296, %v3315, %v2836
        %v3346 = vsel %vm1296, %v3316, %v2838
        %v3347 = vsel %vm1296, %v3317, %v2840
        %v3348 = vsel %vm1296, %v3318, %v2842
        %v3349 = vsel %vm1328, %v1297, %v2875
        %v3350 = vsel %vm1328, %v1297, %v2877
        %v3351 = vsel %vm1328, %v3319, %v2879
        %v3352 = vsel %vm1328, %v3320, %v2881
        %v3353 = vsel %vm1328, %v3321, %v2883
        %v3354 = vsel %vm1328, %v3322, %v2885
        %v3355 = vsel %vm1328, %v3323, %v2887
        %v3356 = vsel %vm1328, %v3324, %v2889
        %v3357 = vsel %vm1328, %v3325, %v2891
        %v3358 = vsel %vm1328, %v3326, %v2893
        %v3359 = vsel %vm1328, %v3327, %v2895
        %v3360 = vsel %vm1328, %v3328, %v2897
        %v3361 = vsel %vm1328, %v3329, %v2899
        %v3362 = vsel %vm1328, %v3330, %v2901
        %v3363 = vsel %vm1328, %v3331, %v2903
        %v3364 = vsel %vm1328, %v3332, %v2905
        %v3365 = vsel %vm1328, %v3333, %v2907
        %v3366 = vsel %vm1328, %v3334, %v2909
        %v3367 = vsel %vm1328, %v3335, %v2911
        %v3368 = vsel %vm1328, %v3336, %v2913
        %v3369 = vsel %vm1328, %v3337, %v2915
        %v3370 = vsel %vm1328, %v3338, %v2917
        %v3371 = vsel %vm1328, %v3339, %v2919
        %v3372 = vsel %vm1328, %v3340, %v2921
        %v3373 = vsel %vm1328, %v3341, %v2923
        %v3374 = vsel %vm1328, %v3342, %v2925
        %v3375 = vsel %vm1328, %v3343, %v2927
        %v3376 = vsel %vm1328, %v3344, %v2929
        %v3377 = vsel %vm1328, %v3345, %v2931
        %v3378 = vsel %vm1328, %v3346, %v2933
        %v3379 = vsel %vm1328, %v3347, %v2935
        %v3380 = vsel %vm1328, %v3348, %v2937
        %v3381 = vsel %vm1264, %v2545, %v3014
        %v3382 = vsel %vm1264, %v2547, %v3016
        %v3383 = vsel %vm1264, %v2550, %v3018
        %v3384 = vsel %vm1264, %v2552, %v3020
        %v3385 = vsel %vm1264, %v2555, %v3022
        %v3386 = vsel %vm1264, %v2557, %v3024
        %v3387 = vsel %vm1264, %v2560, %v3026
        %v3388 = vsel %vm1264, %v2562, %v3028
        %v3389 = vsel %vm1264, %v2565, %v3030
        %v3390 = vsel %vm1264, %v2567, %v3032
        %v3391 = vsel %vm1264, %v2570, %v3034
        %v3392 = vsel %vm1264, %v2572, %v3036
        %v3393 = vsel %vm1264, %v2575, %v3038
        %v3394 = vsel %vm1264, %v2577, %v3040
        %v3395 = vsel %vm1264, %v2580, %v3042
        %v3396 = vsel %vm1264, %v2582, %v3044
        %v3397 = vsel %vm1264, %v2585, %v3046
        %v3398 = vsel %vm1264, %v2587, %v3048
        %v3399 = vsel %vm1264, %v2590, %v3050
        %v3400 = vsel %vm1264, %v2592, %v3052
        %v3401 = vsel %vm1264, %v2595, %v3054
        %v3402 = vsel %vm1264, %v2597, %v3056
        %v3403 = vsel %vm1264, %v2600, %v3058
        %v3404 = vsel %vm1264, %v2602, %v3060
        %v3405 = vsel %vm1264, %v2605, %v3062
        %v3406 = vsel %vm1264, %v2607, %v3064
        %v3407 = vsel %vm1264, %v2610, %v3066
        %v3408 = vsel %vm1264, %v2612, %v3068
        %v3409 = vsel %vm1264, %v2615, %v3070
        %v3410 = vsel %vm1264, %v2617, %v3072
        %v3411 = vsel %vm1264, %v2973, %v3074
        %v3412 = vsel %vm1264, %v2975, %v3076
        %v3413 = vsel %vm1296, %v3381, %v3110
        %v3414 = vsel %vm1296, %v3382, %v3112
        %v3415 = vsel %vm1296, %v3383, %v3114
        %v3416 = vsel %vm1296, %v3384, %v3116
        %v3417 = vsel %vm1296, %v3385, %v3118
        %v3418 = vsel %vm1296, %v3386, %v3120
        %v3419 = vsel %vm1296, %v3387, %v3122
        %v3420 = vsel %vm1296, %v3388, %v3124
        %v3421 = vsel %vm1296, %v3389, %v3126
        %v3422 = vsel %vm1296, %v3390, %v3128
        %v3423 = vsel %vm1296, %v3391, %v3130
        %v3424 = vsel %vm1296, %v3392, %v3132
        %v3425 = vsel %vm1296, %v3393, %v3134
        %v3426 = vsel %vm1296, %v3394, %v3136
        %v3427 = vsel %vm1296, %v3395, %v3138
        %v3428 = vsel %vm1296, %v3396, %v3140
        %v3429 = vsel %vm1296, %v3397, %v3142
        %v3430 = vsel %vm1296, %v3398, %v3144
        %v3431 = vsel %vm1296, %v3399, %v3146
        %v3432 = vsel %vm1296, %v3400, %v3148
        %v3433 = vsel %vm1296, %v3401, %v3150
        %v3434 = vsel %vm1296, %v3402, %v3152
        %v3435 = vsel %vm1296, %v3403, %v3154
        %v3436 = vsel %vm1296, %v3404, %v3156
        %v3437 = vsel %vm1296, %v3405, %v3158
        %v3438 = vsel %vm1296, %v3406, %v3160
        %v3439 = vsel %vm1296, %v3407, %v3162
        %v3440 = vsel %vm1296, %v3408, %v3164
        %v3441 = vsel %vm1296, %v3409, %v3166
        %v3442 = vsel %vm1296, %v3410, %v3168
        %v3443 = vsel %vm1296, %v3411, %v1139
        %v3444 = vsel %vm1296, %v3412, %v1139
        %v3445 = vsel %vm1328, %v3413, %v3200
        %v3446 = vsel %vm1328, %v3414, %v3202
        %v3447 = vsel %vm1328, %v3415, %v3204
        %v3448 = vsel %vm1328, %v3416, %v3206
        %v3449 = vsel %vm1328, %v3417, %v3208
        %v3450 = vsel %vm1328, %v3418, %v3210
        %v3451 = vsel %vm1328, %v3419, %v3212
        %v3452 = vsel %vm1328, %v3420, %v3214
        %v3453 = vsel %vm1328, %v3421, %v3216
        %v3454 = vsel %vm1328, %v3422, %v3218
        %v3455 = vsel %vm1328, %v3423, %v3220
        %v3456 = vsel %vm1328, %v3424, %v3222
        %v3457 = vsel %vm1328, %v3425, %v3224
        %v3458 = vsel %vm1328, %v3426, %v3226
        %v3459 = vsel %vm1328, %v3427, %v3228
        %v3460 = vsel %vm1328, %v3428, %v3230
        %v3461 = vsel %vm1328, %v3429, %v3232
        %v3462 = vsel %vm1328, %v3430, %v3234
        %v3463 = vsel %vm1328, %v3431, %v3236
        %v3464 = vsel %vm1328, %v3432, %v3238
        %v3465 = vsel %vm1328, %v3433, %v3240
        %v3466 = vsel %vm1328, %v3434, %v3242
        %v3467 = vsel %vm1328, %v3435, %v3244
        %v3468 = vsel %vm1328, %v3436, %v3246
        %v3469 = vsel %vm1328, %v3437, %v3248
        %v3470 = vsel %vm1328, %v3438, %v3250
        %v3471 = vsel %vm1328, %v3439, %v3252
        %v3472 = vsel %vm1328, %v3440, %v3254
        %v3473 = vsel %vm1328, %v3441, %v3256
        %v3474 = vsel %vm1328, %v3442, %v3258
        %v3475 = vsel %vm1328, %v3443, %v1232
        %v3476 = vsel %vm1328, %v3444, %v1232
        %s3477 = scalar_lea.vmem %s1, 288
        %v3478 = vld [vmem:[%s3477] sm:$0xff]
        %v3479 = vld [vmem:[%s3477 + $0x8] sm:$0xff]
        %v3480 = vld [vmem:[%s3477 + $0x10] sm:$0xff]
        %v3481 = vld [vmem:[%s3477 + $0x18] sm:$0xff]
        %v3482 = vld [vmem:[%s3477 + $0x20] sm:$0xff]
        %v3483 = vld [vmem:[%s3477 + $0x28] sm:$0xff]
        %v3484 = vld [vmem:[%s3477 + $0x30] sm:$0xff]
        %v3485 = vld [vmem:[%s3477 + $0x38] sm:$0xff]
        %v3486 = vld [vmem:[%s3477 + $0x40] sm:$0xff]
        %v3487 = vld [vmem:[%s3477 + $0x48] sm:$0xff]
        %v3488 = vld [vmem:[%s3477 + $0x50] sm:$0xff]
        %v3489 = vld [vmem:[%s3477 + $0x58] sm:$0xff]
        %v3490 = vld [vmem:[%s3477 + $0x60] sm:$0xff]
        %v3491 = vld [vmem:[%s3477 + $0x68] sm:$0xff]
        %v3492 = vld [vmem:[%s3477 + $0x70] sm:$0xff]
        %v3493 = vld [vmem:[%s3477 + $0x78] sm:$0xff]
        %v3494 = vld [vmem:[%s3477 + $0x80] sm:$0xff]
        %v3495 = vld [vmem:[%s3477 + $0x88] sm:$0xff]
        %v3496 = vld [vmem:[%s3477 + $0x90] sm:$0xff]
        %v3497 = vld [vmem:[%s3477 + $0x98] sm:$0xff]
        %v3498 = vld [vmem:[%s3477 + $0xa0] sm:$0xff]
        %v3499 = vld [vmem:[%s3477 + $0xa8] sm:$0xff]
        %v3500 = vld [vmem:[%s3477 + $0xb0] sm:$0xff]
        %v3501 = vld [vmem:[%s3477 + $0xb8] sm:$0xff]
        %v3502 = vld [vmem:[%s3477 + $0xc0] sm:$0xff]
        %v3503 = vld [vmem:[%s3477 + $0xc8] sm:$0xff]
        %v3504 = vld [vmem:[%s3477 + $0xd0] sm:$0xff]
        %v3505 = vld [vmem:[%s3477 + $0xd8] sm:$0xff]
        %v3506 = vld [vmem:[%s3477 + $0xe0] sm:$0xff]
        %v3507 = vld [vmem:[%s3477 + $0xe8] sm:$0xff]
        %v3508 = vld [vmem:[%s3477 + $0xf0] sm:$0xff]
        %v3509 = vld [vmem:[%s3477 + $0xf8] sm:$0xff]
        %v3510 = vld [vmem:[%s3477 + $0x100] sm:$0xff]
        %v3511 = vld [vmem:[%s3477 + $0x108] sm:$0xff]
        %v3512 = vld [vmem:[%s3477 + $0x110] sm:$0xff]
        %v3513 = vld [vmem:[%s3477 + $0x118] sm:$0xff]
        %v3514 = vld [vmem:[%s2 + $0x1] sm:$0x1]
        %v3515 = vlaneseq
        %v3516 = vshrl.u32 %v3515, 7
        %v3517 = vsub.s32 0, %v3516
        %v3518 = vrot.slane %v3514, %v3517
        %v3519 = vsel %vm1264, %v2715, 0
        %v3521 = vsel %vm1264, %v2717, 0
        %v3523 = vsel %vm1264, %v2720, 0
        %v3525 = vsel %vm1264, %v2722, 0
        %v3527 = vsel %vm1264, %v2725, 0
        %v3529 = vsel %vm1264, %v2727, 0
        %v3531 = vsel %vm1264, %v2730, 0
        %v3533 = vsel %vm1264, %v2732, 0
        %v3535 = vsel %vm1264, %v2735, 0
        %v3537 = vsel %vm1264, %v2737, 0
        %v3539 = vsel %vm1264, %v2740, 0
        %v3541 = vsel %vm1264, %v2742, 0
        %v3543 = vsel %vm1264, %v2745, 0
        %v3545 = vsel %vm1264, %v2747, 0
        %v3547 = vsel %vm1264, %v2750, 0
        %v3549 = vsel %vm1264, %v2752, 0
        %v3551 = vsel %vm1264, %v2755, 0
        %v3553 = vsel %vm1264, %v2757, 0
        %v3555 = vsel %vm1264, %v2760, 0
        %v3557 = vsel %vm1264, %v2762, 0
        %v3559 = vsel %vm1264, %v2765, 0
        %v3561 = vsel %vm1264, %v2767, 0
        %v3563 = vsel %vm1264, %v2770, 0
        %v3565 = vsel %vm1264, %v2772, 0
        %v3567 = vsel %vm1264, %v2775, 0
        %v3569 = vsel %vm1264, %v2777, 0
        %v3571 = vsel %vm1264, %v2780, 0
        %v3573 = vsel %vm1264, %v2782, 0
        %v3575 = vsel %vm1264, %v3010, 0
        %v3577 = vsel %vm1264, %v3012, 0
        %3579 = vmatprep.subr.mxu0 0.0
        %3580 = vmatpush1.msra.mxu0 %v3493
        %3581 = vmatprep.subr.mxu0 0.0
        %3582 = vmatpush1.msra.mxu0 %v3492
        %3583 = vmatprep.subr.mxu0 0.0
        %3584 = vmatpush1.msra.mxu0 %v3491
        %3585 = vmatprep.subr.mxu0 0.0
        %3586 = vmatpush1.msra.mxu0 %v3490
        %3587 = vmatprep.subr.mxu0 0.0
        %3588 = vmatpush1.msra.mxu0 %v3489
        %3589 = vmatprep.subr.mxu0 0.0
        %3590 = vmatpush1.msra.mxu0 %v3488
        %3591 = vmatprep.subr.mxu0 0.0
        %3592 = vmatpush1.msra.mxu0 %v3487
        %3593 = vmatprep.subr.mxu0 0.0
        %3594 = vmatpush1.msra.mxu0 %v3486
        %3595 = vmatprep.subr.mxu0 0.0
        %3596 = vmatpush1.msra.mxu0 %v3485
        %3597 = vmatprep.subr.mxu0 0.0
        %3598 = vmatpush1.msra.mxu0 %v3484
        %3599 = vmatprep.subr.mxu0 0.0
        %3600 = vmatpush1.msra.mxu0 %v3483
        %3601 = vmatprep.subr.mxu0 0.0
        %3602 = vmatpush1.msra.mxu0 %v3482
        %3603 = vmatprep.subr.mxu0 0.0
        %3604 = vmatpush1.msra.mxu0 %v3481
        %3605 = vmatprep.subr.mxu0 0.0
        %3606 = vmatpush1.msra.mxu0 %v3480
        %3607 = vmatprep.subr.mxu0 0.0
        %3608 = vmatpush1.msra.mxu0 %v3479
        %3609 = vmatprep.subr.mxu0 0.0
        %3610 = vmatpush1.msra.mxu0 %v3478
        %3611 = vmatprep.subr.mxu0 0.0
        %3612 = vmatpush2.msra.mxu0 %v3509
        %3613 = vmatprep.subr.mxu0 0.0
        %3614 = vmatpush2.msra.mxu0 %v3508
        %3615 = vmatprep.subr.mxu0 0.0
        %3616 = vmatpush2.msra.mxu0 %v3507
        %3617 = vmatprep.subr.mxu0 0.0
        %3618 = vmatpush2.msra.mxu0 %v3506
        %3619 = vmatprep.subr.mxu0 0.0
        %3620 = vmatpush2.msra.mxu0 %v3505
        %3621 = vmatprep.subr.mxu0 0.0
        %3622 = vmatpush2.msra.mxu0 %v3504
        %3623 = vmatprep.subr.mxu0 0.0
        %3624 = vmatpush2.msra.mxu0 %v3503
        %3625 = vmatprep.subr.mxu0 0.0
        %3626 = vmatpush2.msra.mxu0 %v3502
        %3627 = vmatprep.subr.mxu0 0.0
        %3628 = vmatpush2.msra.mxu0 %v3501
        %3629 = vmatprep.subr.mxu0 0.0
        %3630 = vmatpush2.msra.mxu0 %v3500
        %3631 = vmatprep.subr.mxu0 0.0
        %3632 = vmatpush2.msra.mxu0 %v3499
        %3633 = vmatprep.subr.mxu0 0.0
        %3634 = vmatpush2.msra.mxu0 %v3498
        %3635 = vmatprep.subr.mxu0 0.0
        %3636 = vmatpush2.msra.mxu0 %v3497
        %3637 = vmatprep.subr.mxu0 0.0
        %3638 = vmatpush2.msra.mxu0 %v3496
        %3639 = vmatprep.subr.mxu0 0.0
        %3640 = vmatpush2.msra.mxu0 %v3495
        %3641 = vmatprep.subr.mxu0 0.0
        %3642 = vmatpush2.msra.mxu0 %v3494
        %3643 = vmatprep.mubr.f32.mxu0 %v3445
        %3644 = vmatmul.mubr.f32.gmra.mxu0 %v3349
        %v3645 = vpop.f32.mrf.mxu0
        %v3646 = vadd.f32 %v3518, %v3645
        %v3647 = vpop.f32.mrf.mxu0
        %3648 = vmatprep.mubr.f32.mxu0 %v3446
        %3649 = vmatmul.mubr.f32.gmra.mxu0 %v3350
        %v3650 = vpop.f32.mrf.mxu0
        %v3651 = vadd.f32 %v3518, %v3650
        %v3652 = vpop.f32.mrf.mxu0
        %3653 = vmatprep.mubr.f32.mxu0 %v3447
        %3654 = vmatmul.mubr.f32.gmra.mxu0 %v3351
        %v3655 = vpop.f32.mrf.mxu0
        %v3656 = vadd.f32 %v3518, %v3655
        %v3657 = vpop.f32.mrf.mxu0
        %3658 = vmatprep.mubr.f32.mxu0 %v3448
        %3659 = vmatmul.mubr.f32.gmra.mxu0 %v3352
        %v3660 = vpop.f32.mrf.mxu0
        %v3661 = vadd.f32 %v3518, %v3660
        %v3662 = vpop.f32.mrf.mxu0
        %3663 = vmatprep.mubr.f32.mxu0 %v3449
        %3664 = vmatmul.mubr.f32.gmra.mxu0 %v3353
        %v3665 = vpop.f32.mrf.mxu0
        %v3666 = vadd.f32 %v3518, %v3665
        %v3667 = vpop.f32.mrf.mxu0
        %3668 = vmatprep.mubr.f32.mxu0 %v3450
        %3669 = vmatmul.mubr.f32.gmra.mxu0 %v3354
        %v3670 = vpop.f32.mrf.mxu0
        %v3671 = vadd.f32 %v3518, %v3670
        %v3672 = vpop.f32.mrf.mxu0
        %3673 = vmatprep.mubr.f32.mxu0 %v3451
        %3674 = vmatmul.mubr.f32.gmra.mxu0 %v3355
        %v3675 = vpop.f32.mrf.mxu0
        %v3676 = vadd.f32 %v3518, %v3675
        %v3677 = vpop.f32.mrf.mxu0
        %3678 = vmatprep.mubr.f32.mxu0 %v3452
        %3679 = vmatmul.mubr.f32.gmra.mxu0 %v3356
        %v3680 = vpop.f32.mrf.mxu0
        %v3681 = vadd.f32 %v3518, %v3680
        %v3682 = vpop.f32.mrf.mxu0
        %3683 = vmatprep.mubr.f32.mxu0 %v3453
        %3684 = vmatmul.mubr.f32.gmra.mxu0 %v3357
        %v3685 = vpop.f32.mrf.mxu0
        %v3686 = vadd.f32 %v3518, %v3685
        %v3687 = vpop.f32.mrf.mxu0
        %3688 = vmatprep.mubr.f32.mxu0 %v3454
        %3689 = vmatmul.mubr.f32.gmra.mxu0 %v3358
        %v3690 = vpop.f32.mrf.mxu0
        %v3691 = vadd.f32 %v3518, %v3690
        %v3692 = vpop.f32.mrf.mxu0
        %3693 = vmatprep.mubr.f32.mxu0 %v3455
        %3694 = vmatmul.mubr.f32.gmra.mxu0 %v3359
        %v3695 = vpop.f32.mrf.mxu0
        %v3696 = vadd.f32 %v3518, %v3695
        %v3697 = vpop.f32.mrf.mxu0
        %3698 = vmatprep.mubr.f32.mxu0 %v3456
        %3699 = vmatmul.mubr.f32.gmra.mxu0 %v3360
        %v3700 = vpop.f32.mrf.mxu0
        %v3701 = vadd.f32 %v3518, %v3700
        %v3702 = vpop.f32.mrf.mxu0
        %3703 = vmatprep.mubr.f32.mxu0 %v3457
        %3704 = vmatmul.mubr.f32.gmra.mxu0 %v3361
        %v3705 = vpop.f32.mrf.mxu0
        %v3706 = vadd.f32 %v3518, %v3705
        %v3707 = vpop.f32.mrf.mxu0
        %3708 = vmatprep.mubr.f32.mxu0 %v3458
        %3709 = vmatmul.mubr.f32.gmra.mxu0 %v3362
        %v3710 = vpop.f32.mrf.mxu0
        %v3711 = vadd.f32 %v3518, %v3710
        %v3712 = vpop.f32.mrf.mxu0
        %3713 = vmatprep.mubr.f32.mxu0 %v3459
        %3714 = vmatmul.mubr.f32.gmra.mxu0 %v3363
        %v3715 = vpop.f32.mrf.mxu0
        %v3716 = vadd.f32 %v3518, %v3715
        %v3717 = vpop.f32.mrf.mxu0
        %3718 = vmatprep.mubr.f32.mxu0 %v3460
        %3719 = vmatmul.mubr.f32.gmra.mxu0 %v3364
        %v3720 = vpop.f32.mrf.mxu0
        %v3721 = vadd.f32 %v3518, %v3720
        %v3722 = vpop.f32.mrf.mxu0
        %3723 = vmatprep.mubr.f32.mxu0 %v3461
        %3724 = vmatmul.mubr.f32.gmra.mxu0 %v3365
        %v3725 = vpop.f32.mrf.mxu0
        %v3726 = vadd.f32 %v3518, %v3725
        %v3727 = vpop.f32.mrf.mxu0
        %3728 = vmatprep.mubr.f32.mxu0 %v3462
        %3729 = vmatmul.mubr.f32.gmra.mxu0 %v3366
        %v3730 = vpop.f32.mrf.mxu0
        %v3731 = vadd.f32 %v3518, %v3730
        %v3732 = vpop.f32.mrf.mxu0
        %3733 = vmatprep.mubr.f32.mxu0 %v3463
        %3734 = vmatmul.mubr.f32.gmra.mxu0 %v3367
        %v3735 = vpop.f32.mrf.mxu0
        %v3736 = vadd.f32 %v3518, %v3735
        %v3737 = vpop.f32.mrf.mxu0
        %3738 = vmatprep.mubr.f32.mxu0 %v3464
        %3739 = vmatmul.mubr.f32.gmra.mxu0 %v3368
        %v3740 = vpop.f32.mrf.mxu0
        %v3741 = vadd.f32 %v3518, %v3740
        %v3742 = vpop.f32.mrf.mxu0
        %3743 = vmatprep.mubr.f32.mxu0 %v3465
        %3744 = vmatmul.mubr.f32.gmra.mxu0 %v3369
        %v3745 = vpop.f32.mrf.mxu0
        %v3746 = vadd.f32 %v3518, %v3745
        %v3747 = vpop.f32.mrf.mxu0
        %3748 = vmatprep.mubr.f32.mxu0 %v3466
        %3749 = vmatmul.mubr.f32.gmra.mxu0 %v3370
        %v3750 = vpop.f32.mrf.mxu0
        %v3751 = vadd.f32 %v3518, %v3750
        %v3752 = vpop.f32.mrf.mxu0
        %3753 = vmatprep.mubr.f32.mxu0 %v3467
        %3754 = vmatmul.mubr.f32.gmra.mxu0 %v3371
        %v3755 = vpop.f32.mrf.mxu0
        %v3756 = vadd.f32 %v3518, %v3755
        %v3757 = vpop.f32.mrf.mxu0
        %3758 = vmatprep.mubr.f32.mxu0 %v3468
        %3759 = vmatmul.mubr.f32.gmra.mxu0 %v3372
        %v3760 = vpop.f32.mrf.mxu0
        %v3761 = vadd.f32 %v3518, %v3760
        %v3762 = vpop.f32.mrf.mxu0
        %3763 = vmatprep.mubr.f32.mxu0 %v3469
        %3764 = vmatmul.mubr.f32.gmra.mxu0 %v3373
        %v3765 = vpop.f32.mrf.mxu0
        %v3766 = vadd.f32 %v3518, %v3765
        %v3767 = vpop.f32.mrf.mxu0
        %3768 = vmatprep.mubr.f32.mxu0 %v3470
        %3769 = vmatmul.mubr.f32.gmra.mxu0 %v3374
        %v3770 = vpop.f32.mrf.mxu0
        %v3771 = vadd.f32 %v3518, %v3770
        %v3772 = vpop.f32.mrf.mxu0
        %3773 = vmatprep.mubr.f32.mxu0 %v3471
        %3774 = vmatmul.mubr.f32.gmra.mxu0 %v3375
        %v3775 = vpop.f32.mrf.mxu0
        %v3776 = vadd.f32 %v3518, %v3775
        %v3777 = vpop.f32.mrf.mxu0
        %3778 = vmatprep.mubr.f32.mxu0 %v3472
        %3779 = vmatmul.mubr.f32.gmra.mxu0 %v3376
        %v3780 = vpop.f32.mrf.mxu0
        %v3781 = vadd.f32 %v3518, %v3780
        %v3782 = vpop.f32.mrf.mxu0
        %3783 = vmatprep.mubr.f32.mxu0 %v3473
        %3784 = vmatmul.mubr.f32.gmra.mxu0 %v3377
        %v3785 = vpop.f32.mrf.mxu0
        %v3786 = vadd.f32 %v3518, %v3785
        %v3787 = vpop.f32.mrf.mxu0
        %3788 = vmatprep.mubr.f32.mxu0 %v3474
        %3789 = vmatmul.mubr.f32.gmra.mxu0 %v3378
        %v3790 = vpop.f32.mrf.mxu0
        %v3791 = vadd.f32 %v3518, %v3790
        %v3792 = vpop.f32.mrf.mxu0
        %3793 = vmatprep.mubr.f32.mxu0 %v3475
        %3794 = vmatmul.mubr.f32.gmra.mxu0 %v3379
        %v3795 = vpop.f32.mrf.mxu0
        %v3796 = vadd.f32 %v3518, %v3795
        %v3797 = vpop.f32.mrf.mxu0
        %3798 = vmatprep.mubr.f32.mxu0 %v3476
        %3799 = vmatmul.mubr.f32.gmra.mxu0 %v3380
        %v3800 = vpop.f32.mrf.mxu0
        %v3801 = vadd.f32 %v3518, %v3800
        %v3802 = vpop.f32.mrf.mxu0
        %3803 = vdwg.mxu0
        %3804 = vmatprep.subr.mxu0 0.0
        %3805 = vmatpush1.msra.mxu0 0.0
        %3806 = vmatprep.subr.mxu0 0.0
        %3807 = vmatpush1.msra.mxu0 0.0
        %3808 = vmatprep.subr.mxu0 0.0
        %3809 = vmatpush1.msra.mxu0 0.0
        %3810 = vmatprep.subr.mxu0 0.0
        %3811 = vmatpush1.msra.mxu0 0.0
        %3812 = vmatprep.subr.mxu0 0.0
        %3813 = vmatpush1.msra.mxu0 0.0
        %3814 = vmatprep.subr.mxu0 0.0
        %3815 = vmatpush1.msra.mxu0 0.0
        %3816 = vmatprep.subr.mxu0 0.0
        %3817 = vmatpush1.msra.mxu0 0.0
        %3818 = vmatprep.subr.mxu0 0.0
        %3819 = vmatpush1.msra.mxu0 0.0
        %3820 = vmatprep.subr.mxu0 0.0
        %3821 = vmatpush1.msra.mxu0 0.0
        %3822 = vmatprep.subr.mxu0 0.0
        %3823 = vmatpush1.msra.mxu0 0.0
        %3824 = vmatprep.subr.mxu0 0.0
        %3825 = vmatpush1.msra.mxu0 0.0
        %3826 = vmatprep.subr.mxu0 0.0
        %3827 = vmatpush1.msra.mxu0 0.0
        %3828 = vmatprep.subr.mxu0 0.0
        %3829 = vmatpush1.msra.mxu0 %v3513
        %3830 = vmatprep.subr.mxu0 0.0
        %3831 = vmatpush1.msra.mxu0 %v3512
        %3832 = vmatprep.subr.mxu0 0.0
        %3833 = vmatpush1.msra.mxu0 %v3511
        %3834 = vmatprep.subr.mxu0 0.0
        %3835 = vmatpush1.msra.mxu0 %v3510
        %3836 = vmatprep.subr.mxu0 0.0
        %3837 = vmatpush2.msra.mxu0 0.0
        %3838 = vmatprep.subr.mxu0 0.0
        %3839 = vmatpush2.msra.mxu0 0.0
        %3840 = vmatprep.subr.mxu0 0.0
        %3841 = vmatpush2.msra.mxu0 0.0
        %3842 = vmatprep.subr.mxu0 0.0
        %3843 = vmatpush2.msra.mxu0 0.0
        %3844 = vmatprep.subr.mxu0 0.0
        %3845 = vmatpush2.msra.mxu0 0.0
        %3846 = vmatprep.subr.mxu0 0.0
        %3847 = vmatpush2.msra.mxu0 0.0
        %3848 = vmatprep.subr.mxu0 0.0
        %3849 = vmatpush2.msra.mxu0 0.0
        %3850 = vmatprep.subr.mxu0 0.0
        %3851 = vmatpush2.msra.mxu0 0.0
        %3852 = vmatprep.subr.mxu0 0.0
        %3853 = vmatpush2.msra.mxu0 0.0
        %3854 = vmatprep.subr.mxu0 0.0
        %3855 = vmatpush2.msra.mxu0 0.0
        %3856 = vmatprep.subr.mxu0 0.0
        %3857 = vmatpush2.msra.mxu0 0.0
        %3858 = vmatprep.subr.mxu0 0.0
        %3859 = vmatpush2.msra.mxu0 0.0
        %3860 = vmatprep.subr.mxu0 0.0
        %3861 = vmatpush2.msra.mxu0 0.0
        %3862 = vmatprep.subr.mxu0 0.0
        %3863 = vmatpush2.msra.mxu0 0.0
        %3864 = vmatprep.subr.mxu0 0.0
        %3865 = vmatpush2.msra.mxu0 0.0
        %3866 = vmatprep.subr.mxu0 0.0
        %3867 = vmatpush2.msra.mxu0 0.0
        %3868 = vmatprep.mubr.f32.mxu0 0.0
        %3869 = vmatmul.mubr.f32.gmra.mxu0 %v3519
        %v3870 = vpop.f32.mrf.mxu0
        %v3871 = vadd.f32 %v3646, %v3870
        %v3872 = vpop.f32.mrf.mxu0
        %3873 = vmatprep.mubr.f32.mxu0 0.0
        %3874 = vmatmul.mubr.f32.gmra.mxu0 %v3521
        %v3875 = vpop.f32.mrf.mxu0
        %v3876 = vadd.f32 %v3651, %v3875
        %v3877 = vpop.f32.mrf.mxu0
        %3878 = vmatprep.mubr.f32.mxu0 0.0
        %3879 = vmatmul.mubr.f32.gmra.mxu0 %v3523
        %v3880 = vpop.f32.mrf.mxu0
        %v3881 = vadd.f32 %v3656, %v3880
        %v3882 = vpop.f32.mrf.mxu0
        %3883 = vmatprep.mubr.f32.mxu0 0.0
        %3884 = vmatmul.mubr.f32.gmra.mxu0 %v3525
        %v3885 = vpop.f32.mrf.mxu0
        %v3886 = vadd.f32 %v3661, %v3885
        %v3887 = vpop.f32.mrf.mxu0
        %3888 = vmatprep.mubr.f32.mxu0 0.0
        %3889 = vmatmul.mubr.f32.gmra.mxu0 %v3527
        %v3890 = vpop.f32.mrf.mxu0
        %v3891 = vadd.f32 %v3666, %v3890
        %v3892 = vpop.f32.mrf.mxu0
        %3893 = vmatprep.mubr.f32.mxu0 0.0
        %3894 = vmatmul.mubr.f32.gmra.mxu0 %v3529
        %v3895 = vpop.f32.mrf.mxu0
        %v3896 = vadd.f32 %v3671, %v3895
        %v3897 = vpop.f32.mrf.mxu0
        %3898 = vmatprep.mubr.f32.mxu0 0.0
        %3899 = vmatmul.mubr.f32.gmra.mxu0 %v3531
        %v3900 = vpop.f32.mrf.mxu0
        %v3901 = vadd.f32 %v3676, %v3900
        %v3902 = vpop.f32.mrf.mxu0
        %3903 = vmatprep.mubr.f32.mxu0 0.0
        %3904 = vmatmul.mubr.f32.gmra.mxu0 %v3533
        %v3905 = vpop.f32.mrf.mxu0
        %v3906 = vadd.f32 %v3681, %v3905
        %v3907 = vpop.f32.mrf.mxu0
        %3908 = vmatprep.mubr.f32.mxu0 0.0
        %3909 = vmatmul.mubr.f32.gmra.mxu0 %v3535
        %v3910 = vpop.f32.mrf.mxu0
        %v3911 = vadd.f32 %v3686, %v3910
        %v3912 = vpop.f32.mrf.mxu0
        %3913 = vmatprep.mubr.f32.mxu0 0.0
        %3914 = vmatmul.mubr.f32.gmra.mxu0 %v3537
        %v3915 = vpop.f32.mrf.mxu0
        %v3916 = vadd.f32 %v3691, %v3915
        %v3917 = vpop.f32.mrf.mxu0
        %3918 = vmatprep.mubr.f32.mxu0 0.0
        %3919 = vmatmul.mubr.f32.gmra.mxu0 %v3539
        %v3920 = vpop.f32.mrf.mxu0
        %v3921 = vadd.f32 %v3696, %v3920
        %v3922 = vpop.f32.mrf.mxu0
        %3923 = vmatprep.mubr.f32.mxu0 0.0
        %3924 = vmatmul.mubr.f32.gmra.mxu0 %v3541
        %v3925 = vpop.f32.mrf.mxu0
        %v3926 = vadd.f32 %v3701, %v3925
        %v3927 = vpop.f32.mrf.mxu0
        %3928 = vmatprep.mubr.f32.mxu0 0.0
        %3929 = vmatmul.mubr.f32.gmra.mxu0 %v3543
        %v3930 = vpop.f32.mrf.mxu0
        %v3931 = vadd.f32 %v3706, %v3930
        %v3932 = vpop.f32.mrf.mxu0
        %3933 = vmatprep.mubr.f32.mxu0 0.0
        %3934 = vmatmul.mubr.f32.gmra.mxu0 %v3545
        %v3935 = vpop.f32.mrf.mxu0
        %v3936 = vadd.f32 %v3711, %v3935
        %v3937 = vpop.f32.mrf.mxu0
        %3938 = vmatprep.mubr.f32.mxu0 0.0
        %3939 = vmatmul.mubr.f32.gmra.mxu0 %v3547
        %v3940 = vpop.f32.mrf.mxu0
        %v3941 = vadd.f32 %v3716, %v3940
        %v3942 = vpop.f32.mrf.mxu0
        %3943 = vmatprep.mubr.f32.mxu0 0.0
        %3944 = vmatmul.mubr.f32.gmra.mxu0 %v3549
        %v3945 = vpop.f32.mrf.mxu0
        %v3946 = vadd.f32 %v3721, %v3945
        %v3947 = vpop.f32.mrf.mxu0
        %3948 = vmatprep.mubr.f32.mxu0 0.0
        %3949 = vmatmul.mubr.f32.gmra.mxu0 %v3551
        %v3950 = vpop.f32.mrf.mxu0
        %v3951 = vadd.f32 %v3726, %v3950
        %v3952 = vpop.f32.mrf.mxu0
        %3953 = vmatprep.mubr.f32.mxu0 0.0
        %3954 = vmatmul.mubr.f32.gmra.mxu0 %v3553
        %v3955 = vpop.f32.mrf.mxu0
        %v3956 = vadd.f32 %v3731, %v3955
        %v3957 = vpop.f32.mrf.mxu0
        %3958 = vmatprep.mubr.f32.mxu0 0.0
        %3959 = vmatmul.mubr.f32.gmra.mxu0 %v3555
        %v3960 = vpop.f32.mrf.mxu0
        %v3961 = vadd.f32 %v3736, %v3960
        %v3962 = vpop.f32.mrf.mxu0
        %3963 = vmatprep.mubr.f32.mxu0 0.0
        %3964 = vmatmul.mubr.f32.gmra.mxu0 %v3557
        %v3965 = vpop.f32.mrf.mxu0
        %v3966 = vadd.f32 %v3741, %v3965
        %v3967 = vpop.f32.mrf.mxu0
        %3968 = vmatprep.mubr.f32.mxu0 0.0
        %3969 = vmatmul.mubr.f32.gmra.mxu0 %v3559
        %v3970 = vpop.f32.mrf.mxu0
        %v3971 = vadd.f32 %v3746, %v3970
        %v3972 = vpop.f32.mrf.mxu0
        %3973 = vmatprep.mubr.f32.mxu0 0.0
        %3974 = vmatmul.mubr.f32.gmra.mxu0 %v3561
        %v3975 = vpop.f32.mrf.mxu0
        %v3976 = vadd.f32 %v3751, %v3975
        %v3977 = vpop.f32.mrf.mxu0
        %3978 = vmatprep.mubr.f32.mxu0 0.0
        %3979 = vmatmul.mubr.f32.gmra.mxu0 %v3563
        %v3980 = vpop.f32.mrf.mxu0
        %v3981 = vadd.f32 %v3756, %v3980
        %v3982 = vpop.f32.mrf.mxu0
        %3983 = vmatprep.mubr.f32.mxu0 0.0
        %3984 = vmatmul.mubr.f32.gmra.mxu0 %v3565
        %v3985 = vpop.f32.mrf.mxu0
        %v3986 = vadd.f32 %v3761, %v3985
        %v3987 = vpop.f32.mrf.mxu0
        %3988 = vmatprep.mubr.f32.mxu0 0.0
        %3989 = vmatmul.mubr.f32.gmra.mxu0 %v3567
        %v3990 = vpop.f32.mrf.mxu0
        %v3991 = vadd.f32 %v3766, %v3990
        %v3992 = vpop.f32.mrf.mxu0
        %3993 = vmatprep.mubr.f32.mxu0 0.0
        %3994 = vmatmul.mubr.f32.gmra.mxu0 %v3569
        %v3995 = vpop.f32.mrf.mxu0
        %v3996 = vadd.f32 %v3771, %v3995
        %v3997 = vpop.f32.mrf.mxu0
        %3998 = vmatprep.mubr.f32.mxu0 0.0
        %3999 = vmatmul.mubr.f32.gmra.mxu0 %v3571
        %v4000 = vpop.f32.mrf.mxu0
        %v4001 = vadd.f32 %v3776, %v4000
        %v4002 = vpop.f32.mrf.mxu0
        %4003 = vmatprep.mubr.f32.mxu0 0.0
        %4004 = vmatmul.mubr.f32.gmra.mxu0 %v3573
        %v4005 = vpop.f32.mrf.mxu0
        %v4006 = vadd.f32 %v3781, %v4005
        %v4007 = vpop.f32.mrf.mxu0
        %4008 = vmatprep.mubr.f32.mxu0 0.0
        %4009 = vmatmul.mubr.f32.gmra.mxu0 %v3575
        %v4010 = vpop.f32.mrf.mxu0
        %v4011 = vadd.f32 %v3786, %v4010
        %v4012 = vpop.f32.mrf.mxu0
        %4013 = vmatprep.mubr.f32.mxu0 0.0
        %4014 = vmatmul.mubr.f32.gmra.mxu0 %v3577
        %v4015 = vpop.f32.mrf.mxu0
        %v4016 = vadd.f32 %v3791, %v4015
        %v4017 = vpop.f32.mrf.mxu0
        %4018 = vmatprep.mubr.f32.mxu0 0.0
        %4019 = vmatmul.mubr.f32.gmra.mxu0 %v1558
        %v4020 = vpop.f32.mrf.mxu0
        %v4021 = vadd.f32 %v3796, %v4020
        %v4022 = vpop.f32.mrf.mxu0
        %4023 = vmatprep.mubr.f32.mxu0 0.0
        %4024 = vmatmul.mubr.f32.gmra.mxu0 %v1558
        %v4025 = vpop.f32.mrf.mxu0
        %v4026 = vadd.f32 %v3801, %v4025
        %v4027 = vpop.f32.mrf.mxu0
        %4028 = vdwg.mxu0
        %v4029 = vsel %vm1264, %v3871, 0.0
        %v4030 = vsel %vm1264, %v3876, 0.0
        %v4031 = vadd.f32 %v4029, %v4030
        %v4032 = vsel %vm1264, %v3881, 0.0
        %v4033 = vadd.f32 %v4031, %v4032
        %v4034 = vsel %vm1264, %v3886, 0.0
        %v4035 = vadd.f32 %v4033, %v4034
        %v4036 = vsel %vm1264, %v3891, 0.0
        %v4037 = vadd.f32 %v4035, %v4036
        %v4038 = vsel %vm1264, %v3896, 0.0
        %v4039 = vadd.f32 %v4037, %v4038
        %v4040 = vsel %vm1264, %v3901, 0.0
        %v4041 = vadd.f32 %v4039, %v4040
        %v4042 = vsel %vm1264, %v3906, 0.0
        %v4043 = vadd.f32 %v4041, %v4042
        %v4044 = vsel %vm1264, %v3911, 0.0
        %v4045 = vadd.f32 %v4043, %v4044
        %v4046 = vsel %vm1264, %v3916, 0.0
        %v4047 = vadd.f32 %v4045, %v4046
        %v4048 = vsel %vm1264, %v3921, 0.0
        %v4049 = vadd.f32 %v4047, %v4048
        %v4050 = vsel %vm1264, %v3926, 0.0
        %v4051 = vadd.f32 %v4049, %v4050
        %v4052 = vsel %vm1264, %v3931, 0.0
        %v4053 = vadd.f32 %v4051, %v4052
        %v4054 = vsel %vm1264, %v3936, 0.0
        %v4055 = vadd.f32 %v4053, %v4054
        %v4056 = vsel %vm1264, %v3941, 0.0
        %v4057 = vadd.f32 %v4055, %v4056
        %v4058 = vsel %vm1264, %v3946, 0.0
        %v4059 = vadd.f32 %v4057, %v4058
        %v4060 = vsel %vm1264, %v3951, 0.0
        %v4061 = vadd.f32 %v4059, %v4060
        %v4062 = vsel %vm1264, %v3956, 0.0
        %v4063 = vadd.f32 %v4061, %v4062
        %v4064 = vsel %vm1264, %v3961, 0.0
        %v4065 = vadd.f32 %v4063, %v4064
        %v4066 = vsel %vm1264, %v3966, 0.0
        %v4067 = vadd.f32 %v4065, %v4066
        %v4068 = vsel %vm1264, %v3971, 0.0
        %v4069 = vadd.f32 %v4067, %v4068
        %v4070 = vsel %vm1264, %v3976, 0.0
        %v4071 = vadd.f32 %v4069, %v4070
        %v4072 = vsel %vm1264, %v3981, 0.0
        %v4073 = vadd.f32 %v4071, %v4072
        %v4074 = vsel %vm1264, %v3986, 0.0
        %v4075 = vadd.f32 %v4073, %v4074
        %v4076 = vsel %vm1264, %v3991, 0.0
        %v4077 = vadd.f32 %v4075, %v4076
        %v4078 = vsel %vm1264, %v3996, 0.0
        %v4079 = vadd.f32 %v4077, %v4078
        %v4080 = vsel %vm1264, %v4001, 0.0
        %v4081 = vadd.f32 %v4079, %v4080
        %v4082 = vsel %vm1264, %v4006, 0.0
        %v4083 = vadd.f32 %v4081, %v4082
        %v4084 = vsel %vm1264, %v4011, 0.0
        %v4085 = vadd.f32 %v4083, %v4084
        %v4086 = vsel %vm1264, %v4016, 0.0
        %v4087 = vadd.f32 %v4085, %v4086
        %v4088 = vsel %vm1264, %v4021, 0.0
        %v4089 = vadd.f32 %v4087, %v4088
        %v4090 = vsel %vm1264, %v4026, 0.0
        %v4091 = vadd.f32 %v4089, %v4090
        %v4092 = vrot.slane %v4091, 4
        %v4093 = vadd.f32 %v4091, %v4092
        %v4094 = vrot.slane %v4093, 2
        %v4095 = vadd.f32 %v4093, %v4094
        %v4096 = vrot.slane %v4095, 1
        %v4097 = vadd.f32 %v4095, %v4096
        %v4098 = vmul.f32 %v4097, 0.00390625
        %v4099 = vsub.f32 %v3871, %v4098
        %v4100 = vsub.f32 %v3876, %v4098
        %v4101 = vsub.f32 %v3881, %v4098
        %v4102 = vsub.f32 %v3886, %v4098
        %v4103 = vsub.f32 %v3891, %v4098
        %v4104 = vsub.f32 %v3896, %v4098
        %v4105 = vsub.f32 %v3901, %v4098
        %v4106 = vsub.f32 %v3906, %v4098
        %v4107 = vsub.f32 %v3911, %v4098
        %v4108 = vsub.f32 %v3916, %v4098
        %v4109 = vsub.f32 %v3921, %v4098
        %v4110 = vsub.f32 %v3926, %v4098
        %v4111 = vsub.f32 %v3931, %v4098
        %v4112 = vsub.f32 %v3936, %v4098
        %v4113 = vsub.f32 %v3941, %v4098
        %v4114 = vsub.f32 %v3946, %v4098
        %v4115 = vsub.f32 %v3951, %v4098
        %v4116 = vsub.f32 %v3956, %v4098
        %v4117 = vsub.f32 %v3961, %v4098
        %v4118 = vsub.f32 %v3966, %v4098
        %v4119 = vsub.f32 %v3971, %v4098
        %v4120 = vsub.f32 %v3976, %v4098
        %v4121 = vsub.f32 %v3981, %v4098
        %v4122 = vsub.f32 %v3986, %v4098
        %v4123 = vsub.f32 %v3991, %v4098
        %v4124 = vsub.f32 %v3996, %v4098
        %v4125 = vsub.f32 %v4001, %v4098
        %v4126 = vsub.f32 %v4006, %v4098
        %v4127 = vsub.f32 %v4011, %v4098
        %v4128 = vsub.f32 %v4016, %v4098
        %v4129 = vsub.f32 %v4021, %v4098
        %v4130 = vsub.f32 %v4026, %v4098
        %v4131 = vmul.f32 %v4099, %v4099
        %v4132 = vmul.f32 %v4100, %v4100
        %v4133 = vmul.f32 %v4101, %v4101
        %v4134 = vmul.f32 %v4102, %v4102
        %v4135 = vmul.f32 %v4103, %v4103
        %v4136 = vmul.f32 %v4104, %v4104
        %v4137 = vmul.f32 %v4105, %v4105
        %v4138 = vmul.f32 %v4106, %v4106
        %v4139 = vmul.f32 %v4107, %v4107
        %v4140 = vmul.f32 %v4108, %v4108
        %v4141 = vmul.f32 %v4109, %v4109
        %v4142 = vmul.f32 %v4110, %v4110
        %v4143 = vmul.f32 %v4111, %v4111
        %v4144 = vmul.f32 %v4112, %v4112
        %v4145 = vmul.f32 %v4113, %v4113
        %v4146 = vmul.f32 %v4114, %v4114
        %v4147 = vmul.f32 %v4115, %v4115
        %v4148 = vmul.f32 %v4116, %v4116
        %v4149 = vmul.f32 %v4117, %v4117
        %v4150 = vmul.f32 %v4118, %v4118
        %v4151 = vmul.f32 %v4119, %v4119
        %v4152 = vmul.f32 %v4120, %v4120
        %v4153 = vmul.f32 %v4121, %v4121
        %v4154 = vmul.f32 %v4122, %v4122
        %v4155 = vmul.f32 %v4123, %v4123
        %v4156 = vmul.f32 %v4124, %v4124
        %v4157 = vmul.f32 %v4125, %v4125
        %v4158 = vmul.f32 %v4126, %v4126
        %v4159 = vmul.f32 %v4127, %v4127
        %v4160 = vmul.f32 %v4128, %v4128
        %v4161 = vmul.f32 %v4129, %v4129
        %v4162 = vmul.f32 %v4130, %v4130
        %v4163 = vsel %vm1264, %v4131, 0.0
        %v4164 = vsel %vm1264, %v4132, 0.0
        %v4165 = vadd.f32 %v4163, %v4164
        %v4166 = vsel %vm1264, %v4133, 0.0
        %v4167 = vadd.f32 %v4165, %v4166
        %v4168 = vsel %vm1264, %v4134, 0.0
        %v4169 = vadd.f32 %v4167, %v4168
        %v4170 = vsel %vm1264, %v4135, 0.0
        %v4171 = vadd.f32 %v4169, %v4170
        %v4172 = vsel %vm1264, %v4136, 0.0
        %v4173 = vadd.f32 %v4171, %v4172
        %v4174 = vsel %vm1264, %v4137, 0.0
        %v4175 = vadd.f32 %v4173, %v4174
        %v4176 = vsel %vm1264, %v4138, 0.0
        %v4177 = vadd.f32 %v4175, %v4176
        %v4178 = vsel %vm1264, %v4139, 0.0
        %v4179 = vadd.f32 %v4177, %v4178
        %v4180 = vsel %vm1264, %v4140, 0.0
        %v4181 = vadd.f32 %v4179, %v4180
        %v4182 = vsel %vm1264, %v4141, 0.0
        %v4183 = vadd.f32 %v4181, %v4182
        %v4184 = vsel %vm1264, %v4142, 0.0
        %v4185 = vadd.f32 %v4183, %v4184
        %v4186 = vsel %vm1264, %v4143, 0.0
        %v4187 = vadd.f32 %v4185, %v4186
        %v4188 = vsel %vm1264, %v4144, 0.0
        %v4189 = vadd.f32 %v4187, %v4188
        %v4190 = vsel %vm1264, %v4145, 0.0
        %v4191 = vadd.f32 %v4189, %v4190
        %v4192 = vsel %vm1264, %v4146, 0.0
        %v4193 = vadd.f32 %v4191, %v4192
        %v4194 = vsel %vm1264, %v4147, 0.0
        %v4195 = vadd.f32 %v4193, %v4194
        %v4196 = vsel %vm1264, %v4148, 0.0
        %v4197 = vadd.f32 %v4195, %v4196
        %v4198 = vsel %vm1264, %v4149, 0.0
        %v4199 = vadd.f32 %v4197, %v4198
        %v4200 = vsel %vm1264, %v4150, 0.0
        %v4201 = vadd.f32 %v4199, %v4200
        %v4202 = vsel %vm1264, %v4151, 0.0
        %v4203 = vadd.f32 %v4201, %v4202
        %v4204 = vsel %vm1264, %v4152, 0.0
        %v4205 = vadd.f32 %v4203, %v4204
        %v4206 = vsel %vm1264, %v4153, 0.0
        %v4207 = vadd.f32 %v4205, %v4206
        %v4208 = vsel %vm1264, %v4154, 0.0
        %v4209 = vadd.f32 %v4207, %v4208
        %v4210 = vsel %vm1264, %v4155, 0.0
        %v4211 = vadd.f32 %v4209, %v4210
        %v4212 = vsel %vm1264, %v4156, 0.0
        %v4213 = vadd.f32 %v4211, %v4212
        %v4214 = vsel %vm1264, %v4157, 0.0
        %v4215 = vadd.f32 %v4213, %v4214
        %v4216 = vsel %vm1264, %v4158, 0.0
        %v4217 = vadd.f32 %v4215, %v4216
        %v4218 = vsel %vm1264, %v4159, 0.0
        %v4219 = vadd.f32 %v4217, %v4218
        %v4220 = vsel %vm1264, %v4160, 0.0
        %v4221 = vadd.f32 %v4219, %v4220
        %v4222 = vsel %vm1264, %v4161, 0.0
        %v4223 = vadd.f32 %v4221, %v4222
        %v4224 = vsel %vm1264, %v4162, 0.0
        %v4225 = vadd.f32 %v4223, %v4224
        %v4226 = vrot.slane %v4225, 4
        %v4227 = vadd.f32 %v4225, %v4226
        %v4228 = vrot.slane %v4227, 2
        %v4229 = vadd.f32 %v4227, %v4228
        %v4230 = vrot.slane %v4229, 1
        %v4231 = vadd.f32 %v4229, %v4230
        %v4232 = vmul.f32 %v4231, 0.00390625
        %v4233 = vadd.f32 %v4232, 1e-05
        %v4234 = vrsqrt.pop %v4233
        %v4235 = vmul.f32 %v4099, %v4234
        %v4236 = vmul.f32 %v4100, %v4234
        %v4237 = vmul.f32 %v4101, %v4234
        %v4238 = vmul.f32 %v4102, %v4234
        %v4239 = vmul.f32 %v4103, %v4234
        %v4240 = vmul.f32 %v4104, %v4234
        %v4241 = vmul.f32 %v4105, %v4234
        %v4242 = vmul.f32 %v4106, %v4234
        %v4243 = vmul.f32 %v4107, %v4234
        %v4244 = vmul.f32 %v4108, %v4234
        %v4245 = vmul.f32 %v4109, %v4234
        %v4246 = vmul.f32 %v4110, %v4234
        %v4247 = vmul.f32 %v4111, %v4234
        %v4248 = vmul.f32 %v4112, %v4234
        %v4249 = vmul.f32 %v4113, %v4234
        %v4250 = vmul.f32 %v4114, %v4234
        %v4251 = vmul.f32 %v4115, %v4234
        %v4252 = vmul.f32 %v4116, %v4234
        %v4253 = vmul.f32 %v4117, %v4234
        %v4254 = vmul.f32 %v4118, %v4234
        %v4255 = vmul.f32 %v4119, %v4234
        %v4256 = vmul.f32 %v4120, %v4234
        %v4257 = vmul.f32 %v4121, %v4234
        %v4258 = vmul.f32 %v4122, %v4234
        %v4259 = vmul.f32 %v4123, %v4234
        %v4260 = vmul.f32 %v4124, %v4234
        %v4261 = vmul.f32 %v4125, %v4234
        %v4262 = vmul.f32 %v4126, %v4234
        %v4263 = vmul.f32 %v4127, %v4234
        %v4264 = vmul.f32 %v4128, %v4234
        %v4265 = vmul.f32 %v4129, %v4234
        %v4266 = vmul.f32 %v4130, %v4234
        %v4267 = vld [vmem:[%s3 + $0x1] sm:$0x1]
        %v4268 = vlaneseq
        %v4269 = vshrl.u32 %v4268, 7
        %v4270 = vsub.s32 0, %v4269
        %v4271 = vrot.slane %v4267, %v4270
        %v4272 = vmul.f32 %v4235, %v4271
        %v4273 = vmul.f32 %v4236, %v4271
        %v4274 = vmul.f32 %v4237, %v4271
        %v4275 = vmul.f32 %v4238, %v4271
        %v4276 = vmul.f32 %v4239, %v4271
        %v4277 = vmul.f32 %v4240, %v4271
        %v4278 = vmul.f32 %v4241, %v4271
        %v4279 = vmul.f32 %v4242, %v4271
        %v4280 = vmul.f32 %v4243, %v4271
        %v4281 = vmul.f32 %v4244, %v4271
        %v4282 = vmul.f32 %v4245, %v4271
        %v4283 = vmul.f32 %v4246, %v4271
        %v4284 = vmul.f32 %v4247, %v4271
        %v4285 = vmul.f32 %v4248, %v4271
        %v4286 = vmul.f32 %v4249, %v4271
        %v4287 = vmul.f32 %v4250, %v4271
        %v4288 = vmul.f32 %v4251, %v4271
        %v4289 = vmul.f32 %v4252, %v4271
        %v4290 = vmul.f32 %v4253, %v4271
        %v4291 = vmul.f32 %v4254, %v4271
        %v4292 = vmul.f32 %v4255, %v4271
        %v4293 = vmul.f32 %v4256, %v4271
        %v4294 = vmul.f32 %v4257, %v4271
        %v4295 = vmul.f32 %v4258, %v4271
        %v4296 = vmul.f32 %v4259, %v4271
        %v4297 = vmul.f32 %v4260, %v4271
        %v4298 = vmul.f32 %v4261, %v4271
        %v4299 = vmul.f32 %v4262, %v4271
        %v4300 = vmul.f32 %v4263, %v4271
        %v4301 = vmul.f32 %v4264, %v4271
        %v4302 = vmul.f32 %v4265, %v4271
        %v4303 = vmul.f32 %v4266, %v4271
        %v4304 = vld [vmem:[%s4 + $0x1] sm:$0x1]
        %v4305 = vlaneseq
        %v4306 = vshrl.u32 %v4305, 7
        %v4307 = vsub.s32 0, %v4306
        %v4308 = vrot.slane %v4304, %v4307
        %v4309 = vadd.f32 %v4272, %v4308
        %v4310 = vadd.f32 %v4273, %v4308
        %v4311 = vadd.f32 %v4274, %v4308
        %v4312 = vadd.f32 %v4275, %v4308
        %v4313 = vadd.f32 %v4276, %v4308
        %v4314 = vadd.f32 %v4277, %v4308
        %v4315 = vadd.f32 %v4278, %v4308
        %v4316 = vadd.f32 %v4279, %v4308
        %v4317 = vadd.f32 %v4280, %v4308
        %v4318 = vadd.f32 %v4281, %v4308
        %v4319 = vadd.f32 %v4282, %v4308
        %v4320 = vadd.f32 %v4283, %v4308
        %v4321 = vadd.f32 %v4284, %v4308
        %v4322 = vadd.f32 %v4285, %v4308
        %v4323 = vadd.f32 %v4286, %v4308
        %v4324 = vadd.f32 %v4287, %v4308
        %v4325 = vadd.f32 %v4288, %v4308
        %v4326 = vadd.f32 %v4289, %v4308
        %v4327 = vadd.f32 %v4290, %v4308
        %v4328 = vadd.f32 %v4291, %v4308
        %v4329 = vadd.f32 %v4292, %v4308
        %v4330 = vadd.f32 %v4293, %v4308
        %v4331 = vadd.f32 %v4294, %v4308
        %v4332 = vadd.f32 %v4295, %v4308
        %v4333 = vadd.f32 %v4296, %v4308
        %v4334 = vadd.f32 %v4297, %v4308
        %v4335 = vadd.f32 %v4298, %v4308
        %v4336 = vadd.f32 %v4299, %v4308
        %v4337 = vadd.f32 %v4300, %v4308
        %v4338 = vadd.f32 %v4301, %v4308
        %v4339 = vadd.f32 %v4302, %v4308
        %v4340 = vadd.f32 %v4303, %v4308
        %v4341 = vmax.f32 %v4309, 0.0
        %v4342 = vmax.f32 %v4310, 0.0
        %v4343 = vmax.f32 %v4311, 0.0
        %v4344 = vmax.f32 %v4312, 0.0
        %v4345 = vmax.f32 %v4313, 0.0
        %v4346 = vmax.f32 %v4314, 0.0
        %v4347 = vmax.f32 %v4315, 0.0
        %v4348 = vmax.f32 %v4316, 0.0
        %v4349 = vmax.f32 %v4317, 0.0
        %v4350 = vmax.f32 %v4318, 0.0
        %v4351 = vmax.f32 %v4319, 0.0
        %v4352 = vmax.f32 %v4320, 0.0
        %v4353 = vmax.f32 %v4321, 0.0
        %v4354 = vmax.f32 %v4322, 0.0
        %v4355 = vmax.f32 %v4323, 0.0
        %v4356 = vmax.f32 %v4324, 0.0
        %v4357 = vmax.f32 %v4325, 0.0
        %v4358 = vmax.f32 %v4326, 0.0
        %v4359 = vmax.f32 %v4327, 0.0
        %v4360 = vmax.f32 %v4328, 0.0
        %v4361 = vmax.f32 %v4329, 0.0
        %v4362 = vmax.f32 %v4330, 0.0
        %v4363 = vmax.f32 %v4331, 0.0
        %v4364 = vmax.f32 %v4332, 0.0
        %v4365 = vmax.f32 %v4333, 0.0
        %v4366 = vmax.f32 %v4334, 0.0
        %v4367 = vmax.f32 %v4335, 0.0
        %v4368 = vmax.f32 %v4336, 0.0
        %v4369 = vmax.f32 %v4337, 0.0
        %v4370 = vmax.f32 %v4338, 0.0
        %v4371 = vmax.f32 %v4339, 0.0
        %v4372 = vmax.f32 %v4340, 0.0
        %v4405 = vrot.slane %v4341, 7
        %v4406 = vrot.slane %v4342, 7
        %v4407 = vsel %vm341, %v4405, %v4406
        %v4408 = vrot.slane %v4343, 7
        %v4409 = vrot.slane %v4344, 7
        %v4410 = vsel %vm341, %v4408, %v4409
        %v4411 = vrot.slane %v4345, 7
        %v4412 = vrot.slane %v4346, 7
        %v4413 = vsel %vm341, %v4411, %v4412
        %v4414 = vrot.slane %v4347, 7
        %v4415 = vrot.slane %v4348, 7
        %v4416 = vsel %vm341, %v4414, %v4415
        %v4417 = vrot.slane %v4349, 7
        %v4418 = vrot.slane %v4350, 7
        %v4419 = vsel %vm341, %v4417, %v4418
        %v4420 = vrot.slane %v4351, 7
        %v4421 = vrot.slane %v4352, 7
        %v4422 = vsel %vm341, %v4420, %v4421
        %v4423 = vrot.slane %v4353, 7
        %v4424 = vrot.slane %v4354, 7
        %v4425 = vsel %vm341, %v4423, %v4424
        %v4426 = vrot.slane %v4355, 7
        %v4427 = vrot.slane %v4356, 7
        %v4428 = vsel %vm341, %v4426, %v4427
        %v4429 = vrot.slane %v4357, 7
        %v4430 = vrot.slane %v4358, 7
        %v4431 = vsel %vm341, %v4429, %v4430
        %v4432 = vrot.slane %v4359, 7
        %v4433 = vrot.slane %v4360, 7
        %v4434 = vsel %vm341, %v4432, %v4433
        %v4435 = vrot.slane %v4361, 7
        %v4436 = vrot.slane %v4362, 7
        %v4437 = vsel %vm341, %v4435, %v4436
        %v4438 = vrot.slane %v4363, 7
        %v4439 = vrot.slane %v4364, 7
        %v4440 = vsel %vm341, %v4438, %v4439
        %v4441 = vrot.slane %v4365, 7
        %v4442 = vrot.slane %v4366, 7
        %v4443 = vsel %vm341, %v4441, %v4442
        %v4444 = vrot.slane %v4367, 7
        %v4445 = vrot.slane %v4368, 7
        %v4446 = vsel %vm341, %v4444, %v4445
        %v4447 = vrot.slane %v4369, 7
        %v4448 = vrot.slane %v4370, 7
        %v4449 = vsel %vm341, %v4447, %v4448
        %v4450 = vrot.slane %v4371, 7
        %v4451 = vrot.slane %v4372, 7
        %v4452 = vsel %vm341, %v4450, %v4451
        %v4500 = vsel %vm341, 0.0, %v4405
        %v4501 = vsel %vm341, 0.0, %v4408
        %v4502 = vsel %vm341, 0.0, %v4411
        %v4503 = vsel %vm341, 0.0, %v4414
        %v4504 = vsel %vm341, 0.0, %v4417
        %v4505 = vsel %vm341, 0.0, %v4420
        %v4506 = vsel %vm341, 0.0, %v4423
        %v4507 = vsel %vm341, 0.0, %v4426
        %v4508 = vsel %vm341, 0.0, %v4429
        %v4509 = vsel %vm341, 0.0, %v4432
        %v4510 = vsel %vm341, 0.0, %v4435
        %v4511 = vsel %vm341, 0.0, %v4438
        %v4512 = vsel %vm341, 0.0, %v4441
        %v4513 = vsel %vm341, 0.0, %v4444
        %v4514 = vsel %vm341, 0.0, %v4447
        %v4515 = vsel %vm341, 0.0, %v4450
        %v4516 = vsel %vm341, %v4406, 0.0
        %v4517 = vsel %vm341, %v4409, 0.0
        %v4518 = vsel %vm341, %v4412, 0.0
        %v4519 = vsel %vm341, %v4415, 0.0
        %v4520 = vsel %vm341, %v4418, 0.0
        %v4521 = vsel %vm341, %v4421, 0.0
        %v4522 = vsel %vm341, %v4424, 0.0
        %v4523 = vsel %vm341, %v4427, 0.0
        %v4524 = vsel %vm341, %v4430, 0.0
        %v4525 = vsel %vm341, %v4433, 0.0
        %v4526 = vsel %vm341, %v4436, 0.0
        %v4527 = vsel %vm341, %v4439, 0.0
        %v4528 = vsel %vm341, %v4442, 0.0
        %v4529 = vsel %vm341, %v4445, 0.0
        %v4530 = vsel %vm341, %v4448, 0.0
        %v4531 = vsel %vm341, %v4451, 0.0
        %v4562 = vrot.slane %v4500, 1
        %v4563 = vrot.slane %v4407, 1
        %v4564 = vsel %vm500, %v4562, %v4563
        %v4565 = vrot.slane %v4516, 1
        %v4566 = vsel %vm500, %v4563, %v4565
        %v4567 = vrot.slane %v4501, 1
        %v4568 = vrot.slane %v4410, 1
        %v4569 = vsel %vm500, %v4567, %v4568
        %v4570 = vrot.slane %v4517, 1
        %v4571 = vsel %vm500, %v4568, %v4570
        %v4572 = vrot.slane %v4502, 1
        %v4573 = vrot.slane %v4413, 1
        %v4574 = vsel %vm500, %v4572, %v4573
        %v4575 = vrot.slane %v4518, 1
        %v4576 = vsel %vm500, %v4573, %v4575
        %v4577 = vrot.slane %v4503, 1
        %v4578 = vrot.slane %v4416, 1
        %v4579 = vsel %vm500, %v4577, %v4578
        %v4580 = vrot.slane %v4519, 1
        %v4581 = vsel %vm500, %v4578, %v4580
        %v4582 = vrot.slane %v4504, 1
        %v4583 = vrot.slane %v4419, 1
        %v4584 = vsel %vm500, %v4582, %v4583
        %v4585 = vrot.slane %v4520, 1
        %v4586 = vsel %vm500, %v4583, %v4585
        %v4587 = vrot.slane %v4505, 1
        %v4588 = vrot.slane %v4422, 1
        %v4589 = vsel %vm500, %v4587, %v4588
        %v4590 = vrot.slane %v4521, 1
        %v4591 = vsel %vm500, %v4588, %v4590
        %v4592 = vrot.slane %v4506, 1
        %v4593 = vrot.slane %v4425, 1
        %v4594 = vsel %vm500, %v4592, %v4593
        %v4595 = vrot.slane %v4522, 1
        %v4596 = vsel %vm500, %v4593, %v4595
        %v4597 = vrot.slane %v4507, 1
        %v4598 = vrot.slane %v4428, 1
        %v4599 = vsel %vm500, %v4597, %v4598
        %v4600 = vrot.slane %v4523, 1
        %v4601 = vsel %vm500, %v4598, %v4600
        %v4602 = vrot.slane %v4508, 1
        %v4603 = vrot.slane %v4431, 1
        %v4604 = vsel %vm500, %v4602, %v4603
        %v4605 = vrot.slane %v4524, 1
        %v4606 = vsel %vm500, %v4603, %v4605
        %v4607 = vrot.slane %v4509, 1
        %v4608 = vrot.slane %v4434, 1
        %v4609 = vsel %vm500, %v4607, %v4608
        %v4610 = vrot.slane %v4525, 1
        %v4611 = vsel %vm500, %v4608, %v4610
        %v4612 = vrot.slane %v4510, 1
        %v4613 = vrot.slane %v4437, 1
        %v4614 = vsel %vm500, %v4612, %v4613
        %v4615 = vrot.slane %v4526, 1
        %v4616 = vsel %vm500, %v4613, %v4615
        %v4617 = vrot.slane %v4511, 1
        %v4618 = vrot.slane %v4440, 1
        %v4619 = vsel %vm500, %v4617, %v4618
        %v4620 = vrot.slane %v4527, 1
        %v4621 = vsel %vm500, %v4618, %v4620
        %v4622 = vrot.slane %v4512, 1
        %v4623 = vrot.slane %v4443, 1
        %v4624 = vsel %vm500, %v4622, %v4623
        %v4625 = vrot.slane %v4528, 1
        %v4626 = vsel %vm500, %v4623, %v4625
        %v4627 = vrot.slane %v4513, 1
        %v4628 = vrot.slane %v4446, 1
        %v4629 = vsel %vm500, %v4627, %v4628
        %v4630 = vrot.slane %v4529, 1
        %v4631 = vsel %vm500, %v4628, %v4630
        %v4632 = vrot.slane %v4514, 1
        %v4633 = vrot.slane %v4449, 1
        %v4634 = vsel %vm500, %v4632, %v4633
        %v4635 = vrot.slane %v4530, 1
        %v4636 = vsel %vm500, %v4633, %v4635
        %4637 = vrot.lane.b32.xlu0 %v4564, 32
        %v4638 = vpop.permute.xlu0 %4637
        %4639 = vrot.lane.b32.xlu0 %v4566, 32
        %v4640 = vpop.permute.xlu0 %4639
        %4641 = vrot.lane.b32.xlu0 %v4569, 32
        %v4642 = vpop.permute.xlu0 %4641
        %4643 = vrot.lane.b32.xlu0 %v4571, 32
        %v4644 = vpop.permute.xlu0 %4643
        %4645 = vrot.lane.b32.xlu0 %v4574, 32
        %v4646 = vpop.permute.xlu0 %4645
        %4647 = vrot.lane.b32.xlu0 %v4576, 32
        %v4648 = vpop.permute.xlu0 %4647
        %4649 = vrot.lane.b32.xlu0 %v4579, 32
        %v4650 = vpop.permute.xlu0 %4649
        %4651 = vrot.lane.b32.xlu0 %v4581, 32
        %v4652 = vpop.permute.xlu0 %4651
        %4653 = vrot.lane.b32.xlu0 %v4584, 32
        %v4654 = vpop.permute.xlu0 %4653
        %4655 = vrot.lane.b32.xlu0 %v4586, 32
        %v4656 = vpop.permute.xlu0 %4655
        %4657 = vrot.lane.b32.xlu0 %v4589, 32
        %v4658 = vpop.permute.xlu0 %4657
        %4659 = vrot.lane.b32.xlu0 %v4591, 32
        %v4660 = vpop.permute.xlu0 %4659
        %4661 = vrot.lane.b32.xlu0 %v4594, 32
        %v4662 = vpop.permute.xlu0 %4661
        %4663 = vrot.lane.b32.xlu0 %v4596, 32
        %v4664 = vpop.permute.xlu0 %4663
        %4665 = vrot.lane.b32.xlu0 %v4599, 32
        %v4666 = vpop.permute.xlu0 %4665
        %4667 = vrot.lane.b32.xlu0 %v4601, 32
        %v4668 = vpop.permute.xlu0 %4667
        %4669 = vrot.lane.b32.xlu0 %v4604, 32
        %v4670 = vpop.permute.xlu0 %4669
        %4671 = vrot.lane.b32.xlu0 %v4606, 32
        %v4672 = vpop.permute.xlu0 %4671
        %4673 = vrot.lane.b32.xlu0 %v4609, 32
        %v4674 = vpop.permute.xlu0 %4673
        %4675 = vrot.lane.b32.xlu0 %v4611, 32
        %v4676 = vpop.permute.xlu0 %4675
        %4677 = vrot.lane.b32.xlu0 %v4614, 32
        %v4678 = vpop.permute.xlu0 %4677
        %4679 = vrot.lane.b32.xlu0 %v4616, 32
        %v4680 = vpop.permute.xlu0 %4679
        %4681 = vrot.lane.b32.xlu0 %v4619, 32
        %v4682 = vpop.permute.xlu0 %4681
        %4683 = vrot.lane.b32.xlu0 %v4621, 32
        %v4684 = vpop.permute.xlu0 %4683
        %4685 = vrot.lane.b32.xlu0 %v4624, 32
        %v4686 = vpop.permute.xlu0 %4685
        %4687 = vrot.lane.b32.xlu0 %v4626, 32
        %v4688 = vpop.permute.xlu0 %4687
        %4689 = vrot.lane.b32.xlu0 %v4629, 32
        %v4690 = vpop.permute.xlu0 %4689
        %4691 = vrot.lane.b32.xlu0 %v4631, 32
        %v4692 = vpop.permute.xlu0 %4691
        %4693 = vrot.lane.b32.xlu0 %v4634, 32
        %v4694 = vpop.permute.xlu0 %4693
        %4695 = vrot.lane.b32.xlu0 %v4636, 32
        %v4696 = vpop.permute.xlu0 %4695
        %v4727 = vrot.slane %v4500, 2
        %v4728 = vrot.slane %v4407, 2
        %v4729 = vsel %vm671, %v4727, %v4728
        %v4730 = vrot.slane %v4516, 2
        %v4731 = vsel %vm671, %v4728, %v4730
        %v4732 = vrot.slane %v4501, 2
        %v4733 = vrot.slane %v4410, 2
        %v4734 = vsel %vm671, %v4732, %v4733
        %v4735 = vrot.slane %v4517, 2
        %v4736 = vsel %vm671, %v4733, %v4735
        %v4737 = vrot.slane %v4502, 2
        %v4738 = vrot.slane %v4413, 2
        %v4739 = vsel %vm671, %v4737, %v4738
        %v4740 = vrot.slane %v4518, 2
        %v4741 = vsel %vm671, %v4738, %v4740
        %v4742 = vrot.slane %v4503, 2
        %v4743 = vrot.slane %v4416, 2
        %v4744 = vsel %vm671, %v4742, %v4743
        %v4745 = vrot.slane %v4519, 2
        %v4746 = vsel %vm671, %v4743, %v4745
        %v4747 = vrot.slane %v4504, 2
        %v4748 = vrot.slane %v4419, 2
        %v4749 = vsel %vm671, %v4747, %v4748
        %v4750 = vrot.slane %v4520, 2
        %v4751 = vsel %vm671, %v4748, %v4750
        %v4752 = vrot.slane %v4505, 2
        %v4753 = vrot.slane %v4422, 2
        %v4754 = vsel %vm671, %v4752, %v4753
        %v4755 = vrot.slane %v4521, 2
        %v4756 = vsel %vm671, %v4753, %v4755
        %v4757 = vrot.slane %v4506, 2
        %v4758 = vrot.slane %v4425, 2
        %v4759 = vsel %vm671, %v4757, %v4758
        %v4760 = vrot.slane %v4522, 2
        %v4761 = vsel %vm671, %v4758, %v4760
        %v4762 = vrot.slane %v4507, 2
        %v4763 = vrot.slane %v4428, 2
        %v4764 = vsel %vm671, %v4762, %v4763
        %v4765 = vrot.slane %v4523, 2
        %v4766 = vsel %vm671, %v4763, %v4765
        %v4767 = vrot.slane %v4508, 2
        %v4768 = vrot.slane %v4431, 2
        %v4769 = vsel %vm671, %v4767, %v4768
        %v4770 = vrot.slane %v4524, 2
        %v4771 = vsel %vm671, %v4768, %v4770
        %v4772 = vrot.slane %v4509, 2
        %v4773 = vrot.slane %v4434, 2
        %v4774 = vsel %vm671, %v4772, %v4773
        %v4775 = vrot.slane %v4525, 2
        %v4776 = vsel %vm671, %v4773, %v4775
        %v4777 = vrot.slane %v4510, 2
        %v4778 = vrot.slane %v4437, 2
        %v4779 = vsel %vm671, %v4777, %v4778
        %v4780 = vrot.slane %v4526, 2
        %v4781 = vsel %vm671, %v4778, %v4780
        %v4782 = vrot.slane %v4511, 2
        %v4783 = vrot.slane %v4440, 2
        %v4784 = vsel %vm671, %v4782, %v4783
        %v4785 = vrot.slane %v4527, 2
        %v4786 = vsel %vm671, %v4783, %v4785
        %v4787 = vrot.slane %v4512, 2
        %v4788 = vrot.slane %v4443, 2
        %v4789 = vsel %vm671, %v4787, %v4788
        %v4790 = vrot.slane %v4528, 2
        %v4791 = vsel %vm671, %v4788, %v4790
        %v4792 = vrot.slane %v4513, 2
        %v4793 = vrot.slane %v4446, 2
        %v4794 = vsel %vm671, %v4792, %v4793
        %v4795 = vrot.slane %v4529, 2
        %v4796 = vsel %vm671, %v4793, %v4795
        %v4797 = vrot.slane %v4514, 2
        %v4798 = vrot.slane %v4449, 2
        %v4799 = vsel %vm671, %v4797, %v4798
        %v4800 = vrot.slane %v4530, 2
        %v4801 = vsel %vm671, %v4798, %v4800
        %4802 = vrot.lane.b32.xlu0 %v4729, 64
        %v4803 = vpop.permute.xlu0 %4802
        %4804 = vrot.lane.b32.xlu0 %v4731, 64
        %v4805 = vpop.permute.xlu0 %4804
        %4806 = vrot.lane.b32.xlu0 %v4734, 64
        %v4807 = vpop.permute.xlu0 %4806
        %4808 = vrot.lane.b32.xlu0 %v4736, 64
        %v4809 = vpop.permute.xlu0 %4808
        %4810 = vrot.lane.b32.xlu0 %v4739, 64
        %v4811 = vpop.permute.xlu0 %4810
        %4812 = vrot.lane.b32.xlu0 %v4741, 64
        %v4813 = vpop.permute.xlu0 %4812
        %4814 = vrot.lane.b32.xlu0 %v4744, 64
        %v4815 = vpop.permute.xlu0 %4814
        %4816 = vrot.lane.b32.xlu0 %v4746, 64
        %v4817 = vpop.permute.xlu0 %4816
        %4818 = vrot.lane.b32.xlu0 %v4749, 64
        %v4819 = vpop.permute.xlu0 %4818
        %4820 = vrot.lane.b32.xlu0 %v4751, 64
        %v4821 = vpop.permute.xlu0 %4820
        %4822 = vrot.lane.b32.xlu0 %v4754, 64
        %v4823 = vpop.permute.xlu0 %4822
        %4824 = vrot.lane.b32.xlu0 %v4756, 64
        %v4825 = vpop.permute.xlu0 %4824
        %4826 = vrot.lane.b32.xlu0 %v4759, 64
        %v4827 = vpop.permute.xlu0 %4826
        %4828 = vrot.lane.b32.xlu0 %v4761, 64
        %v4829 = vpop.permute.xlu0 %4828
        %4830 = vrot.lane.b32.xlu0 %v4764, 64
        %v4831 = vpop.permute.xlu0 %4830
        %4832 = vrot.lane.b32.xlu0 %v4766, 64
        %v4833 = vpop.permute.xlu0 %4832
        %4834 = vrot.lane.b32.xlu0 %v4769, 64
        %v4835 = vpop.permute.xlu0 %4834
        %4836 = vrot.lane.b32.xlu0 %v4771, 64
        %v4837 = vpop.permute.xlu0 %4836
        %4838 = vrot.lane.b32.xlu0 %v4774, 64
        %v4839 = vpop.permute.xlu0 %4838
        %4840 = vrot.lane.b32.xlu0 %v4776, 64
        %v4841 = vpop.permute.xlu0 %4840
        %4842 = vrot.lane.b32.xlu0 %v4779, 64
        %v4843 = vpop.permute.xlu0 %4842
        %4844 = vrot.lane.b32.xlu0 %v4781, 64
        %v4845 = vpop.permute.xlu0 %4844
        %4846 = vrot.lane.b32.xlu0 %v4784, 64
        %v4847 = vpop.permute.xlu0 %4846
        %4848 = vrot.lane.b32.xlu0 %v4786, 64
        %v4849 = vpop.permute.xlu0 %4848
        %4850 = vrot.lane.b32.xlu0 %v4789, 64
        %v4851 = vpop.permute.xlu0 %4850
        %4852 = vrot.lane.b32.xlu0 %v4791, 64
        %v4853 = vpop.permute.xlu0 %4852
        %4854 = vrot.lane.b32.xlu0 %v4794, 64
        %v4855 = vpop.permute.xlu0 %4854
        %4856 = vrot.lane.b32.xlu0 %v4796, 64
        %v4857 = vpop.permute.xlu0 %4856
        %4858 = vrot.lane.b32.xlu0 %v4799, 64
        %v4859 = vpop.permute.xlu0 %4858
        %4860 = vrot.lane.b32.xlu0 %v4801, 64
        %v4861 = vpop.permute.xlu0 %4860
        %4893 = vrot.lane.b32.xlu0 %v4500, 96
        %v4894 = vpop.permute.xlu0 %4893
        %4895 = vrot.lane.b32.xlu0 %v4407, 96
        %v4896 = vpop.permute.xlu0 %4895
        %4897 = vrot.lane.b32.xlu0 %v4501, 96
        %v4898 = vpop.permute.xlu0 %4897
        %4899 = vrot.lane.b32.xlu0 %v4410, 96
        %v4900 = vpop.permute.xlu0 %4899
        %4901 = vrot.lane.b32.xlu0 %v4502, 96
        %v4902 = vpop.permute.xlu0 %4901
        %4903 = vrot.lane.b32.xlu0 %v4413, 96
        %v4904 = vpop.permute.xlu0 %4903
        %4905 = vrot.lane.b32.xlu0 %v4503, 96
        %v4906 = vpop.permute.xlu0 %4905
        %4907 = vrot.lane.b32.xlu0 %v4416, 96
        %v4908 = vpop.permute.xlu0 %4907
        %4909 = vrot.lane.b32.xlu0 %v4504, 96
        %v4910 = vpop.permute.xlu0 %4909
        %4911 = vrot.lane.b32.xlu0 %v4419, 96
        %v4912 = vpop.permute.xlu0 %4911
        %4913 = vrot.lane.b32.xlu0 %v4505, 96
        %v4914 = vpop.permute.xlu0 %4913
        %4915 = vrot.lane.b32.xlu0 %v4422, 96
        %v4916 = vpop.permute.xlu0 %4915
        %4917 = vrot.lane.b32.xlu0 %v4506, 96
        %v4918 = vpop.permute.xlu0 %4917
        %4919 = vrot.lane.b32.xlu0 %v4425, 96
        %v4920 = vpop.permute.xlu0 %4919
        %4921 = vrot.lane.b32.xlu0 %v4507, 96
        %v4922 = vpop.permute.xlu0 %4921
        %4923 = vrot.lane.b32.xlu0 %v4428, 96
        %v4924 = vpop.permute.xlu0 %4923
        %4925 = vrot.lane.b32.xlu0 %v4508, 96
        %v4926 = vpop.permute.xlu0 %4925
        %4927 = vrot.lane.b32.xlu0 %v4431, 96
        %v4928 = vpop.permute.xlu0 %4927
        %4929 = vrot.lane.b32.xlu0 %v4509, 96
        %v4930 = vpop.permute.xlu0 %4929
        %4931 = vrot.lane.b32.xlu0 %v4434, 96
        %v4932 = vpop.permute.xlu0 %4931
        %4933 = vrot.lane.b32.xlu0 %v4510, 96
        %v4934 = vpop.permute.xlu0 %4933
        %4935 = vrot.lane.b32.xlu0 %v4437, 96
        %v4936 = vpop.permute.xlu0 %4935
        %4937 = vrot.lane.b32.xlu0 %v4511, 96
        %v4938 = vpop.permute.xlu0 %4937
        %4939 = vrot.lane.b32.xlu0 %v4440, 96
        %v4940 = vpop.permute.xlu0 %4939
        %4941 = vrot.lane.b32.xlu0 %v4512, 96
        %v4942 = vpop.permute.xlu0 %4941
        %4943 = vrot.lane.b32.xlu0 %v4443, 96
        %v4944 = vpop.permute.xlu0 %4943
        %4945 = vrot.lane.b32.xlu0 %v4513, 96
        %v4946 = vpop.permute.xlu0 %4945
        %4947 = vrot.lane.b32.xlu0 %v4446, 96
        %v4948 = vpop.permute.xlu0 %4947
        %4949 = vrot.lane.b32.xlu0 %v4514, 96
        %v4950 = vpop.permute.xlu0 %4949
        %4951 = vrot.lane.b32.xlu0 %v4449, 96
        %v4952 = vpop.permute.xlu0 %4951
        %4953 = vrot.lane.b32.xlu0 %v4515, 96
        %v4954 = vpop.permute.xlu0 %4953
        %4955 = vrot.lane.b32.xlu0 %v4452, 96
        %v4956 = vpop.permute.xlu0 %4955
        %v4990 = vrot.slane %v4515, 1
        %v4991 = vrot.slane %v4452, 1
        %v4992 = vsel %vm500, %v4990, %v4991
        %v4993 = vrot.slane %v4531, 1
        %v4994 = vsel %vm500, %v4991, %v4993
        %v5027 = vrot.slane %v4515, 2
        %v5028 = vrot.slane %v4452, 2
        %v5029 = vsel %vm671, %v5027, %v5028
        %v5030 = vrot.slane %v4531, 2
        %v5031 = vsel %vm671, %v5028, %v5030
        %5032 = vrot.lane.b32.xlu0 %v4729, 32
        %v5033 = vpop.permute.xlu0 %5032
        %5034 = vrot.lane.b32.xlu0 %v4731, 32
        %v5035 = vpop.permute.xlu0 %5034
        %5036 = vrot.lane.b32.xlu0 %v4734, 32
        %v5037 = vpop.permute.xlu0 %5036
        %5038 = vrot.lane.b32.xlu0 %v4736, 32
        %v5039 = vpop.permute.xlu0 %5038
        %5040 = vrot.lane.b32.xlu0 %v4739, 32
        %v5041 = vpop.permute.xlu0 %5040
        %5042 = vrot.lane.b32.xlu0 %v4741, 32
        %v5043 = vpop.permute.xlu0 %5042
        %5044 = vrot.lane.b32.xlu0 %v4744, 32
        %v5045 = vpop.permute.xlu0 %5044
        %5046 = vrot.lane.b32.xlu0 %v4746, 32
        %v5047 = vpop.permute.xlu0 %5046
        %5048 = vrot.lane.b32.xlu0 %v4749, 32
        %v5049 = vpop.permute.xlu0 %5048
        %5050 = vrot.lane.b32.xlu0 %v4751, 32
        %v5051 = vpop.permute.xlu0 %5050
        %5052 = vrot.lane.b32.xlu0 %v4754, 32
        %v5053 = vpop.permute.xlu0 %5052
        %5054 = vrot.lane.b32.xlu0 %v4756, 32
        %v5055 = vpop.permute.xlu0 %5054
        %5056 = vrot.lane.b32.xlu0 %v4759, 32
        %v5057 = vpop.permute.xlu0 %5056
        %5058 = vrot.lane.b32.xlu0 %v4761, 32
        %v5059 = vpop.permute.xlu0 %5058
        %5060 = vrot.lane.b32.xlu0 %v4764, 32
        %v5061 = vpop.permute.xlu0 %5060
        %5062 = vrot.lane.b32.xlu0 %v4766, 32
        %v5063 = vpop.permute.xlu0 %5062
        %5064 = vrot.lane.b32.xlu0 %v4769, 32
        %v5065 = vpop.permute.xlu0 %5064
        %5066 = vrot.lane.b32.xlu0 %v4771, 32
        %v5067 = vpop.permute.xlu0 %5066
        %5068 = vrot.lane.b32.xlu0 %v4774, 32
        %v5069 = vpop.permute.xlu0 %5068
        %5070 = vrot.lane.b32.xlu0 %v4776, 32
        %v5071 = vpop.permute.xlu0 %5070
        %5072 = vrot.lane.b32.xlu0 %v4779, 32
        %v5073 = vpop.permute.xlu0 %5072
        %5074 = vrot.lane.b32.xlu0 %v4781, 32
        %v5075 = vpop.permute.xlu0 %5074
        %5076 = vrot.lane.b32.xlu0 %v4784, 32
        %v5077 = vpop.permute.xlu0 %5076
        %5078 = vrot.lane.b32.xlu0 %v4786, 32
        %v5079 = vpop.permute.xlu0 %5078
        %5080 = vrot.lane.b32.xlu0 %v4789, 32
        %v5081 = vpop.permute.xlu0 %5080
        %5082 = vrot.lane.b32.xlu0 %v4791, 32
        %v5083 = vpop.permute.xlu0 %5082
        %5084 = vrot.lane.b32.xlu0 %v4794, 32
        %v5085 = vpop.permute.xlu0 %5084
        %5086 = vrot.lane.b32.xlu0 %v4796, 32
        %v5087 = vpop.permute.xlu0 %5086
        %5088 = vrot.lane.b32.xlu0 %v4799, 32
        %v5089 = vpop.permute.xlu0 %5088
        %5090 = vrot.lane.b32.xlu0 %v4801, 32
        %v5091 = vpop.permute.xlu0 %5090
        %5092 = vrot.lane.b32.xlu0 %v5029, 32
        %v5093 = vpop.permute.xlu0 %5092
        %5094 = vrot.lane.b32.xlu0 %v5031, 32
        %v5095 = vpop.permute.xlu0 %5094
        %5128 = vrot.lane.b32.xlu0 %v4501, 64
        %v5129 = vpop.permute.xlu0 %5128
        %5130 = vrot.lane.b32.xlu0 %v4410, 64
        %v5131 = vpop.permute.xlu0 %5130
        %5132 = vrot.lane.b32.xlu0 %v4502, 64
        %v5133 = vpop.permute.xlu0 %5132
        %5134 = vrot.lane.b32.xlu0 %v4413, 64
        %v5135 = vpop.permute.xlu0 %5134
        %5136 = vrot.lane.b32.xlu0 %v4503, 64
        %v5137 = vpop.permute.xlu0 %5136
        %5138 = vrot.lane.b32.xlu0 %v4416, 64
        %v5139 = vpop.permute.xlu0 %5138
        %5140 = vrot.lane.b32.xlu0 %v4504, 64
        %v5141 = vpop.permute.xlu0 %5140
        %5142 = vrot.lane.b32.xlu0 %v4419, 64
        %v5143 = vpop.permute.xlu0 %5142
        %5144 = vrot.lane.b32.xlu0 %v4505, 64
        %v5145 = vpop.permute.xlu0 %5144
        %5146 = vrot.lane.b32.xlu0 %v4422, 64
        %v5147 = vpop.permute.xlu0 %5146
        %5148 = vrot.lane.b32.xlu0 %v4506, 64
        %v5149 = vpop.permute.xlu0 %5148
        %5150 = vrot.lane.b32.xlu0 %v4425, 64
        %v5151 = vpop.permute.xlu0 %5150
        %5152 = vrot.lane.b32.xlu0 %v4507, 64
        %v5153 = vpop.permute.xlu0 %5152
        %5154 = vrot.lane.b32.xlu0 %v4428, 64
        %v5155 = vpop.permute.xlu0 %5154
        %5156 = vrot.lane.b32.xlu0 %v4508, 64
        %v5157 = vpop.permute.xlu0 %5156
        %5158 = vrot.lane.b32.xlu0 %v4431, 64
        %v5159 = vpop.permute.xlu0 %5158
        %5160 = vrot.lane.b32.xlu0 %v4509, 64
        %v5161 = vpop.permute.xlu0 %5160
        %5162 = vrot.lane.b32.xlu0 %v4434, 64
        %v5163 = vpop.permute.xlu0 %5162
        %5164 = vrot.lane.b32.xlu0 %v4510, 64
        %v5165 = vpop.permute.xlu0 %5164
        %5166 = vrot.lane.b32.xlu0 %v4437, 64
        %v5167 = vpop.permute.xlu0 %5166
        %5168 = vrot.lane.b32.xlu0 %v4511, 64
        %v5169 = vpop.permute.xlu0 %5168
        %5170 = vrot.lane.b32.xlu0 %v4440, 64
        %v5171 = vpop.permute.xlu0 %5170
        %5172 = vrot.lane.b32.xlu0 %v4512, 64
        %v5173 = vpop.permute.xlu0 %5172
        %5174 = vrot.lane.b32.xlu0 %v4443, 64
        %v5175 = vpop.permute.xlu0 %5174
        %5176 = vrot.lane.b32.xlu0 %v4513, 64
        %v5177 = vpop.permute.xlu0 %5176
        %5178 = vrot.lane.b32.xlu0 %v4446, 64
        %v5179 = vpop.permute.xlu0 %5178
        %5180 = vrot.lane.b32.xlu0 %v4514, 64
        %v5181 = vpop.permute.xlu0 %5180
        %5182 = vrot.lane.b32.xlu0 %v4449, 64
        %v5183 = vpop.permute.xlu0 %5182
        %5184 = vrot.lane.b32.xlu0 %v4515, 64
        %v5185 = vpop.permute.xlu0 %5184
        %5186 = vrot.lane.b32.xlu0 %v4452, 64
        %v5187 = vpop.permute.xlu0 %5186
        %5218 = vrot.lane.b32.xlu0 %v4569, 96
        %v5219 = vpop.permute.xlu0 %5218
        %5220 = vrot.lane.b32.xlu0 %v4571, 96
        %v5221 = vpop.permute.xlu0 %5220
        %5222 = vrot.lane.b32.xlu0 %v4574, 96
        %v5223 = vpop.permute.xlu0 %5222
        %5224 = vrot.lane.b32.xlu0 %v4576, 96
        %v5225 = vpop.permute.xlu0 %5224
        %5226 = vrot.lane.b32.xlu0 %v4579, 96
        %v5227 = vpop.permute.xlu0 %5226
        %5228 = vrot.lane.b32.xlu0 %v4581, 96
        %v5229 = vpop.permute.xlu0 %5228
        %5230 = vrot.lane.b32.xlu0 %v4584, 96
        %v5231 = vpop.permute.xlu0 %5230
        %5232 = vrot.lane.b32.xlu0 %v4586, 96
        %v5233 = vpop.permute.xlu0 %5232
        %5234 = vrot.lane.b32.xlu0 %v4589, 96
        %v5235 = vpop.permute.xlu0 %5234
        %5236 = vrot.lane.b32.xlu0 %v4591, 96
        %v5237 = vpop.permute.xlu0 %5236
        %5238 = vrot.lane.b32.xlu0 %v4594, 96
        %v5239 = vpop.permute.xlu0 %5238
        %5240 = vrot.lane.b32.xlu0 %v4596, 96
        %v5241 = vpop.permute.xlu0 %5240
        %5242 = vrot.lane.b32.xlu0 %v4599, 96
        %v5243 = vpop.permute.xlu0 %5242
        %5244 = vrot.lane.b32.xlu0 %v4601, 96
        %v5245 = vpop.permute.xlu0 %5244
        %5246 = vrot.lane.b32.xlu0 %v4604, 96
        %v5247 = vpop.permute.xlu0 %5246
        %5248 = vrot.lane.b32.xlu0 %v4606, 96
        %v5249 = vpop.permute.xlu0 %5248
        %5250 = vrot.lane.b32.xlu0 %v4609, 96
        %v5251 = vpop.permute.xlu0 %5250
        %5252 = vrot.lane.b32.xlu0 %v4611, 96
        %v5253 = vpop.permute.xlu0 %5252
        %5254 = vrot.lane.b32.xlu0 %v4614, 96
        %v5255 = vpop.permute.xlu0 %5254
        %5256 = vrot.lane.b32.xlu0 %v4616, 96
        %v5257 = vpop.permute.xlu0 %5256
        %5258 = vrot.lane.b32.xlu0 %v4619, 96
        %v5259 = vpop.permute.xlu0 %5258
        %5260 = vrot.lane.b32.xlu0 %v4621, 96
        %v5261 = vpop.permute.xlu0 %5260
        %5262 = vrot.lane.b32.xlu0 %v4624, 96
        %v5263 = vpop.permute.xlu0 %5262
        %5264 = vrot.lane.b32.xlu0 %v4626, 96
        %v5265 = vpop.permute.xlu0 %5264
        %5266 = vrot.lane.b32.xlu0 %v4629, 96
        %v5267 = vpop.permute.xlu0 %5266
        %5268 = vrot.lane.b32.xlu0 %v4631, 96
        %v5269 = vpop.permute.xlu0 %5268
        %5270 = vrot.lane.b32.xlu0 %v4634, 96
        %v5271 = vpop.permute.xlu0 %5270
        %5272 = vrot.lane.b32.xlu0 %v4636, 96
        %v5273 = vpop.permute.xlu0 %5272
        %5274 = vrot.lane.b32.xlu0 %v4992, 96
        %v5275 = vpop.permute.xlu0 %5274
        %5276 = vrot.lane.b32.xlu0 %v4994, 96
        %v5277 = vpop.permute.xlu0 %5276
        %v5308 = vsel %vm1264, %v4500, %v4638
        %v5309 = vsel %vm1264, %v4407, %v4640
        %v5310 = vsel %vm1264, %v4501, %v4642
        %v5311 = vsel %vm1264, %v4410, %v4644
        %v5312 = vsel %vm1264, %v4502, %v4646
        %v5313 = vsel %vm1264, %v4413, %v4648
        %v5314 = vsel %vm1264, %v4503, %v4650
        %v5315 = vsel %vm1264, %v4416, %v4652
        %v5316 = vsel %vm1264, %v4504, %v4654
        %v5317 = vsel %vm1264, %v4419, %v4656
        %v5318 = vsel %vm1264, %v4505, %v4658
        %v5319 = vsel %vm1264, %v4422, %v4660
        %v5320 = vsel %vm1264, %v4506, %v4662
        %v5321 = vsel %vm1264, %v4425, %v4664
        %v5322 = vsel %vm1264, %v4507, %v4666
        %v5323 = vsel %vm1264, %v4428, %v4668
        %v5324 = vsel %vm1264, %v4508, %v4670
        %v5325 = vsel %vm1264, %v4431, %v4672
        %v5326 = vsel %vm1264, %v4509, %v4674
        %v5327 = vsel %vm1264, %v4434, %v4676
        %v5328 = vsel %vm1264, %v4510, %v4678
        %v5329 = vsel %vm1264, %v4437, %v4680
        %v5330 = vsel %vm1264, %v4511, %v4682
        %v5331 = vsel %vm1264, %v4440, %v4684
        %v5332 = vsel %vm1264, %v4512, %v4686
        %v5333 = vsel %vm1264, %v4443, %v4688
        %v5334 = vsel %vm1264, %v4513, %v4690
        %v5335 = vsel %vm1264, %v4446, %v4692
        %v5336 = vsel %vm1264, %v4514, %v4694
        %v5337 = vsel %vm1264, %v4449, %v4696
        %v5338 = vsel %vm1296, %v5308, %v4803
        %v5339 = vsel %vm1296, %v5309, %v4805
        %v5340 = vsel %vm1296, %v5310, %v4807
        %v5341 = vsel %vm1296, %v5311, %v4809
        %v5342 = vsel %vm1296, %v5312, %v4811
        %v5343 = vsel %vm1296, %v5313, %v4813
        %v5344 = vsel %vm1296, %v5314, %v4815
        %v5345 = vsel %vm1296, %v5315, %v4817
        %v5346 = vsel %vm1296, %v5316, %v4819
        %v5347 = vsel %vm1296, %v5317, %v4821
        %v5348 = vsel %vm1296, %v5318, %v4823
        %v5349 = vsel %vm1296, %v5319, %v4825
        %v5350 = vsel %vm1296, %v5320, %v4827
        %v5351 = vsel %vm1296, %v5321, %v4829
        %v5352 = vsel %vm1296, %v5322, %v4831
        %v5353 = vsel %vm1296, %v5323, %v4833
        %v5354 = vsel %vm1296, %v5324, %v4835
        %v5355 = vsel %vm1296, %v5325, %v4837
        %v5356 = vsel %vm1296, %v5326, %v4839
        %v5357 = vsel %vm1296, %v5327, %v4841
        %v5358 = vsel %vm1296, %v5328, %v4843
        %v5359 = vsel %vm1296, %v5329, %v4845
        %v5360 = vsel %vm1296, %v5330, %v4847
        %v5361 = vsel %vm1296, %v5331, %v4849
        %v5362 = vsel %vm1296, %v5332, %v4851
        %v5363 = vsel %vm1296, %v5333, %v4853
        %v5364 = vsel %vm1296, %v5334, %v4855
        %v5365 = vsel %vm1296, %v5335, %v4857
        %v5366 = vsel %vm1296, %v5336, %v4859
        %v5367 = vsel %vm1296, %v5337, %v4861
        %v5368 = vsel %vm1328, %v1297, %v4894
        %v5369 = vsel %vm1328, %v1297, %v4896
        %v5370 = vsel %vm1328, %v5338, %v4898
        %v5371 = vsel %vm1328, %v5339, %v4900
        %v5372 = vsel %vm1328, %v5340, %v4902
        %v5373 = vsel %vm1328, %v5341, %v4904
        %v5374 = vsel %vm1328, %v5342, %v4906
        %v5375 = vsel %vm1328, %v5343, %v4908
        %v5376 = vsel %vm1328, %v5344, %v4910
        %v5377 = vsel %vm1328, %v5345, %v4912
        %v5378 = vsel %vm1328, %v5346, %v4914
        %v5379 = vsel %vm1328, %v5347, %v4916
        %v5380 = vsel %vm1328, %v5348, %v4918
        %v5381 = vsel %vm1328, %v5349, %v4920
        %v5382 = vsel %vm1328, %v5350, %v4922
        %v5383 = vsel %vm1328, %v5351, %v4924
        %v5384 = vsel %vm1328, %v5352, %v4926
        %v5385 = vsel %vm1328, %v5353, %v4928
        %v5386 = vsel %vm1328, %v5354, %v4930
        %v5387 = vsel %vm1328, %v5355, %v4932
        %v5388 = vsel %vm1328, %v5356, %v4934
        %v5389 = vsel %vm1328, %v5357, %v4936
        %v5390 = vsel %vm1328, %v5358, %v4938
        %v5391 = vsel %vm1328, %v5359, %v4940
        %v5392 = vsel %vm1328, %v5360, %v4942
        %v5393 = vsel %vm1328, %v5361, %v4944
        %v5394 = vsel %vm1328, %v5362, %v4946
        %v5395 = vsel %vm1328, %v5363, %v4948
        %v5396 = vsel %vm1328, %v5364, %v4950
        %v5397 = vsel %vm1328, %v5365, %v4952
        %v5398 = vsel %vm1328, %v5366, %v4954
        %v5399 = vsel %vm1328, %v5367, %v4956
        %v5400 = vsel %vm1264, %v4564, %v5033
        %v5401 = vsel %vm1264, %v4566, %v5035
        %v5402 = vsel %vm1264, %v4569, %v5037
        %v5403 = vsel %vm1264, %v4571, %v5039
        %v5404 = vsel %vm1264, %v4574, %v5041
        %v5405 = vsel %vm1264, %v4576, %v5043
        %v5406 = vsel %vm1264, %v4579, %v5045
        %v5407 = vsel %vm1264, %v4581, %v5047
        %v5408 = vsel %vm1264, %v4584, %v5049
        %v5409 = vsel %vm1264, %v4586, %v5051
        %v5410 = vsel %vm1264, %v4589, %v5053
        %v5411 = vsel %vm1264, %v4591, %v5055
        %v5412 = vsel %vm1264, %v4594, %v5057
        %v5413 = vsel %vm1264, %v4596, %v5059
        %v5414 = vsel %vm1264, %v4599, %v5061
        %v5415 = vsel %vm1264, %v4601, %v5063
        %v5416 = vsel %vm1264, %v4604, %v5065
        %v5417 = vsel %vm1264, %v4606, %v5067
        %v5418 = vsel %vm1264, %v4609, %v5069
        %v5419 = vsel %vm1264, %v4611, %v5071
        %v5420 = vsel %vm1264, %v4614, %v5073
        %v5421 = vsel %vm1264, %v4616, %v5075
        %v5422 = vsel %vm1264, %v4619, %v5077
        %v5423 = vsel %vm1264, %v4621, %v5079
        %v5424 = vsel %vm1264, %v4624, %v5081
        %v5425 = vsel %vm1264, %v4626, %v5083
        %v5426 = vsel %vm1264, %v4629, %v5085
        %v5427 = vsel %vm1264, %v4631, %v5087
        %v5428 = vsel %vm1264, %v4634, %v5089
        %v5429 = vsel %vm1264, %v4636, %v5091
        %v5430 = vsel %vm1264, %v4992, %v5093
        %v5431 = vsel %vm1264, %v4994, %v5095
        %v5432 = vsel %vm1296, %v5400, %v5129
        %v5433 = vsel %vm1296, %v5401, %v5131
        %v5434 = vsel %vm1296, %v5402, %v5133
        %v5435 = vsel %vm1296, %v5403, %v5135
        %v5436 = vsel %vm1296, %v5404, %v5137
        %v5437 = vsel %vm1296, %v5405, %v5139
        %v5438 = vsel %vm1296, %v5406, %v5141
        %v5439 = vsel %vm1296, %v5407, %v5143
        %v5440 = vsel %vm1296, %v5408, %v5145
        %v5441 = vsel %vm1296, %v5409, %v5147
        %v5442 = vsel %vm1296, %v5410, %v5149
        %v5443 = vsel %vm1296, %v5411, %v5151
        %v5444 = vsel %vm1296, %v5412, %v5153
        %v5445 = vsel %vm1296, %v5413, %v5155
        %v5446 = vsel %vm1296, %v5414, %v5157
        %v5447 = vsel %vm1296, %v5415, %v5159
        %v5448 = vsel %vm1296, %v5416, %v5161
        %v5449 = vsel %vm1296, %v5417, %v5163
        %v5450 = vsel %vm1296, %v5418, %v5165
        %v5451 = vsel %vm1296, %v5419, %v5167
        %v5452 = vsel %vm1296, %v5420, %v5169
        %v5453 = vsel %vm1296, %v5421, %v5171
        %v5454 = vsel %vm1296, %v5422, %v5173
        %v5455 = vsel %vm1296, %v5423, %v5175
        %v5456 = vsel %vm1296, %v5424, %v5177
        %v5457 = vsel %vm1296, %v5425, %v5179
        %v5458 = vsel %vm1296, %v5426, %v5181
        %v5459 = vsel %vm1296, %v5427, %v5183
        %v5460 = vsel %vm1296, %v5428, %v5185
        %v5461 = vsel %vm1296, %v5429, %v5187
        %v5462 = vsel %vm1296, %v5430, %v1139
        %v5463 = vsel %vm1296, %v5431, %v1139
        %v5464 = vsel %vm1328, %v5432, %v5219
        %v5465 = vsel %vm1328, %v5433, %v5221
        %v5466 = vsel %vm1328, %v5434, %v5223
        %v5467 = vsel %vm1328, %v5435, %v5225
        %v5468 = vsel %vm1328, %v5436, %v5227
        %v5469 = vsel %vm1328, %v5437, %v5229
        %v5470 = vsel %vm1328, %v5438, %v5231
        %v5471 = vsel %vm1328, %v5439, %v5233
        %v5472 = vsel %vm1328, %v5440, %v5235
        %v5473 = vsel %vm1328, %v5441, %v5237
        %v5474 = vsel %vm1328, %v5442, %v5239
        %v5475 = vsel %vm1328, %v5443, %v5241
        %v5476 = vsel %vm1328, %v5444, %v5243
        %v5477 = vsel %vm1328, %v5445, %v5245
        %v5478 = vsel %vm1328, %v5446, %v5247
        %v5479 = vsel %vm1328, %v5447, %v5249
        %v5480 = vsel %vm1328, %v5448, %v5251
        %v5481 = vsel %vm1328, %v5449, %v5253
        %v5482 = vsel %vm1328, %v5450, %v5255
        %v5483 = vsel %vm1328, %v5451, %v5257
        %v5484 = vsel %vm1328, %v5452, %v5259
        %v5485 = vsel %vm1328, %v5453, %v5261
        %v5486 = vsel %vm1328, %v5454, %v5263
        %v5487 = vsel %vm1328, %v5455, %v5265
        %v5488 = vsel %vm1328, %v5456, %v5267
        %v5489 = vsel %vm1328, %v5457, %v5269
        %v5490 = vsel %vm1328, %v5458, %v5271
        %v5491 = vsel %vm1328, %v5459, %v5273
        %v5492 = vsel %vm1328, %v5460, %v5275
        %v5493 = vsel %vm1328, %v5461, %v5277
        %v5494 = vsel %vm1328, %v5462, %v1232
        %v5495 = vsel %vm1328, %v5463, %v1232
        %v5496 = vld [vmem:[%s5] sm:$0xff]
        %v5497 = vld [vmem:[%s5 + $0x8] sm:$0xff]
        %v5498 = vld [vmem:[%s5 + $0x10] sm:$0xff]
        %v5499 = vld [vmem:[%s5 + $0x18] sm:$0xff]
        %v5500 = vld [vmem:[%s5 + $0x20] sm:$0xff]
        %v5501 = vld [vmem:[%s5 + $0x28] sm:$0xff]
        %v5502 = vld [vmem:[%s5 + $0x30] sm:$0xff]
        %v5503 = vld [vmem:[%s5 + $0x38] sm:$0xff]
        %v5504 = vld [vmem:[%s5 + $0x40] sm:$0xff]
        %v5505 = vld [vmem:[%s5 + $0x48] sm:$0xff]
        %v5506 = vld [vmem:[%s5 + $0x50] sm:$0xff]
        %v5507 = vld [vmem:[%s5 + $0x58] sm:$0xff]
        %v5508 = vld [vmem:[%s5 + $0x60] sm:$0xff]
        %v5509 = vld [vmem:[%s5 + $0x68] sm:$0xff]
        %v5510 = vld [vmem:[%s5 + $0x70] sm:$0xff]
        %v5511 = vld [vmem:[%s5 + $0x78] sm:$0xff]
        %v5512 = vld [vmem:[%s5 + $0x80] sm:$0xff]
        %v5513 = vld [vmem:[%s5 + $0x88] sm:$0xff]
        %v5514 = vld [vmem:[%s5 + $0x90] sm:$0xff]
        %v5515 = vld [vmem:[%s5 + $0x98] sm:$0xff]
        %v5516 = vld [vmem:[%s5 + $0xa0] sm:$0xff]
        %v5517 = vld [vmem:[%s5 + $0xa8] sm:$0xff]
        %v5518 = vld [vmem:[%s5 + $0xb0] sm:$0xff]
        %v5519 = vld [vmem:[%s5 + $0xb8] sm:$0xff]
        %v5520 = vld [vmem:[%s5 + $0xc0] sm:$0xff]
        %v5521 = vld [vmem:[%s5 + $0xc8] sm:$0xff]
        %v5522 = vld [vmem:[%s5 + $0xd0] sm:$0xff]
        %v5523 = vld [vmem:[%s5 + $0xd8] sm:$0xff]
        %v5524 = vld [vmem:[%s5 + $0xe0] sm:$0xff]
        %v5525 = vld [vmem:[%s5 + $0xe8] sm:$0xff]
        %v5526 = vld [vmem:[%s5 + $0xf0] sm:$0xff]
        %v5527 = vld [vmem:[%s5 + $0xf8] sm:$0xff]
        %v5528 = vld [vmem:[%s5 + $0x100] sm:$0xff]
        %v5529 = vld [vmem:[%s5 + $0x108] sm:$0xff]
        %v5530 = vld [vmem:[%s5 + $0x110] sm:$0xff]
        %v5531 = vld [vmem:[%s5 + $0x118] sm:$0xff]
        %v5532 = vld [vmem:[%s6] sm:$0x1]
        %v5534 = vlaneseq
        %v5535 = vshrl.u32 %v5534, 7
        %v5536 = vsub.s32 0, %v5535
        %v5537 = vrot.slane %v5532, %v5536
        %v5539 = vsel %vm1264, %v4734, 0
        %v5541 = vsel %vm1264, %v4736, 0
        %v5543 = vsel %vm1264, %v4739, 0
        %v5545 = vsel %vm1264, %v4741, 0
        %v5547 = vsel %vm1264, %v4744, 0
        %v5549 = vsel %vm1264, %v4746, 0
        %v5551 = vsel %vm1264, %v4749, 0
        %v5553 = vsel %vm1264, %v4751, 0
        %v5555 = vsel %vm1264, %v4754, 0
        %v5557 = vsel %vm1264, %v4756, 0
        %v5559 = vsel %vm1264, %v4759, 0
        %v5561 = vsel %vm1264, %v4761, 0
        %v5563 = vsel %vm1264, %v4764, 0
        %v5565 = vsel %vm1264, %v4766, 0
        %v5567 = vsel %vm1264, %v4769, 0
        %v5569 = vsel %vm1264, %v4771, 0
        %v5571 = vsel %vm1264, %v4774, 0
        %v5573 = vsel %vm1264, %v4776, 0
        %v5575 = vsel %vm1264, %v4779, 0
        %v5577 = vsel %vm1264, %v4781, 0
        %v5579 = vsel %vm1264, %v4784, 0
        %v5581 = vsel %vm1264, %v4786, 0
        %v5583 = vsel %vm1264, %v4789, 0
        %v5585 = vsel %vm1264, %v4791, 0
        %v5587 = vsel %vm1264, %v4794, 0
        %v5589 = vsel %vm1264, %v4796, 0
        %v5591 = vsel %vm1264, %v4799, 0
        %v5593 = vsel %vm1264, %v4801, 0
        %v5595 = vsel %vm1264, %v5029, 0
        %v5597 = vsel %vm1264, %v5031, 0
        %5599 = vmatprep.subr.mxu0 0.0
        %5600 = vmatpush1.msra.mxu0 %v5511
        %5601 = vmatprep.subr.mxu0 0.0
        %5602 = vmatpush1.msra.mxu0 %v5510
        %5603 = vmatprep.subr.mxu0 0.0
        %5604 = vmatpush1.msra.mxu0 %v5509
        %5605 = vmatprep.subr.mxu0 0.0
        %5606 = vmatpush1.msra.mxu0 %v5508
        %5607 = vmatprep.subr.mxu0 0.0
        %5608 = vmatpush1.msra.mxu0 %v5507
        %5609 = vmatprep.subr.mxu0 0.0
        %5610 = vmatpush1.msra.mxu0 %v5506
        %5611 = vmatprep.subr.mxu0 0.0
        %5612 = vmatpush1.msra.mxu0 %v5505
        %5613 = vmatprep.subr.mxu0 0.0
        %5614 = vmatpush1.msra.mxu0 %v5504
        %5615 = vmatprep.subr.mxu0 0.0
        %5616 = vmatpush1.msra.mxu0 %v5503
        %5617 = vmatprep.subr.mxu0 0.0
        %5618 = vmatpush1.msra.mxu0 %v5502
        %5619 = vmatprep.subr.mxu0 0.0
        %5620 = vmatpush1.msra.mxu0 %v5501
        %5621 = vmatprep.subr.mxu0 0.0
        %5622 = vmatpush1.msra.mxu0 %v5500
        %5623 = vmatprep.subr.mxu0 0.0
        %5624 = vmatpush1.msra.mxu0 %v5499
        %5625 = vmatprep.subr.mxu0 0.0
        %5626 = vmatpush1.msra.mxu0 %v5498
        %5627 = vmatprep.subr.mxu0 0.0
        %5628 = vmatpush1.msra.mxu0 %v5497
        %5629 = vmatprep.subr.mxu0 0.0
        %5630 = vmatpush1.msra.mxu0 %v5496
        %5631 = vmatprep.subr.mxu0 0.0
        %5632 = vmatpush2.msra.mxu0 %v5527
        %5633 = vmatprep.subr.mxu0 0.0
        %5634 = vmatpush2.msra.mxu0 %v5526
        %5635 = vmatprep.subr.mxu0 0.0
        %5636 = vmatpush2.msra.mxu0 %v5525
        %5637 = vmatprep.subr.mxu0 0.0
        %5638 = vmatpush2.msra.mxu0 %v5524
        %5639 = vmatprep.subr.mxu0 0.0
        %5640 = vmatpush2.msra.mxu0 %v5523
        %5641 = vmatprep.subr.mxu0 0.0
        %5642 = vmatpush2.msra.mxu0 %v5522
        %5643 = vmatprep.subr.mxu0 0.0
        %5644 = vmatpush2.msra.mxu0 %v5521
        %5645 = vmatprep.subr.mxu0 0.0
        %5646 = vmatpush2.msra.mxu0 %v5520
        %5647 = vmatprep.subr.mxu0 0.0
        %5648 = vmatpush2.msra.mxu0 %v5519
        %5649 = vmatprep.subr.mxu0 0.0
        %5650 = vmatpush2.msra.mxu0 %v5518
        %5651 = vmatprep.subr.mxu0 0.0
        %5652 = vmatpush2.msra.mxu0 %v5517
        %5653 = vmatprep.subr.mxu0 0.0
        %5654 = vmatpush2.msra.mxu0 %v5516
        %5655 = vmatprep.subr.mxu0 0.0
        %5656 = vmatpush2.msra.mxu0 %v5515
        %5657 = vmatprep.subr.mxu0 0.0
        %5658 = vmatpush2.msra.mxu0 %v5514
        %5659 = vmatprep.subr.mxu0 0.0
        %5660 = vmatpush2.msra.mxu0 %v5513
        %5661 = vmatprep.subr.mxu0 0.0
        %5662 = vmatpush2.msra.mxu0 %v5512
        %5663 = vmatprep.mubr.f32.mxu0 %v5464
        %5664 = vmatmul.mubr.f32.gmra.mxu0 %v5368
        %v5665 = vpop.f32.mrf.mxu0
        %v5666 = vadd.f32 %v5537, %v5665
        %v5667 = vpop.f32.mrf.mxu0
        %5668 = vmatprep.mubr.f32.mxu0 %v5465
        %5669 = vmatmul.mubr.f32.gmra.mxu0 %v5369
        %v5670 = vpop.f32.mrf.mxu0
        %v5671 = vadd.f32 %v5537, %v5670
        %v5672 = vpop.f32.mrf.mxu0
        %5673 = vmatprep.mubr.f32.mxu0 %v5466
        %5674 = vmatmul.mubr.f32.gmra.mxu0 %v5370
        %v5675 = vpop.f32.mrf.mxu0
        %v5676 = vadd.f32 %v5537, %v5675
        %v5677 = vpop.f32.mrf.mxu0
        %5678 = vmatprep.mubr.f32.mxu0 %v5467
        %5679 = vmatmul.mubr.f32.gmra.mxu0 %v5371
        %v5680 = vpop.f32.mrf.mxu0
        %v5681 = vadd.f32 %v5537, %v5680
        %v5682 = vpop.f32.mrf.mxu0
        %5683 = vmatprep.mubr.f32.mxu0 %v5468
        %5684 = vmatmul.mubr.f32.gmra.mxu0 %v5372
        %v5685 = vpop.f32.mrf.mxu0
        %v5686 = vadd.f32 %v5537, %v5685
        %v5687 = vpop.f32.mrf.mxu0
        %5688 = vmatprep.mubr.f32.mxu0 %v5469
        %5689 = vmatmul.mubr.f32.gmra.mxu0 %v5373
        %v5690 = vpop.f32.mrf.mxu0
        %v5691 = vadd.f32 %v5537, %v5690
        %v5692 = vpop.f32.mrf.mxu0
        %5693 = vmatprep.mubr.f32.mxu0 %v5470
        %5694 = vmatmul.mubr.f32.gmra.mxu0 %v5374
        %v5695 = vpop.f32.mrf.mxu0
        %v5696 = vadd.f32 %v5537, %v5695
        %v5697 = vpop.f32.mrf.mxu0
        %5698 = vmatprep.mubr.f32.mxu0 %v5471
        %5699 = vmatmul.mubr.f32.gmra.mxu0 %v5375
        %v5700 = vpop.f32.mrf.mxu0
        %v5701 = vadd.f32 %v5537, %v5700
        %v5702 = vpop.f32.mrf.mxu0
        %5703 = vmatprep.mubr.f32.mxu0 %v5472
        %5704 = vmatmul.mubr.f32.gmra.mxu0 %v5376
        %v5705 = vpop.f32.mrf.mxu0
        %v5706 = vadd.f32 %v5537, %v5705
        %v5707 = vpop.f32.mrf.mxu0
        %5708 = vmatprep.mubr.f32.mxu0 %v5473
        %5709 = vmatmul.mubr.f32.gmra.mxu0 %v5377
        %v5710 = vpop.f32.mrf.mxu0
        %v5711 = vadd.f32 %v5537, %v5710
        %v5712 = vpop.f32.mrf.mxu0
        %5713 = vmatprep.mubr.f32.mxu0 %v5474
        %5714 = vmatmul.mubr.f32.gmra.mxu0 %v5378
        %v5715 = vpop.f32.mrf.mxu0
        %v5716 = vadd.f32 %v5537, %v5715
        %v5717 = vpop.f32.mrf.mxu0
        %5718 = vmatprep.mubr.f32.mxu0 %v5475
        %5719 = vmatmul.mubr.f32.gmra.mxu0 %v5379
        %v5720 = vpop.f32.mrf.mxu0
        %v5721 = vadd.f32 %v5537, %v5720
        %v5722 = vpop.f32.mrf.mxu0
        %5723 = vmatprep.mubr.f32.mxu0 %v5476
        %5724 = vmatmul.mubr.f32.gmra.mxu0 %v5380
        %v5725 = vpop.f32.mrf.mxu0
        %v5726 = vadd.f32 %v5537, %v5725
        %v5727 = vpop.f32.mrf.mxu0
        %5728 = vmatprep.mubr.f32.mxu0 %v5477
        %5729 = vmatmul.mubr.f32.gmra.mxu0 %v5381
        %v5730 = vpop.f32.mrf.mxu0
        %v5731 = vadd.f32 %v5537, %v5730
        %v5732 = vpop.f32.mrf.mxu0
        %5733 = vmatprep.mubr.f32.mxu0 %v5478
        %5734 = vmatmul.mubr.f32.gmra.mxu0 %v5382
        %v5735 = vpop.f32.mrf.mxu0
        %v5736 = vadd.f32 %v5537, %v5735
        %v5737 = vpop.f32.mrf.mxu0
        %5738 = vmatprep.mubr.f32.mxu0 %v5479
        %5739 = vmatmul.mubr.f32.gmra.mxu0 %v5383
        %v5740 = vpop.f32.mrf.mxu0
        %v5741 = vadd.f32 %v5537, %v5740
        %v5742 = vpop.f32.mrf.mxu0
        %5743 = vmatprep.mubr.f32.mxu0 %v5480
        %5744 = vmatmul.mubr.f32.gmra.mxu0 %v5384
        %v5745 = vpop.f32.mrf.mxu0
        %v5746 = vadd.f32 %v5537, %v5745
        %v5747 = vpop.f32.mrf.mxu0
        %5748 = vmatprep.mubr.f32.mxu0 %v5481
        %5749 = vmatmul.mubr.f32.gmra.mxu0 %v5385
        %v5750 = vpop.f32.mrf.mxu0
        %v5751 = vadd.f32 %v5537, %v5750
        %v5752 = vpop.f32.mrf.mxu0
        %5753 = vmatprep.mubr.f32.mxu0 %v5482
        %5754 = vmatmul.mubr.f32.gmra.mxu0 %v5386
        %v5755 = vpop.f32.mrf.mxu0
        %v5756 = vadd.f32 %v5537, %v5755
        %v5757 = vpop.f32.mrf.mxu0
        %5758 = vmatprep.mubr.f32.mxu0 %v5483
        %5759 = vmatmul.mubr.f32.gmra.mxu0 %v5387
        %v5760 = vpop.f32.mrf.mxu0
        %v5761 = vadd.f32 %v5537, %v5760
        %v5762 = vpop.f32.mrf.mxu0
        %5763 = vmatprep.mubr.f32.mxu0 %v5484
        %5764 = vmatmul.mubr.f32.gmra.mxu0 %v5388
        %v5765 = vpop.f32.mrf.mxu0
        %v5766 = vadd.f32 %v5537, %v5765
        %v5767 = vpop.f32.mrf.mxu0
        %5768 = vmatprep.mubr.f32.mxu0 %v5485
        %5769 = vmatmul.mubr.f32.gmra.mxu0 %v5389
        %v5770 = vpop.f32.mrf.mxu0
        %v5771 = vadd.f32 %v5537, %v5770
        %v5772 = vpop.f32.mrf.mxu0
        %5773 = vmatprep.mubr.f32.mxu0 %v5486
        %5774 = vmatmul.mubr.f32.gmra.mxu0 %v5390
        %v5775 = vpop.f32.mrf.mxu0
        %v5776 = vadd.f32 %v5537, %v5775
        %v5777 = vpop.f32.mrf.mxu0
        %5778 = vmatprep.mubr.f32.mxu0 %v5487
        %5779 = vmatmul.mubr.f32.gmra.mxu0 %v5391
        %v5780 = vpop.f32.mrf.mxu0
        %v5781 = vadd.f32 %v5537, %v5780
        %v5782 = vpop.f32.mrf.mxu0
        %5783 = vmatprep.mubr.f32.mxu0 %v5488
        %5784 = vmatmul.mubr.f32.gmra.mxu0 %v5392
        %v5785 = vpop.f32.mrf.mxu0
        %v5786 = vadd.f32 %v5537, %v5785
        %v5787 = vpop.f32.mrf.mxu0
        %5788 = vmatprep.mubr.f32.mxu0 %v5489
        %5789 = vmatmul.mubr.f32.gmra.mxu0 %v5393
        %v5790 = vpop.f32.mrf.mxu0
        %v5791 = vadd.f32 %v5537, %v5790
        %v5792 = vpop.f32.mrf.mxu0
        %5793 = vmatprep.mubr.f32.mxu0 %v5490
        %5794 = vmatmul.mubr.f32.gmra.mxu0 %v5394
        %v5795 = vpop.f32.mrf.mxu0
        %v5796 = vadd.f32 %v5537, %v5795
        %v5797 = vpop.f32.mrf.mxu0
        %5798 = vmatprep.mubr.f32.mxu0 %v5491
        %5799 = vmatmul.mubr.f32.gmra.mxu0 %v5395
        %v5800 = vpop.f32.mrf.mxu0
        %v5801 = vadd.f32 %v5537, %v5800
        %v5802 = vpop.f32.mrf.mxu0
        %5803 = vmatprep.mubr.f32.mxu0 %v5492
        %5804 = vmatmul.mubr.f32.gmra.mxu0 %v5396
        %v5805 = vpop.f32.mrf.mxu0
        %v5806 = vadd.f32 %v5537, %v5805
        %v5807 = vpop.f32.mrf.mxu0
        %5808 = vmatprep.mubr.f32.mxu0 %v5493
        %5809 = vmatmul.mubr.f32.gmra.mxu0 %v5397
        %v5810 = vpop.f32.mrf.mxu0
        %v5811 = vadd.f32 %v5537, %v5810
        %v5812 = vpop.f32.mrf.mxu0
        %5813 = vmatprep.mubr.f32.mxu0 %v5494
        %5814 = vmatmul.mubr.f32.gmra.mxu0 %v5398
        %v5815 = vpop.f32.mrf.mxu0
        %v5816 = vadd.f32 %v5537, %v5815
        %v5817 = vpop.f32.mrf.mxu0
        %5818 = vmatprep.mubr.f32.mxu0 %v5495
        %5819 = vmatmul.mubr.f32.gmra.mxu0 %v5399
        %v5820 = vpop.f32.mrf.mxu0
        %v5821 = vadd.f32 %v5537, %v5820
        %v5822 = vpop.f32.mrf.mxu0
        %5823 = vdwg.mxu0
        %5824 = vmatprep.subr.mxu0 0.0
        %5825 = vmatpush1.msra.mxu0 0.0
        %5826 = vmatprep.subr.mxu0 0.0
        %5827 = vmatpush1.msra.mxu0 0.0
        %5828 = vmatprep.subr.mxu0 0.0
        %5829 = vmatpush1.msra.mxu0 0.0
        %5830 = vmatprep.subr.mxu0 0.0
        %5831 = vmatpush1.msra.mxu0 0.0
        %5832 = vmatprep.subr.mxu0 0.0
        %5833 = vmatpush1.msra.mxu0 0.0
        %5834 = vmatprep.subr.mxu0 0.0
        %5835 = vmatpush1.msra.mxu0 0.0
        %5836 = vmatprep.subr.mxu0 0.0
        %5837 = vmatpush1.msra.mxu0 0.0
        %5838 = vmatprep.subr.mxu0 0.0
        %5839 = vmatpush1.msra.mxu0 0.0
        %5840 = vmatprep.subr.mxu0 0.0
        %5841 = vmatpush1.msra.mxu0 0.0
        %5842 = vmatprep.subr.mxu0 0.0
        %5843 = vmatpush1.msra.mxu0 0.0
        %5844 = vmatprep.subr.mxu0 0.0
        %5845 = vmatpush1.msra.mxu0 0.0
        %5846 = vmatprep.subr.mxu0 0.0
        %5847 = vmatpush1.msra.mxu0 0.0
        %5848 = vmatprep.subr.mxu0 0.0
        %5849 = vmatpush1.msra.mxu0 %v5531
        %5850 = vmatprep.subr.mxu0 0.0
        %5851 = vmatpush1.msra.mxu0 %v5530
        %5852 = vmatprep.subr.mxu0 0.0
        %5853 = vmatpush1.msra.mxu0 %v5529
        %5854 = vmatprep.subr.mxu0 0.0
        %5855 = vmatpush1.msra.mxu0 %v5528
        %5856 = vmatprep.subr.mxu0 0.0
        %5857 = vmatpush2.msra.mxu0 0.0
        %5858 = vmatprep.subr.mxu0 0.0
        %5859 = vmatpush2.msra.mxu0 0.0
        %5860 = vmatprep.subr.mxu0 0.0
        %5861 = vmatpush2.msra.mxu0 0.0
        %5862 = vmatprep.subr.mxu0 0.0
        %5863 = vmatpush2.msra.mxu0 0.0
        %5864 = vmatprep.subr.mxu0 0.0
        %5865 = vmatpush2.msra.mxu0 0.0
        %5866 = vmatprep.subr.mxu0 0.0
        %5867 = vmatpush2.msra.mxu0 0.0
        %5868 = vmatprep.subr.mxu0 0.0
        %5869 = vmatpush2.msra.mxu0 0.0
        %5870 = vmatprep.subr.mxu0 0.0
        %5871 = vmatpush2.msra.mxu0 0.0
        %5872 = vmatprep.subr.mxu0 0.0
        %5873 = vmatpush2.msra.mxu0 0.0
        %5874 = vmatprep.subr.mxu0 0.0
        %5875 = vmatpush2.msra.mxu0 0.0
        %5876 = vmatprep.subr.mxu0 0.0
        %5877 = vmatpush2.msra.mxu0 0.0
        %5878 = vmatprep.subr.mxu0 0.0
        %5879 = vmatpush2.msra.mxu0 0.0
        %5880 = vmatprep.subr.mxu0 0.0
        %5881 = vmatpush2.msra.mxu0 0.0
        %5882 = vmatprep.subr.mxu0 0.0
        %5883 = vmatpush2.msra.mxu0 0.0
        %5884 = vmatprep.subr.mxu0 0.0
        %5885 = vmatpush2.msra.mxu0 0.0
        %5886 = vmatprep.subr.mxu0 0.0
        %5887 = vmatpush2.msra.mxu0 0.0
        %5888 = vmatprep.mubr.f32.mxu0 0.0
        %5889 = vmatmul.mubr.f32.gmra.mxu0 %v5539
        %v5890 = vpop.f32.mrf.mxu0
        %v5891 = vadd.f32 %v5666, %v5890
        %v5892 = vpop.f32.mrf.mxu0
        %5893 = vmatprep.mubr.f32.mxu0 0.0
        %5894 = vmatmul.mubr.f32.gmra.mxu0 %v5541
        %v5895 = vpop.f32.mrf.mxu0
        %v5896 = vadd.f32 %v5671, %v5895
        %v5897 = vpop.f32.mrf.mxu0
        %5898 = vmatprep.mubr.f32.mxu0 0.0
        %5899 = vmatmul.mubr.f32.gmra.mxu0 %v5543
        %v5900 = vpop.f32.mrf.mxu0
        %v5901 = vadd.f32 %v5676, %v5900
        %v5902 = vpop.f32.mrf.mxu0
        %5903 = vmatprep.mubr.f32.mxu0 0.0
        %5904 = vmatmul.mubr.f32.gmra.mxu0 %v5545
        %v5905 = vpop.f32.mrf.mxu0
        %v5906 = vadd.f32 %v5681, %v5905
        %v5907 = vpop.f32.mrf.mxu0
        %5908 = vmatprep.mubr.f32.mxu0 0.0
        %5909 = vmatmul.mubr.f32.gmra.mxu0 %v5547
        %v5910 = vpop.f32.mrf.mxu0
        %v5911 = vadd.f32 %v5686, %v5910
        %v5912 = vpop.f32.mrf.mxu0
        %5913 = vmatprep.mubr.f32.mxu0 0.0
        %5914 = vmatmul.mubr.f32.gmra.mxu0 %v5549
        %v5915 = vpop.f32.mrf.mxu0
        %v5916 = vadd.f32 %v5691, %v5915
        %v5917 = vpop.f32.mrf.mxu0
        %5918 = vmatprep.mubr.f32.mxu0 0.0
        %5919 = vmatmul.mubr.f32.gmra.mxu0 %v5551
        %v5920 = vpop.f32.mrf.mxu0
        %v5921 = vadd.f32 %v5696, %v5920
        %v5922 = vpop.f32.mrf.mxu0
        %5923 = vmatprep.mubr.f32.mxu0 0.0
        %5924 = vmatmul.mubr.f32.gmra.mxu0 %v5553
        %v5925 = vpop.f32.mrf.mxu0
        %v5926 = vadd.f32 %v5701, %v5925
        %v5927 = vpop.f32.mrf.mxu0
        %5928 = vmatprep.mubr.f32.mxu0 0.0
        %5929 = vmatmul.mubr.f32.gmra.mxu0 %v5555
        %v5930 = vpop.f32.mrf.mxu0
        %v5931 = vadd.f32 %v5706, %v5930
        %v5932 = vpop.f32.mrf.mxu0
        %5933 = vmatprep.mubr.f32.mxu0 0.0
        %5934 = vmatmul.mubr.f32.gmra.mxu0 %v5557
        %v5935 = vpop.f32.mrf.mxu0
        %v5936 = vadd.f32 %v5711, %v5935
        %v5937 = vpop.f32.mrf.mxu0
        %5938 = vmatprep.mubr.f32.mxu0 0.0
        %5939 = vmatmul.mubr.f32.gmra.mxu0 %v5559
        %v5940 = vpop.f32.mrf.mxu0
        %v5941 = vadd.f32 %v5716, %v5940
        %v5942 = vpop.f32.mrf.mxu0
        %5943 = vmatprep.mubr.f32.mxu0 0.0
        %5944 = vmatmul.mubr.f32.gmra.mxu0 %v5561
        %v5945 = vpop.f32.mrf.mxu0
        %v5946 = vadd.f32 %v5721, %v5945
        %v5947 = vpop.f32.mrf.mxu0
        %5948 = vmatprep.mubr.f32.mxu0 0.0
        %5949 = vmatmul.mubr.f32.gmra.mxu0 %v5563
        %v5950 = vpop.f32.mrf.mxu0
        %v5951 = vadd.f32 %v5726, %v5950
        %v5952 = vpop.f32.mrf.mxu0
        %5953 = vmatprep.mubr.f32.mxu0 0.0
        %5954 = vmatmul.mubr.f32.gmra.mxu0 %v5565
        %v5955 = vpop.f32.mrf.mxu0
        %v5956 = vadd.f32 %v5731, %v5955
        %v5957 = vpop.f32.mrf.mxu0
        %5958 = vmatprep.mubr.f32.mxu0 0.0
        %5959 = vmatmul.mubr.f32.gmra.mxu0 %v5567
        %v5960 = vpop.f32.mrf.mxu0
        %v5961 = vadd.f32 %v5736, %v5960
        %v5962 = vpop.f32.mrf.mxu0
        %5963 = vmatprep.mubr.f32.mxu0 0.0
        %5964 = vmatmul.mubr.f32.gmra.mxu0 %v5569
        %v5965 = vpop.f32.mrf.mxu0
        %v5966 = vadd.f32 %v5741, %v5965
        %v5967 = vpop.f32.mrf.mxu0
        %5968 = vmatprep.mubr.f32.mxu0 0.0
        %5969 = vmatmul.mubr.f32.gmra.mxu0 %v5571
        %v5970 = vpop.f32.mrf.mxu0
        %v5971 = vadd.f32 %v5746, %v5970
        %v5972 = vpop.f32.mrf.mxu0
        %5973 = vmatprep.mubr.f32.mxu0 0.0
        %5974 = vmatmul.mubr.f32.gmra.mxu0 %v5573
        %v5975 = vpop.f32.mrf.mxu0
        %v5976 = vadd.f32 %v5751, %v5975
        %v5977 = vpop.f32.mrf.mxu0
        %5978 = vmatprep.mubr.f32.mxu0 0.0
        %5979 = vmatmul.mubr.f32.gmra.mxu0 %v5575
        %v5980 = vpop.f32.mrf.mxu0
        %v5981 = vadd.f32 %v5756, %v5980
        %v5982 = vpop.f32.mrf.mxu0
        %5983 = vmatprep.mubr.f32.mxu0 0.0
        %5984 = vmatmul.mubr.f32.gmra.mxu0 %v5577
        %v5985 = vpop.f32.mrf.mxu0
        %v5986 = vadd.f32 %v5761, %v5985
        %v5987 = vpop.f32.mrf.mxu0
        %5988 = vmatprep.mubr.f32.mxu0 0.0
        %5989 = vmatmul.mubr.f32.gmra.mxu0 %v5579
        %v5990 = vpop.f32.mrf.mxu0
        %v5991 = vadd.f32 %v5766, %v5990
        %v5992 = vpop.f32.mrf.mxu0
        %5993 = vmatprep.mubr.f32.mxu0 0.0
        %5994 = vmatmul.mubr.f32.gmra.mxu0 %v5581
        %v5995 = vpop.f32.mrf.mxu0
        %v5996 = vadd.f32 %v5771, %v5995
        %v5997 = vpop.f32.mrf.mxu0
        %5998 = vmatprep.mubr.f32.mxu0 0.0
        %5999 = vmatmul.mubr.f32.gmra.mxu0 %v5583
        %v6000 = vpop.f32.mrf.mxu0
        %v6001 = vadd.f32 %v5776, %v6000
        %v6002 = vpop.f32.mrf.mxu0
        %6003 = vmatprep.mubr.f32.mxu0 0.0
        %6004 = vmatmul.mubr.f32.gmra.mxu0 %v5585
        %v6005 = vpop.f32.mrf.mxu0
        %v6006 = vadd.f32 %v5781, %v6005
        %v6007 = vpop.f32.mrf.mxu0
        %6008 = vmatprep.mubr.f32.mxu0 0.0
        %6009 = vmatmul.mubr.f32.gmra.mxu0 %v5587
        %v6010 = vpop.f32.mrf.mxu0
        %v6011 = vadd.f32 %v5786, %v6010
        %v6012 = vpop.f32.mrf.mxu0
        %6013 = vmatprep.mubr.f32.mxu0 0.0
        %6014 = vmatmul.mubr.f32.gmra.mxu0 %v5589
        %v6015 = vpop.f32.mrf.mxu0
        %v6016 = vadd.f32 %v5791, %v6015
        %v6017 = vpop.f32.mrf.mxu0
        %6018 = vmatprep.mubr.f32.mxu0 0.0
        %6019 = vmatmul.mubr.f32.gmra.mxu0 %v5591
        %v6020 = vpop.f32.mrf.mxu0
        %v6021 = vadd.f32 %v5796, %v6020
        %v6022 = vpop.f32.mrf.mxu0
        %6023 = vmatprep.mubr.f32.mxu0 0.0
        %6024 = vmatmul.mubr.f32.gmra.mxu0 %v5593
        %v6025 = vpop.f32.mrf.mxu0
        %v6026 = vadd.f32 %v5801, %v6025
        %v6027 = vpop.f32.mrf.mxu0
        %6028 = vmatprep.mubr.f32.mxu0 0.0
        %6029 = vmatmul.mubr.f32.gmra.mxu0 %v5595
        %v6030 = vpop.f32.mrf.mxu0
        %v6031 = vadd.f32 %v5806, %v6030
        %v6032 = vpop.f32.mrf.mxu0
        %6033 = vmatprep.mubr.f32.mxu0 0.0
        %6034 = vmatmul.mubr.f32.gmra.mxu0 %v5597
        %v6035 = vpop.f32.mrf.mxu0
        %v6036 = vadd.f32 %v5811, %v6035
        %v6037 = vpop.f32.mrf.mxu0
        %6038 = vmatprep.mubr.f32.mxu0 0.0
        %6039 = vmatmul.mubr.f32.gmra.mxu0 %v1558
        %v6040 = vpop.f32.mrf.mxu0
        %v6041 = vadd.f32 %v5816, %v6040
        %v6042 = vpop.f32.mrf.mxu0
        %6043 = vmatprep.mubr.f32.mxu0 0.0
        %6044 = vmatmul.mubr.f32.gmra.mxu0 %v1558
        %v6045 = vpop.f32.mrf.mxu0
        %v6046 = vadd.f32 %v5821, %v6045
        %v6047 = vpop.f32.mrf.mxu0
        %6048 = vdwg.mxu0
        %6049 = vxpose.xlu0.b32.start [1/16] %v5891, 128
        %6050 = vxpose.xlu0.b32.cont [2/16] %v5896, 128
        %6051 = vxpose.xlu0.b32.cont [3/16] %v5901, 128
        %6052 = vxpose.xlu0.b32.cont [4/16] %v5906, 128
        %6053 = vxpose.xlu0.b32.cont [5/16] %v5911, 128
        %6054 = vxpose.xlu0.b32.cont [6/16] %v5916, 128
        %6055 = vxpose.xlu0.b32.cont [7/16] %v5921, 128
        %6056 = vxpose.xlu0.b32.cont [8/16] %v5926, 128
        %6057 = vxpose.xlu0.b32.cont [9/16] %v5931, 128
        %6058 = vxpose.xlu0.b32.cont [10/16] %v5936, 128
        %6059 = vxpose.xlu0.b32.cont [11/16] %v5941, 128
        %6060 = vxpose.xlu0.b32.cont [12/16] %v5946, 128
        %6061 = vxpose.xlu0.b32.cont [13/16] %v5951, 128
        %6062 = vxpose.xlu0.b32.cont [14/16] %v5956, 128
        %6063 = vxpose.xlu0.b32.cont [15/16] %v5961, 128
        %6064 = vxpose.xlu0.b32.end [16/16] %v5966, 128
        %v6065 = vpop.trf.xlu0
        %v6066 = vpop.trf.xlu0
        %v6067 = vpop.trf.xlu0
        %v6068 = vpop.trf.xlu0
        %v6069 = vpop.trf.xlu0
        %v6070 = vpop.trf.xlu0
        %v6071 = vpop.trf.xlu0
        %v6072 = vpop.trf.xlu0
        %v6073 = vpop.trf.xlu0
        %v6074 = vpop.trf.xlu0
        %v6075 = vpop.trf.xlu0
        %v6076 = vpop.trf.xlu0
        %v6077 = vpop.trf.xlu0
        %v6078 = vpop.trf.xlu0
        %v6079 = vpop.trf.xlu0
        %v6080 = vpop.trf.xlu0
        %6081 = vxpose.xlu0.b32.start [1/16] %v5971, 128
        %6082 = vxpose.xlu0.b32.cont [2/16] %v5976, 128
        %6083 = vxpose.xlu0.b32.cont [3/16] %v5981, 128
        %6084 = vxpose.xlu0.b32.cont [4/16] %v5986, 128
        %6085 = vxpose.xlu0.b32.cont [5/16] %v5991, 128
        %6086 = vxpose.xlu0.b32.cont [6/16] %v5996, 128
        %6087 = vxpose.xlu0.b32.cont [7/16] %v6001, 128
        %6088 = vxpose.xlu0.b32.cont [8/16] %v6006, 128
        %6089 = vxpose.xlu0.b32.cont [9/16] %v6011, 128
        %6090 = vxpose.xlu0.b32.cont [10/16] %v6016, 128
        %6091 = vxpose.xlu0.b32.cont [11/16] %v6021, 128
        %6092 = vxpose.xlu0.b32.cont [12/16] %v6026, 128
        %6093 = vxpose.xlu0.b32.cont [13/16] %v6031, 128
        %6094 = vxpose.xlu0.b32.cont [14/16] %v6036, 128
        %6095 = vxpose.xlu0.b32.cont [15/16] %v6041, 128
        %6096 = vxpose.xlu0.b32.end [16/16] %v6046, 128
        %v6097 = vpop.trf.xlu0
        %v6098 = vpop.trf.xlu0
        %v6099 = vpop.trf.xlu0
        %v6100 = vpop.trf.xlu0
        %v6101 = vpop.trf.xlu0
        %v6102 = vpop.trf.xlu0
        %v6103 = vpop.trf.xlu0
        %v6104 = vpop.trf.xlu0
        %v6105 = vpop.trf.xlu0
        %v6106 = vpop.trf.xlu0
        %v6107 = vpop.trf.xlu0
        %v6108 = vpop.trf.xlu0
        %v6109 = vpop.trf.xlu0
        %v6110 = vpop.trf.xlu0
        %v6111 = vpop.trf.xlu0
        %v6112 = vpop.trf.xlu0
        %6113 = vst [vmem:[%s271] sm:$0xff] %v6065
        %6114 = vst [vmem:[%s271 + $0x8] sm:$0xff] %v6097
        %6115 = vst [vmem:[%s271 + $0x10] sm:$0xff] %v6066
        %6116 = vst [vmem:[%s271 + $0x18] sm:$0xff] %v6098
        %6117 = vst [vmem:[%s271 + $0x20] sm:$0xff] %v6067
        %6118 = vst [vmem:[%s271 + $0x28] sm:$0xff] %v6099
        %6119 = vst [vmem:[%s271 + $0x30] sm:$0xff] %v6068
        %6120 = vst [vmem:[%s271 + $0x38] sm:$0xff] %v6100
        %s6121 = sand.u32 %s181, 1
        %s6122 = scalar_lea.sflag [#allocation3], %s6121
        %s6123 = sand.u32 %s181, 1
        %s6124 = smul.addr %s6123, 64
        %s6125 = scalar_lea.vmem [#allocation2], %s6124
        // Predicated region
        $region49: #{tpu_custom_call.1} parent=47 // pred_check
          %p6126 = pneg %p191
        $region50: #{tpu_custom_call.1} parent=47 // pred_check_branch
          %6128 = sbr.rel (%p6126) target = $region52
        $region51: #{tpu_custom_call.1} parent=47 // pred_region
          %s6130 = ssub.s32 1024, 1024
          %6131 = vsyncadd %s6122, %s6130
          %s6132 = smul.addr %s21, 8
          %s6133 = smul.addr %s6132, 128
          %s6134 = scalar_lea.hbm %s7, %s6133
          %s6135 = sshll.u32 %s6125, 4
          %s6136 = int_to_ptr.vmem [resolvable:$true] %s6135
          %6141 = dma.vmem_to_hbm [thread:$0]  %s6136, 1024, %s6134, %s6122, 256, 256, 16
        $region52: #{tpu_custom_call.1} parent=47 // pred_fallthru
          _
      $region48: #{tpu_custom_call.1} parent=5 // pred_fallthru
        _
      %p6142 = scmp.le.s32.totalorder 2, %s16
      // Predicated region
      $region53: #{tpu_custom_call.1} parent=5 // pred_check
        %p6143 = pneg %p6142
      $region54: #{tpu_custom_call.1} parent=5 // pred_check_branch
        %6145 = sbr.rel (%p6143) target = $region56
      $region55: #{tpu_custom_call.1} parent=5 // pred_region
        %s6146 = ssub.s32 %s16, 2
        // Predicated region
        $region57: #{tpu_custom_call.1} parent=55 // pred_check
          %p6147 = pneg %p197
        $region58: #{tpu_custom_call.1} parent=55 // pred_check_branch
          %6149 = sbr.rel (%p6147) target = $region60
        $region59: #{tpu_custom_call.1} parent=55 // pred_region
          %s6150 = sand.u32 %s182, 1
          %s6151 = scalar_lea.sflag [#allocation3], %s6150
          %s6152 = sand.u32 %s182, 1
          %s6153 = smul.addr %s6152, 64
          %s6154 = scalar_lea.vmem [#allocation2], %s6153
          %6155 = dma.done %s6151, 1024
        $region60: #{tpu_custom_call.1} parent=55 // pred_fallthru
          _
      $region56: #{tpu_custom_call.1} parent=5 // pred_fallthru
        _
    $region6: #{tpu_custom_call.1} parent=1 // loop_footer
      %s20 = sadd.s32 1, %s16
    $region7: #{tpu_custom_call.1} parent=1 // loop_footer_branch
      %15 = sbr.rel target = $region3
    $region8: #{tpu_custom_call.1} parent=1 // loop_exit
      _
    %6156 = vsyncpa [#allocation3], 1
    %s6157 = scalar_lea.sflag [#allocation3], 1
    %6158 = vsyncpa %s6157, 1

</llo_original>
